<compile_context>
chip_gen: v6e
topology: v6e:2x2x1
jax: 0.10.0
libtpu: 0.0.40
codegen_flags: <defaults>
</compile_context>

<pallas_src>
import functools

import jax
import jax.numpy as jnp
from jax.experimental import pallas as pl
from jax.experimental.pallas import tpu as pltpu


# ----------------------------------------------------------------------------
# Pallas kernels
# ----------------------------------------------------------------------------
def _conv_mm_kernel(w_ref, p_ref, b_ref, o_ref, *, relu):
    """Shared conv tile: (Cout,K)bf16 @ (K,TN)bf16 + bias, optional fused ReLU."""
    y = jnp.dot(w_ref[...], p_ref[...], preferred_element_type=jnp.float32)
    y = y + b_ref[...]
    if relu:
        y = jnp.maximum(y, 0.0)
    o_ref[...] = y


def _conv_mm_res_kernel(w_ref, p_ref, b_ref, r_ref, o_ref, *, res_scale):
    """Shared conv tile with fused residual epilogue: (W@P + b) * res_scale + res."""
    y = jnp.dot(w_ref[...], p_ref[...], preferred_element_type=jnp.float32)
    o_ref[...] = (y + b_ref[...]) * res_scale + r_ref[...]


def _qk_norm_kernel(w_ref, p_ref, o_ref, *, C):
    """Per-sample: qk = Wqk @ patches, then L2-normalize the q-half and the k-half
    each over the whole (C*H2*W2) sample (matches torch.nn.functional.normalize)."""
    y = jnp.dot(w_ref[...], p_ref[...], preferred_element_type=jnp.float32)  # (2C, HW2)
    q = y[:C, :]
    k = y[C:, :]
    qn = jnp.sum(q * q, axis=1, keepdims=True).sum(axis=0, keepdims=True)   # (1, 1)
    kn = jnp.sum(k * k, axis=1, keepdims=True).sum(axis=0, keepdims=True)
    q_scale = 1.0 / jnp.maximum(jnp.sqrt(qn), 1e-12)
    k_scale = 1.0 / jnp.maximum(jnp.sqrt(kn), 1e-12)
    o_ref[:C, :] = q * q_scale
    o_ref[C:, :] = k * k_scale


def _xtx_kernel(k_ref, q_ref, o_ref):
    """attn[c_k, (i,j,c_q)] = sum_hw k[c_k,hw] * q_shift[(i,j,c_q),hw]  (NT matmul)."""
    o_ref[...] = jax.lax.dot_general(
        k_ref[...], q_ref[...], (((1,), (1,)), ((), ())),
        preferred_element_type=jnp.float32)


def _build_ak_kernel(wconv_ref, p_ref, wadd_ref, t_ref, o_ref):
    """Fused: attn conv -> per-c_out L2 norm over (c_k,kh,kw) -> weight + ak*temp."""
    y = jnp.dot(wconv_ref[...], p_ref[...], preferred_element_type=jnp.float32)
    n = jnp.sqrt(jnp.sum(y * y, axis=-1, keepdims=True))
    y = y / jnp.maximum(n, 1e-12)
    o_ref[...] = wadd_ref[...] + y * t_ref[...]


def _sw_conv_kernel(a_ref, p_ref, o_ref):
    """Per-sample conv as matmul with fused ReLU: (Cout,K)bf16 @ (K,H*W)bf16."""
    y = jnp.dot(a_ref[...], p_ref[...], preferred_element_type=jnp.float32)
    o_ref[...] = jnp.maximum(y, 0.0)


# ----------------------------------------------------------------------------
# Spec helpers
# ----------------------------------------------------------------------------
def _sq_spec(rows, cols):
    """Per-sample block: leading batch dim squeezed, full trailing dims."""
    return pl.BlockSpec((pl.Squeezed(), rows, cols), lambda b: (b, 0, 0))


def _full_spec(rows, cols):
    """Full 2-D array block, shared across all grid steps."""
    return pl.BlockSpec((rows, cols), lambda b: (0, 0))


def _round_up(n, m):
    return ((n + m - 1) // m) * m


_PARALLEL1 = pltpu.CompilerParams(dimension_semantics=("parallel",))


# ----------------------------------------------------------------------------
# im2col glue (plain JAX) — channel-major layouts, K flattened as (c_in, dh, dw)
# ----------------------------------------------------------------------------
# TODO(synk): build the patch matrices inside the Pallas kernels (shifted VMEM reads)
# instead of materializing the k*k-expanded copies in HBM.
def _im2col_cbhw(x_cb, k, pad, stride=1):
    """CBHW (C,B,H,W) -> patch matrix (C*k*k, B*Ho*Wo)."""
    C, B, H, W = x_cb.shape
    xp = jnp.pad(x_cb, ((0, 0), (0, 0), (pad, pad), (pad, pad)))
    Hp, Wp = H + 2 * pad, W + 2 * pad
    Ho = (Hp - k) // stride + 1
    Wo = (Wp - k) // stride + 1
    sl = []
    for dh in range(k):
        for dw in range(k):
            sl.append(xp[:, :, dh:dh + stride * (Ho - 1) + 1:stride,
                               dw:dw + stride * (Wo - 1) + 1:stride])
    s = jnp.stack(sl, axis=1)                       # (C, k*k, B, Ho, Wo)
    return s.reshape(C * k * k, B * Ho * Wo), Ho, Wo


def _im2col_per_sample(x_cb, k, pad, stride=1):
    """CBHW -> per-sample patches (B, C*k*k, Ho*Wo)."""
    C, B, H, W = x_cb.shape
    xp = jnp.pad(x_cb, ((0, 0), (0, 0), (pad, pad), (pad, pad)))
    Hp, Wp = H + 2 * pad, W + 2 * pad
    Ho = (Hp - k) // stride + 1
    Wo = (Wp - k) // stride + 1
    sl = []
    for dh in range(k):
        for dw in range(k):
            sl.append(xp[:, :, dh:dh + stride * (Ho - 1) + 1:stride,
                               dw:dw + stride * (Wo - 1) + 1:stride])
    s = jnp.stack(sl, axis=1)                       # (C, k*k, B, Ho, Wo)
    s = s.transpose(2, 0, 1, 3, 4)                  # (B, C, k*k, Ho, Wo)
    return s.reshape(B, C * k * k, Ho * Wo), Ho, Wo


# ----------------------------------------------------------------------------
# Shared-weight conv on CBHW activations (lane-dense, N-tiled, fused epilogues)
# ----------------------------------------------------------------------------
def conv2d_cbhw(x_cb, w, b=None, pad=0, stride=1, relu=False,
                residual=None, res_scale=1.0):
    """x_cb: (Cin,B,H,W) f32; w: (Cout,Cin,k,k).  Returns (Cout,B,Ho,Wo) f32.
    Optional fused epilogue: out = (conv + bias)[ReLU] * res_scale + residual."""
    Cout, Cin, k, _ = w.shape
    Bsz = x_cb.shape[1]
    patches, Ho, Wo = _im2col_cbhw(x_cb.astype(jnp.bfloat16), k, pad, stride)
    K, N = patches.shape
    tn = 512 if N >= 4096 else 128                  # lane tile: parallel grid axis
    Np = _round_up(N, tn)
    patches = jnp.pad(patches, ((0, 0), (0, Np - N)))
    wf = w.reshape(Cout, K).astype(jnp.bfloat16)
    bias = b if b is not None else jnp.zeros((Cout,), jnp.float32)
    bias = bias.reshape(Cout, 1).astype(jnp.float32)

    in_specs = [
        pl.BlockSpec((Cout, K), lambda j: (0, 0)),
        pl.BlockSpec((K, tn), lambda j: (0, j)),
        pl.BlockSpec((Cout, 1), lambda j: (0, 0)),
    ]
    args = [wf, patches, bias]
    if residual is not None:
        res = jnp.pad(residual.reshape(Cout, N).astype(jnp.float32),
                      ((0, 0), (0, Np - N)))
        in_specs.append(pl.BlockSpec((Cout, tn), lambda j: (0, j)))
        args.append(res)
        kern = functools.partial(_conv_mm_res_kernel, res_scale=float(res_scale))
    else:
        kern = functools.partial(_conv_mm_kernel, relu=relu)

    out = pl.pallas_call(
        kern,
        out_shape=jax.ShapeDtypeStruct((Cout, Np), jnp.float32),
        grid=(Np // tn,),
        in_specs=in_specs,
        out_specs=pl.BlockSpec((Cout, tn), lambda j: (0, j)),
        compiler_params=_PARALLEL1,
    )(*args)
    return out[:, :N].reshape(Cout, Bsz, Ho, Wo)


def pixel_shuffle_cbhw(x_cb, r):
    C, B, H, W = x_cb.shape
    Co = C // (r * r)
    x = x_cb.reshape(Co, r, r, B, H, W)
    x = x.transpose(0, 3, 4, 1, 5, 2)               # (Co, B, H, r, W, r)
    return x.reshape(Co, B, H * r, W * r)


# ----------------------------------------------------------------------------
# KAM / KABlock / KAT forward (activations in CBHW)
# ----------------------------------------------------------------------------
def kam_forward(x_cb, p, ks=3):
    C, B, H, W = x_cb.shape
    x_bf = x_cb.astype(jnp.bfloat16)

    # --- qk conv (stride 3, no bias) + per-sample L2 pre-normalize, fused ------------
    qk_pat, H2, W2 = _im2col_per_sample(x_bf, 3, pad=0, stride=3)  # (B, C*9, H2*W2)
    HW2 = H2 * W2
    wqk = p["qk_w"].reshape(2 * C, C * 9).astype(jnp.bfloat16)
    qk = pl.pallas_call(
        functools.partial(_qk_norm_kernel, C=C),
        out_shape=jax.ShapeDtypeStruct((B, 2 * C, HW2), jnp.float32),
        grid=(B,),
        in_specs=[_full_spec(2 * C, C * 9), _sq_spec(C * 9, HW2)],
        out_specs=_sq_spec(2 * C, HW2),
        compiler_params=_PARALLEL1,
    )(wqk, qk_pat)

    # --- xtx correlation: attn[b, c_k, (i,j,c_q)] ------------------------------------
    P = ks - 1
    S = 2 * ks - 1
    q4 = qk[:, :C, :].astype(jnp.bfloat16).reshape(B, C, H2, W2)
    kf = qk[:, C:, :].astype(jnp.bfloat16)                         # (B, C, HW2)
    qp = jnp.pad(q4, ((0, 0), (0, 0), (P, P), (P, P)))
    shifts = [qp[:, :, i:i + H2, j:j + W2].reshape(B, C, HW2)
              for i in range(S) for j in range(S)]
    qs = jnp.stack(shifts, axis=1).reshape(B, S * S * C, HW2)      # rows (i, j, c_q)
    attn = pl.pallas_call(
        _xtx_kernel,
        out_shape=jax.ShapeDtypeStruct((B, C, S * S * C), jnp.float32),
        grid=(B,),
        in_specs=[_sq_spec(C, HW2), _sq_spec(S * S * C, HW2)],
        out_specs=_sq_spec(C, S * S * C),
        compiler_params=_PARALLEL1,
    )(kf, qs)

    # --- attn conv + L2 norm + (weight + ak * temperature), fused --------------------
    attn5 = attn.astype(jnp.bfloat16).reshape(B, C, S, S, C)       # (b, c_k, i, j, c_q)
    pats = []
    for dh in range(ks):
        for dw in range(ks):
            sl = attn5[:, :, dh:dh + ks, dw:dw + ks, :]            # (b, c_k, kh, kw, c_q)
            pats.append(sl.transpose(0, 4, 1, 2, 3).reshape(B, C, C * ks * ks))
    apat = jnp.stack(pats, axis=1).reshape(B, ks * ks * C, C * ks * ks)
    wconv = p["weight"].transpose(0, 2, 3, 1).reshape(C, ks * ks * C).astype(jnp.bfloat16)
    wadd = p["weight"].reshape(C, C * ks * ks).astype(jnp.float32)
    temp = p["temperature"].reshape(1, 1).astype(jnp.float32)
    ak = pl.pallas_call(
        _build_ak_kernel,
        out_shape=jax.ShapeDtypeStruct((B, C, C * ks * ks), jnp.float32),
        grid=(B,),
        in_specs=[_full_spec(C, ks * ks * C), _sq_spec(ks * ks * C, C * ks * ks),
                  _full_spec(C, C * ks * ks), _full_spec(1, 1)],
        out_specs=_sq_spec(C, C * ks * ks),
        compiler_params=_PARALLEL1,
    )(wconv, apat, wadd, temp)                                     # ak[b, c_out, (c_k,kh,kw)]

    # --- sample-wise conv with per-batch kernels + fused ReLU ------------------------
    sw_pat, Ho, Wo = _im2col_per_sample(x_bf, ks, pad=ks // 2, stride=1)
    out = pl.pallas_call(
        _sw_conv_kernel,
        out_shape=jax.ShapeDtypeStruct((B, C, Ho * Wo), jnp.float32),
        grid=(B,),
        in_specs=[_sq_spec(C, C * ks * ks), _sq_spec(C * ks * ks, Ho * Wo)],
        out_specs=_sq_spec(C, Ho * Wo),
        compiler_params=_PARALLEL1,
    )(ak.astype(jnp.bfloat16), sw_pat)
    return out.transpose(1, 0, 2).reshape(C, B, Ho, Wo)            # back to CBHW


def kat_forward(x_nchw, params):
    # NCHW -> CBHW (done once); sub_mean folded to a channel bias add (identity weight)
    x_cb = jnp.transpose(x_nchw, (1, 0, 2, 3)).astype(jnp.float32)
    x_cb = x_cb + params["sub_b"][:, None, None, None]

    # head
    x_cb = conv2d_cbhw(x_cb, params["head_w"], params["head_b"], pad=1)

    # body (each block: KAM -> ReLU(no-op, KAM already ReLU'd) -> conv; fused residual)
    res = x_cb
    for bp in params["blocks"]:
        y = kam_forward(res, bp["kam"])
        res = conv2d_cbhw(y, bp["conv_w"], bp["conv_b"], pad=1,
                          residual=res, res_scale=params["res_scale"])
    res = conv2d_cbhw(res, params["body_w"], params["body_b"], pad=1,
                      residual=x_cb, res_scale=1.0)

    # tail: Upsampler(scale=2) = conv(nf -> 4nf) + PixelShuffle(2), then conv(nf -> 3)
    y = conv2d_cbhw(res, params["up_w"], params["up_b"], pad=1)
    y = pixel_shuffle_cbhw(y, 2)
    tail_bias = params["tail_b"] + params["add_b"]   # add_mean folded exactly into bias
    y = conv2d_cbhw(y, params["tail_w"], tail_bias, pad=1)

    return jnp.transpose(y, (1, 0, 2, 3))            # CBHW -> NCHW


# ----------------------------------------------------------------------------
# Deterministic parameter initialization (shapes from the PyTorch __init__)
# ----------------------------------------------------------------------------
def init_params(key, n_feats=8, n_blocks=1, rgb_range=1.0, res_scale=1.0):
    ks = 3
    keys = iter(jax.random.split(key, 64))

    def nrm(shape, scale):
        return jax.random.normal(next(keys), shape, jnp.float32) * scale

    rgb_mean = jnp.array([0.4488, 0.4371, 0.4040], jnp.float32)

    blocks = []
    for _ in range(n_blocks):
        kam = {
            "qk_w": nrm((2 * n_feats, n_feats, 3, 3), 0.05),
            # kaiming_normal (fan_in = n_feats*ks*ks) then * 0.1
            "weight": nrm((n_feats, n_feats, ks, ks),
                          0.1 * (2.0 / (n_feats * ks * ks)) ** 0.5),
            "temperature": jnp.zeros((1, 1, 1), jnp.float32),
        }
        blocks.append({
            "kam": kam,
            "conv_w": nrm((n_feats, n_feats, ks, ks), 0.05),
            "conv_b": jnp.zeros((n_feats,), jnp.float32),
        })

    return {
        "sub_b": -rgb_range * rgb_mean,
        "add_b": rgb_range * rgb_mean,
        "head_w": nrm((n_feats, 3, ks, ks), 0.05),
        "head_b": jnp.zeros((n_feats,), jnp.float32),
        "blocks": blocks,
        "body_w": nrm((n_feats, n_feats, ks, ks), 0.05),
        "body_b": jnp.zeros((n_feats,), jnp.float32),
        "up_w": nrm((4 * n_feats, n_feats, ks, ks), 0.05),
        "up_b": jnp.zeros((4 * n_feats,), jnp.float32),
        "tail_w": nrm((3, n_feats, ks, ks), 0.05),
        "tail_b": jnp.zeros((3,), jnp.float32),
        "res_scale": res_scale,
    }


# ----------------------------------------------------------------------------
if __name__ == "__main__":
    key = jax.random.PRNGKey(0)
    kx, kp = jax.random.split(key)

    # NCHW input; H, W divisible by 3 so the stride-3 qk conv is clean.
    B, Cin, H, W = 2, 3, 12, 12
    x = jax.random.uniform(kx, (B, Cin, H, W), jnp.float32)   # rgb_range = 1.0

    params = init_params(kp, n_feats=8, n_blocks=1, rgb_range=1.0, res_scale=1.0)

    fwd = jax.jit(lambda inp: kat_forward(inp, params))
    out = jax.block_until_ready(fwd(x))

    assert out.shape == (B, 3, 2 * H, 2 * W), out.shape
    assert bool(jnp.all(jnp.isfinite(out)))
    print("KERNEL_OK")
</pallas_src>

<mosaic_0001>
module attributes {stable_mosaic.version = 11 : i64} {
  func.func @_conv_mm_kernel(%arg0: i32, %arg1: memref<8x27xbf16, #tpu.memory_space<vmem>>, %arg2: memref<27x128xbf16, #tpu.memory_space<vmem>>, %arg3: memref<8x1xf32, #tpu.memory_space<vmem>>, %arg4: memref<8x128xf32, #tpu.memory_space<vmem>>) attributes {dimension_semantics = [#tpu.dimension_semantics<parallel>], iteration_bounds = array<i64: 3>, scalar_prefetch = 0 : i64, scratch_operands = 0 : i64, tpu.core_type = #tpu.core_type<tc>, window_params = [{pipeline_mode = #tpu.pipeline_mode<synchronous>, transform_indices = @transform_0, window_bounds = array<i64: 8, 27>}, {transform_indices = @transform_1, window_bounds = array<i64: 27, 128>}, {pipeline_mode = #tpu.pipeline_mode<synchronous>, transform_indices = @transform_2, window_bounds = array<i64: 8, 1>}, {transform_indices = @transform_3, window_bounds = array<i64: 8, 128>}]} {
    %c0 = arith.constant 0 : index
    %c0_0 = arith.constant 0 : index
    %0 = vector.load %arg1[%c0, %c0_0] : memref<8x27xbf16, #tpu.memory_space<vmem>>, vector<8x27xbf16>
    %c0_1 = arith.constant 0 : index
    %c0_2 = arith.constant 0 : index
    %1 = vector.load %arg2[%c0_1, %c0_2] : memref<27x128xbf16, #tpu.memory_space<vmem>>, vector<27x128xbf16>
    %cst = arith.constant dense<0.000000e+00> : vector<8x128xf32>
    %2 = tpu.matmul %0, %1, %cst {dimension_numbers = #tpu.dot_dimension_numbers<[1], [0], [0], [1], [0, 0, 1, 1], [], []>} : vector<8x27xbf16>, vector<27x128xbf16>, vector<8x128xf32> -> vector<8x128xf32>
    %c0_3 = arith.constant 0 : index
    %c0_4 = arith.constant 0 : index
    %3 = vector.load %arg3[%c0_3, %c0_4] : memref<8x1xf32, #tpu.memory_space<vmem>>, vector<8x1xf32>
    %4 = vector.broadcast %3 : vector<8x1xf32> to vector<8x128xf32>
    %5 = arith.addf %2, %4 : vector<8x128xf32>
    %c0_5 = arith.constant 0 : index
    %c0_6 = arith.constant 0 : index
    %6 = vector.load %arg4[%c0_5, %c0_6] : memref<8x128xf32, #tpu.memory_space<vmem>>, vector<8x128xf32>
    tpu.vector_store %arg4[%c0_5, %c0_6], %5 {strides = array<i32>} : memref<8x128xf32, #tpu.memory_space<vmem>>, vector<8x128xf32>,
    return
  }
  func.func @transform_0(%arg0: i32) -> (i32, i32) {
    %c0_i32 = arith.constant 0 : i32
    %c0_i32_0 = arith.constant 0 : i32
    %c0_i32_1 = arith.constant 0 : i32
    return %c0_i32, %c0_i32_0 : i32, i32
  }
  func.func @transform_1(%arg0: i32) -> (i32, i32) {
    %c0_i32 = arith.constant 0 : i32
    %c0_i32_0 = arith.constant 0 : i32
    return %c0_i32, %arg0 : i32, i32
  }
  func.func @transform_2(%arg0: i32) -> (i32, i32) {
    %c0_i32 = arith.constant 0 : i32
    %c0_i32_0 = arith.constant 0 : i32
    %c0_i32_1 = arith.constant 0 : i32
    return %c0_i32, %c0_i32_0 : i32, i32
  }
  func.func @transform_3(%arg0: i32) -> (i32, i32) {
    %c0_i32 = arith.constant 0 : i32
    %c0_i32_0 = arith.constant 0 : i32
    return %c0_i32, %arg0 : i32, i32
  }
}

module attributes {stable_mosaic.version = 11 : i64} {
  func.func @_qk_norm_kernel(%arg0: i32, %arg1: memref<16x72xbf16, #tpu.memory_space<vmem>>, %arg2: memref<1x72x16xbf16, #tpu.memory_space<vmem>>, %arg3: memref<1x16x16xf32, #tpu.memory_space<vmem>>) attributes {dimension_semantics = [#tpu.dimension_semantics<parallel>], iteration_bounds = array<i64: 2>, scalar_prefetch = 0 : i64, scratch_operands = 0 : i64, tpu.core_type = #tpu.core_type<tc>, window_params = [{pipeline_mode = #tpu.pipeline_mode<synchronous>, transform_indices = @transform_0, window_bounds = array<i64: 16, 72>}, {transform_indices = @transform_1, window_bounds = array<i64: 1, 72, 16>}, {transform_indices = @transform_2, window_bounds = array<i64: 1, 16, 16>}]} {
    %c0 = arith.constant 0 : index
    %c0_0 = arith.constant 0 : index
    %0 = vector.load %arg1[%c0, %c0_0] : memref<16x72xbf16, #tpu.memory_space<vmem>>, vector<16x72xbf16>
    %c0_1 = arith.constant 0 : index
    %c0_2 = arith.constant 0 : index
    %c0_3 = arith.constant 0 : index
    %1 = vector.load %arg2[%c0_1, %c0_2, %c0_3] : memref<1x72x16xbf16, #tpu.memory_space<vmem>>, vector<1x72x16xbf16>
    %2 = vector.shape_cast %1 : vector<1x72x16xbf16> to vector<72x16xbf16>
    %cst = arith.constant dense<0.000000e+00> : vector<16x16xf32>
    %3 = tpu.matmul %0, %2, %cst {dimension_numbers = #tpu.dot_dimension_numbers<[1], [0], [0], [1], [0, 0, 1, 1], [], []>} : vector<16x72xbf16>, vector<72x16xbf16>, vector<16x16xf32> -> vector<16x16xf32>
    %4 = vector.extract_strided_slice %3 {offsets = [0, 0], sizes = [8, 16], strides = [1, 1]} : vector<16x16xf32> to vector<8x16xf32>
    %5 = vector.extract_strided_slice %3 {offsets = [8, 0], sizes = [8, 16], strides = [1, 1]} : vector<16x16xf32> to vector<8x16xf32>
    %6 = arith.mulf %4, %4 : vector<8x16xf32>
    %cst_4 = arith.constant dense<0.000000e+00> : vector<8xf32>
    %7 = vector.multi_reduction <add>, %6, %cst_4 [1] : vector<8x16xf32> to vector<8xf32>
    %8 = vector.shape_cast %7 : vector<8xf32> to vector<8x1xf32>
    %cst_5 = arith.constant dense<0.000000e+00> : vector<1xf32>
    %9 = vector.multi_reduction <add>, %8, %cst_5 [0] : vector<8x1xf32> to vector<1xf32>
    %10 = vector.shape_cast %9 : vector<1xf32> to vector<1x1xf32>
    %11 = arith.mulf %5, %5 : vector<8x16xf32>
    %cst_6 = arith.constant dense<0.000000e+00> : vector<8xf32>
    %12 = vector.multi_reduction <add>, %11, %cst_6 [1] : vector<8x16xf32> to vector<8xf32>
    %13 = vector.shape_cast %12 : vector<8xf32> to vector<8x1xf32>
    %cst_7 = arith.constant dense<0.000000e+00> : vector<1xf32>
    %14 = vector.multi_reduction <add>, %13, %cst_7 [0] : vector<8x1xf32> to vector<1xf32>
    %15 = vector.shape_cast %14 : vector<1xf32> to vector<1x1xf32>
    %16 = math.sqrt %10 : vector<1x1xf32>
    %cst_8 = arith.constant 9.99999996E-13 : f32
    %17 = vector.broadcast %cst_8 : f32 to vector<1x1xf32>
    %18 = arith.maximumf %16, %17 : vector<1x1xf32>
    %cst_9 = arith.constant 1.000000e+00 : f32
    %19 = vector.broadcast %cst_9 : f32 to vector<1x1xf32>
    %20 = arith.divf %19, %18 : vector<1x1xf32>
    %21 = math.sqrt %15 : vector<1x1xf32>
    %cst_10 = arith.constant 9.99999996E-13 : f32
    %22 = vector.broadcast %cst_10 : f32 to vector<1x1xf32>
    %23 = arith.maximumf %21, %22 : vector<1x1xf32>
    %cst_11 = arith.constant 1.000000e+00 : f32
    %24 = vector.broadcast %cst_11 : f32 to vector<1x1xf32>
    %25 = arith.divf %24, %23 : vector<1x1xf32>
    %26 = vector.broadcast %20 : vector<1x1xf32> to vector<8x16xf32>
    %27 = arith.mulf %4, %26 : vector<8x16xf32>
    %c0_12 = arith.constant 0 : index
    %c0_13 = arith.constant 0 : index
    %c0_14 = arith.constant 0 : index
    %28 = vector.load %arg3[%c0_12, %c0_13, %c0_14] : memref<1x16x16xf32, #tpu.memory_space<vmem>>, vector<1x8x16xf32>
    %29 = vector.shape_cast %28 : vector<1x8x16xf32> to vector<8x16xf32>
    %30 = vector.shape_cast %27 : vector<8x16xf32> to vector<1x8x16xf32>
    tpu.vector_store %arg3[%c0_12, %c0_13, %c0_14], %30 {strides = array<i32>} : memref<1x16x16xf32, #tpu.memory_space<vmem>>, vector<1x8x16xf32>,
    %31 = vector.broadcast %25 : vector<1x1xf32> to vector<8x16xf32>
    %32 = arith.mulf %5, %31 : vector<8x16xf32>
    %c0_15 = arith.constant 0 : index
    %c8 = arith.constant 8 : index
    %c0_16 = arith.constant 0 : index
    %33 = vector.load %arg3[%c0_15, %c8, %c0_16] : memref<1x16x16xf32, #tpu.memory_space<vmem>>, vector<1x8x16xf32>
    %34 = vector.shape_cast %33 : vector<1x8x16xf32> to vector<8x16xf32>
    %35 = vector.shape_cast %32 : vector<8x16xf32> to vector<1x8x16xf32>
    tpu.vector_store %arg3[%c0_15, %c8, %c0_16], %35 {strides = array<i32>} : memref<1x16x16xf32, #tpu.memory_space<vmem>>, vector<1x8x16xf32>,
    return
  }
  func.func @transform_0(%arg0: i32) -> (i32, i32) {
    %c0_i32 = arith.constant 0 : i32
    %c0_i32_0 = arith.constant 0 : i32
    %c0_i32_1 = arith.constant 0 : i32
    return %c0_i32, %c0_i32_0 : i32, i32
  }
  func.func @transform_1(%arg0: i32) -> (i32, i32, i32) {
    %c0_i32 = arith.constant 0 : i32
    %c0_i32_0 = arith.constant 0 : i32
    %c0_i32_1 = arith.constant 0 : i32
    return %arg0, %c0_i32, %c0_i32_0 : i32, i32, i32
  }
  func.func @transform_2(%arg0: i32) -> (i32, i32, i32) {
    %c0_i32 = arith.constant 0 : i32
    %c0_i32_0 = arith.constant 0 : i32
    %c0_i32_1 = arith.constant 0 : i32
    return %arg0, %c0_i32, %c0_i32_0 : i32, i32, i32
  }
}

module attributes {stable_mosaic.version = 11 : i64} {
  func.func @_xtx_kernel(%arg0: i32, %arg1: memref<1x8x16xbf16, #tpu.memory_space<vmem>>, %arg2: memref<1x200x16xbf16, #tpu.memory_space<vmem>>, %arg3: memref<1x8x200xf32, #tpu.memory_space<vmem>>) attributes {dimension_semantics = [#tpu.dimension_semantics<parallel>], iteration_bounds = array<i64: 2>, scalar_prefetch = 0 : i64, scratch_operands = 0 : i64, tpu.core_type = #tpu.core_type<tc>, window_params = [{transform_indices = @transform_0, window_bounds = array<i64: 1, 8, 16>}, {transform_indices = @transform_1, window_bounds = array<i64: 1, 200, 16>}, {transform_indices = @transform_2, window_bounds = array<i64: 1, 8, 200>}]} {
    %c0 = arith.constant 0 : index
    %c0_0 = arith.constant 0 : index
    %c0_1 = arith.constant 0 : index
    %0 = vector.load %arg1[%c0, %c0_0, %c0_1] : memref<1x8x16xbf16, #tpu.memory_space<vmem>>, vector<1x8x16xbf16>
    %1 = vector.shape_cast %0 : vector<1x8x16xbf16> to vector<8x16xbf16>
    %c0_2 = arith.constant 0 : index
    %c0_3 = arith.constant 0 : index
    %c0_4 = arith.constant 0 : index
    %2 = vector.load %arg2[%c0_2, %c0_3, %c0_4] : memref<1x200x16xbf16, #tpu.memory_space<vmem>>, vector<1x200x16xbf16>
    %3 = vector.shape_cast %2 : vector<1x200x16xbf16> to vector<200x16xbf16>
    %cst = arith.constant dense<0.000000e+00> : vector<8x200xf32>
    %4 = tpu.matmul %1, %3, %cst {dimension_numbers = #tpu.dot_dimension_numbers<[1], [1], [0], [0], [0, 0, 1, 0], [], []>} : vector<8x16xbf16>, vector<200x16xbf16>, vector<8x200xf32> -> vector<8x200xf32>
    %c0_5 = arith.constant 0 : index
    %c0_6 = arith.constant 0 : index
    %c0_7 = arith.constant 0 : index
    %5 = vector.load %arg3[%c0_5, %c0_6, %c0_7] : memref<1x8x200xf32, #tpu.memory_space<vmem>>, vector<1x8x200xf32>
    %6 = vector.shape_cast %5 : vector<1x8x200xf32> to vector<8x200xf32>
    %7 = vector.shape_cast %4 : vector<8x200xf32> to vector<1x8x200xf32>
    tpu.vector_store %arg3[%c0_5, %c0_6, %c0_7], %7 {strides = array<i32>} : memref<1x8x200xf32, #tpu.memory_space<vmem>>, vector<1x8x200xf32>,
    return
  }
  func.func @transform_0(%arg0: i32) -> (i32, i32, i32) {
    %c0_i32 = arith.constant 0 : i32
    %c0_i32_0 = arith.constant 0 : i32
    %c0_i32_1 = arith.constant 0 : i32
    return %arg0, %c0_i32, %c0_i32_0 : i32, i32, i32
  }
  func.func @transform_1(%arg0: i32) -> (i32, i32, i32) {
    %c0_i32 = arith.constant 0 : i32
    %c0_i32_0 = arith.constant 0 : i32
    %c0_i32_1 = arith.constant 0 : i32
    return %arg0, %c0_i32, %c0_i32_0 : i32, i32, i32
  }
  func.func @transform_2(%arg0: i32) -> (i32, i32, i32) {
    %c0_i32 = arith.constant 0 : i32
    %c0_i32_0 = arith.constant 0 : i32
    %c0_i32_1 = arith.constant 0 : i32
    return %arg0, %c0_i32, %c0_i32_0 : i32, i32, i32
  }
}

module attributes {stable_mosaic.version = 11 : i64} {
  func.func @_build_ak_kernel(%arg0: i32, %arg1: memref<8x72xbf16, #tpu.memory_space<vmem>>, %arg2: memref<1x72x72xbf16, #tpu.memory_space<vmem>>, %arg3: memref<8x72xf32, #tpu.memory_space<vmem>>, %arg4: memref<1x1xf32, #tpu.memory_space<vmem>>, %arg5: memref<1x8x72xf32, #tpu.memory_space<vmem>>) attributes {dimension_semantics = [#tpu.dimension_semantics<parallel>], iteration_bounds = array<i64: 2>, scalar_prefetch = 0 : i64, scratch_operands = 0 : i64, tpu.core_type = #tpu.core_type<tc>, window_params = [{pipeline_mode = #tpu.pipeline_mode<synchronous>, transform_indices = @transform_0, window_bounds = array<i64: 8, 72>}, {transform_indices = @transform_1, window_bounds = array<i64: 1, 72, 72>}, {pipeline_mode = #tpu.pipeline_mode<synchronous>, transform_indices = @transform_2, window_bounds = array<i64: 8, 72>}, {pipeline_mode = #tpu.pipeline_mode<synchronous>, transform_indices = @transform_3, window_bounds = array<i64: 1, 1>}, {transform_indices = @transform_4, window_bounds = array<i64: 1, 8, 72>}]} {
    %c0 = arith.constant 0 : index
    %c0_0 = arith.constant 0 : index
    %0 = vector.load %arg1[%c0, %c0_0] : memref<8x72xbf16, #tpu.memory_space<vmem>>, vector<8x72xbf16>
    %c0_1 = arith.constant 0 : index
    %c0_2 = arith.constant 0 : index
    %c0_3 = arith.constant 0 : index
    %1 = vector.load %arg2[%c0_1, %c0_2, %c0_3] : memref<1x72x72xbf16, #tpu.memory_space<vmem>>, vector<1x72x72xbf16>
    %2 = vector.shape_cast %1 : vector<1x72x72xbf16> to vector<72x72xbf16>
    %cst = arith.constant dense<0.000000e+00> : vector<8x72xf32>
    %3 = tpu.matmul %0, %2, %cst {dimension_numbers = #tpu.dot_dimension_numbers<[1], [0], [0], [1], [0, 0, 1, 1], [], []>} : vector<8x72xbf16>, vector<72x72xbf16>, vector<8x72xf32> -> vector<8x72xf32>
    %4 = arith.mulf %3, %3 : vector<8x72xf32>
    %cst_4 = arith.constant dense<0.000000e+00> : vector<8xf32>
    %5 = vector.multi_reduction <add>, %4, %cst_4 [1] : vector<8x72xf32> to vector<8xf32>
    %6 = vector.shape_cast %5 : vector<8xf32> to vector<8x1xf32>
    %7 = math.sqrt %6 : vector<8x1xf32>
    %cst_5 = arith.constant 9.99999996E-13 : f32
    %8 = vector.broadcast %cst_5 : f32 to vector<8x1xf32>
    %9 = arith.maximumf %7, %8 : vector<8x1xf32>
    %10 = vector.broadcast %9 : vector<8x1xf32> to vector<8x72xf32>
    %11 = arith.divf %3, %10 : vector<8x72xf32>
    %c0_6 = arith.constant 0 : index
    %c0_7 = arith.constant 0 : index
    %12 = vector.load %arg3[%c0_6, %c0_7] : memref<8x72xf32, #tpu.memory_space<vmem>>, vector<8x72xf32>
    %c0_8 = arith.constant 0 : index
    %c0_9 = arith.constant 0 : index
    %13 = vector.load %arg4[%c0_8, %c0_9] : memref<1x1xf32, #tpu.memory_space<vmem>>, vector<1x1xf32>
    %14 = vector.broadcast %13 : vector<1x1xf32> to vector<8x72xf32>
    %15 = arith.mulf %11, %14 : vector<8x72xf32>
    %16 = arith.addf %12, %15 : vector<8x72xf32>
    %c0_10 = arith.constant 0 : index
    %c0_11 = arith.constant 0 : index
    %c0_12 = arith.constant 0 : index
    %17 = vector.load %arg5[%c0_10, %c0_11, %c0_12] : memref<1x8x72xf32, #tpu.memory_space<vmem>>, vector<1x8x72xf32>
    %18 = vector.shape_cast %17 : vector<1x8x72xf32> to vector<8x72xf32>
    %19 = vector.shape_cast %16 : vector<8x72xf32> to vector<1x8x72xf32>
    tpu.vector_store %arg5[%c0_10, %c0_11, %c0_12], %19 {strides = array<i32>} : memref<1x8x72xf32, #tpu.memory_space<vmem>>, vector<1x8x72xf32>,
    return
  }
  func.func @transform_0(%arg0: i32) -> (i32, i32) {
    %c0_i32 = arith.constant 0 : i32
    %c0_i32_0 = arith.constant 0 : i32
    %c0_i32_1 = arith.constant 0 : i32
    return %c0_i32, %c0_i32_0 : i32, i32
  }
  func.func @transform_1(%arg0: i32) -> (i32, i32, i32) {
    %c0_i32 = arith.constant 0 : i32
    %c0_i32_0 = arith.constant 0 : i32
    %c0_i32_1 = arith.constant 0 : i32
    return %arg0, %c0_i32, %c0_i32_0 : i32, i32, i32
  }
  func.func @transform_2(%arg0: i32) -> (i32, i32) {
    %c0_i32 = arith.constant 0 : i32
    %c0_i32_0 = arith.constant 0 : i32
    %c0_i32_1 = arith.constant 0 : i32
    return %c0_i32, %c0_i32_0 : i32, i32
  }
  func.func @transform_3(%arg0: i32) -> (i32, i32) {
    %c0_i32 = arith.constant 0 : i32
    %c0_i32_0 = arith.constant 0 : i32
    %c0_i32_1 = arith.constant 0 : i32
    return %c0_i32, %c0_i32_0 : i32, i32
  }
  func.func @transform_4(%arg0: i32) -> (i32, i32, i32) {
    %c0_i32 = arith.constant 0 : i32
    %c0_i32_0 = arith.constant 0 : i32
    %c0_i32_1 = arith.constant 0 : i32
    return %arg0, %c0_i32, %c0_i32_0 : i32, i32, i32
  }
}

module attributes {stable_mosaic.version = 11 : i64} {
  func.func @_sw_conv_kernel(%arg0: i32, %arg1: memref<1x8x72xbf16, #tpu.memory_space<vmem>>, %arg2: memref<1x72x144xbf16, #tpu.memory_space<vmem>>, %arg3: memref<1x8x144xf32, #tpu.memory_space<vmem>>) attributes {dimension_semantics = [#tpu.dimension_semantics<parallel>], iteration_bounds = array<i64: 2>, scalar_prefetch = 0 : i64, scratch_operands = 0 : i64, tpu.core_type = #tpu.core_type<tc>, window_params = [{transform_indices = @transform_0, window_bounds = array<i64: 1, 8, 72>}, {transform_indices = @transform_1, window_bounds = array<i64: 1, 72, 144>}, {transform_indices = @transform_2, window_bounds = array<i64: 1, 8, 144>}]} {
    %c0 = arith.constant 0 : index
    %c0_0 = arith.constant 0 : index
    %c0_1 = arith.constant 0 : index
    %0 = vector.load %arg1[%c0, %c0_0, %c0_1] : memref<1x8x72xbf16, #tpu.memory_space<vmem>>, vector<1x8x72xbf16>
    %1 = vector.shape_cast %0 : vector<1x8x72xbf16> to vector<8x72xbf16>
    %c0_2 = arith.constant 0 : index
    %c0_3 = arith.constant 0 : index
    %c0_4 = arith.constant 0 : index
    %2 = vector.load %arg2[%c0_2, %c0_3, %c0_4] : memref<1x72x144xbf16, #tpu.memory_space<vmem>>, vector<1x72x144xbf16>
    %3 = vector.shape_cast %2 : vector<1x72x144xbf16> to vector<72x144xbf16>
    %cst = arith.constant dense<0.000000e+00> : vector<8x144xf32>
    %4 = tpu.matmul %1, %3, %cst {dimension_numbers = #tpu.dot_dimension_numbers<[1], [0], [0], [1], [0, 0, 1, 1], [], []>} : vector<8x72xbf16>, vector<72x144xbf16>, vector<8x144xf32> -> vector<8x144xf32>
    %cst_5 = arith.constant 0.000000e+00 : f32
    %5 = vector.broadcast %cst_5 : f32 to vector<8x144xf32>
    %6 = arith.maximumf %4, %5 : vector<8x144xf32>
    %c0_6 = arith.constant 0 : index
    %c0_7 = arith.constant 0 : index
    %c0_8 = arith.constant 0 : index
    %7 = vector.load %arg3[%c0_6, %c0_7, %c0_8] : memref<1x8x144xf32, #tpu.memory_space<vmem>>, vector<1x8x144xf32>
    %8 = vector.shape_cast %7 : vector<1x8x144xf32> to vector<8x144xf32>
    %9 = vector.shape_cast %6 : vector<8x144xf32> to vector<1x8x144xf32>
    tpu.vector_store %arg3[%c0_6, %c0_7, %c0_8], %9 {strides = array<i32>} : memref<1x8x144xf32, #tpu.memory_space<vmem>>, vector<1x8x144xf32>,
    return
  }
  func.func @transform_0(%arg0: i32) -> (i32, i32, i32) {
    %c0_i32 = arith.constant 0 : i32
    %c0_i32_0 = arith.constant 0 : i32
    %c0_i32_1 = arith.constant 0 : i32
    return %arg0, %c0_i32, %c0_i32_0 : i32, i32, i32
  }
  func.func @transform_1(%arg0: i32) -> (i32, i32, i32) {
    %c0_i32 = arith.constant 0 : i32
    %c0_i32_0 = arith.constant 0 : i32
    %c0_i32_1 = arith.constant 0 : i32
    return %arg0, %c0_i32, %c0_i32_0 : i32, i32, i32
  }
  func.func @transform_2(%arg0: i32) -> (i32, i32, i32) {
    %c0_i32 = arith.constant 0 : i32
    %c0_i32_0 = arith.constant 0 : i32
    %c0_i32_1 = arith.constant 0 : i32
    return %arg0, %c0_i32, %c0_i32_0 : i32, i32, i32
  }
}

module attributes {stable_mosaic.version = 11 : i64} {
  func.func @_conv_mm_res_kernel(%arg0: i32, %arg1: memref<8x72xbf16, #tpu.memory_space<vmem>>, %arg2: memref<72x128xbf16, #tpu.memory_space<vmem>>, %arg3: memref<8x1xf32, #tpu.memory_space<vmem>>, %arg4: memref<8x128xf32, #tpu.memory_space<vmem>>, %arg5: memref<8x128xf32, #tpu.memory_space<vmem>>) attributes {dimension_semantics = [#tpu.dimension_semantics<parallel>], iteration_bounds = array<i64: 3>, scalar_prefetch = 0 : i64, scratch_operands = 0 : i64, tpu.core_type = #tpu.core_type<tc>, window_params = [{pipeline_mode = #tpu.pipeline_mode<synchronous>, transform_indices = @transform_0, window_bounds = array<i64: 8, 72>}, {transform_indices = @transform_1, window_bounds = array<i64: 72, 128>}, {pipeline_mode = #tpu.pipeline_mode<synchronous>, transform_indices = @transform_2, window_bounds = array<i64: 8, 1>}, {transform_indices = @transform_3, window_bounds = array<i64: 8, 128>}, {transform_indices = @transform_4, window_bounds = array<i64: 8, 128>}]} {
    %c0 = arith.constant 0 : index
    %c0_0 = arith.constant 0 : index
    %0 = vector.load %arg1[%c0, %c0_0] : memref<8x72xbf16, #tpu.memory_space<vmem>>, vector<8x72xbf16>
    %c0_1 = arith.constant 0 : index
    %c0_2 = arith.constant 0 : index
    %1 = vector.load %arg2[%c0_1, %c0_2] : memref<72x128xbf16, #tpu.memory_space<vmem>>, vector<72x128xbf16>
    %cst = arith.constant dense<0.000000e+00> : vector<8x128xf32>
    %2 = tpu.matmul %0, %1, %cst {dimension_numbers = #tpu.dot_dimension_numbers<[1], [0], [0], [1], [0, 0, 1, 1], [], []>} : vector<8x72xbf16>, vector<72x128xbf16>, vector<8x128xf32> -> vector<8x128xf32>
    %c0_3 = arith.constant 0 : index
    %c0_4 = arith.constant 0 : index
    %3 = vector.load %arg3[%c0_3, %c0_4] : memref<8x1xf32, #tpu.memory_space<vmem>>, vector<8x1xf32>
    %4 = vector.broadcast %3 : vector<8x1xf32> to vector<8x128xf32>
    %5 = arith.addf %2, %4 : vector<8x128xf32>
    %cst_5 = arith.constant 1.000000e+00 : f32
    %6 = vector.broadcast %cst_5 : f32 to vector<8x128xf32>
    %7 = arith.mulf %5, %6 : vector<8x128xf32>
    %c0_6 = arith.constant 0 : index
    %c0_7 = arith.constant 0 : index
    %8 = vector.load %arg4[%c0_6, %c0_7] : memref<8x128xf32, #tpu.memory_space<vmem>>, vector<8x128xf32>
    %9 = arith.addf %7, %8 : vector<8x128xf32>
    %c0_8 = arith.constant 0 : index
    %c0_9 = arith.constant 0 : index
    %10 = vector.load %arg5[%c0_8, %c0_9] : memref<8x128xf32, #tpu.memory_space<vmem>>, vector<8x128xf32>
    tpu.vector_store %arg5[%c0_8, %c0_9], %9 {strides = array<i32>} : memref<8x128xf32, #tpu.memory_space<vmem>>, vector<8x128xf32>,
    return
  }
  func.func @transform_0(%arg0: i32) -> (i32, i32) {
    %c0_i32 = arith.constant 0 : i32
    %c0_i32_0 = arith.constant 0 : i32
    %c0_i32_1 = arith.constant 0 : i32
    return %c0_i32, %c0_i32_0 : i32, i32
  }
  func.func @transform_1(%arg0: i32) -> (i32, i32) {
    %c0_i32 = arith.constant 0 : i32
    %c0_i32_0 = arith.constant 0 : i32
    return %c0_i32, %arg0 : i32, i32
  }
  func.func @transform_2(%arg0: i32) -> (i32, i32) {
    %c0_i32 = arith.constant 0 : i32
    %c0_i32_0 = arith.constant 0 : i32
    %c0_i32_1 = arith.constant 0 : i32
    return %c0_i32, %c0_i32_0 : i32, i32
  }
  func.func @transform_3(%arg0: i32) -> (i32, i32) {
    %c0_i32 = arith.constant 0 : i32
    %c0_i32_0 = arith.constant 0 : i32
    return %c0_i32, %arg0 : i32, i32
  }
  func.func @transform_4(%arg0: i32) -> (i32, i32) {
    %c0_i32 = arith.constant 0 : i32
    %c0_i32_0 = arith.constant 0 : i32
    return %c0_i32, %arg0 : i32, i32
  }
}

module attributes {stable_mosaic.version = 11 : i64} {
  func.func @_conv_mm_kernel(%arg0: i32, %arg1: memref<32x72xbf16, #tpu.memory_space<vmem>>, %arg2: memref<72x128xbf16, #tpu.memory_space<vmem>>, %arg3: memref<32x1xf32, #tpu.memory_space<vmem>>, %arg4: memref<32x128xf32, #tpu.memory_space<vmem>>) attributes {dimension_semantics = [#tpu.dimension_semantics<parallel>], iteration_bounds = array<i64: 3>, scalar_prefetch = 0 : i64, scratch_operands = 0 : i64, tpu.core_type = #tpu.core_type<tc>, window_params = [{pipeline_mode = #tpu.pipeline_mode<synchronous>, transform_indices = @transform_0, window_bounds = array<i64: 32, 72>}, {transform_indices = @transform_1, window_bounds = array<i64: 72, 128>}, {pipeline_mode = #tpu.pipeline_mode<synchronous>, transform_indices = @transform_2, window_bounds = array<i64: 32, 1>}, {transform_indices = @transform_3, window_bounds = array<i64: 32, 128>}]} {
    %c0 = arith.constant 0 : index
    %c0_0 = arith.constant 0 : index
    %0 = vector.load %arg1[%c0, %c0_0] : memref<32x72xbf16, #tpu.memory_space<vmem>>, vector<32x72xbf16>
    %c0_1 = arith.constant 0 : index
    %c0_2 = arith.constant 0 : index
    %1 = vector.load %arg2[%c0_1, %c0_2] : memref<72x128xbf16, #tpu.memory_space<vmem>>, vector<72x128xbf16>
    %cst = arith.constant dense<0.000000e+00> : vector<32x128xf32>
    %2 = tpu.matmul %0, %1, %cst {dimension_numbers = #tpu.dot_dimension_numbers<[1], [0], [0], [1], [0, 0, 1, 1], [], []>} : vector<32x72xbf16>, vector<72x128xbf16>, vector<32x128xf32> -> vector<32x128xf32>
    %c0_3 = arith.constant 0 : index
    %c0_4 = arith.constant 0 : index
    %3 = vector.load %arg3[%c0_3, %c0_4] : memref<32x1xf32, #tpu.memory_space<vmem>>, vector<32x1xf32>
    %4 = vector.broadcast %3 : vector<32x1xf32> to vector<32x128xf32>
    %5 = arith.addf %2, %4 : vector<32x128xf32>
    %c0_5 = arith.constant 0 : index
    %c0_6 = arith.constant 0 : index
    %6 = vector.load %arg4[%c0_5, %c0_6] : memref<32x128xf32, #tpu.memory_space<vmem>>, vector<32x128xf32>
    tpu.vector_store %arg4[%c0_5, %c0_6], %5 {strides = array<i32>} : memref<32x128xf32, #tpu.memory_space<vmem>>, vector<32x128xf32>,
    return
  }
  func.func @transform_0(%arg0: i32) -> (i32, i32) {
    %c0_i32 = arith.constant 0 : i32
    %c0_i32_0 = arith.constant 0 : i32
    %c0_i32_1 = arith.constant 0 : i32
    return %c0_i32, %c0_i32_0 : i32, i32
  }
  func.func @transform_1(%arg0: i32) -> (i32, i32) {
    %c0_i32 = arith.constant 0 : i32
    %c0_i32_0 = arith.constant 0 : i32
    return %c0_i32, %arg0 : i32, i32
  }
  func.func @transform_2(%arg0: i32) -> (i32, i32) {
    %c0_i32 = arith.constant 0 : i32
    %c0_i32_0 = arith.constant 0 : i32
    %c0_i32_1 = arith.constant 0 : i32
    return %c0_i32, %c0_i32_0 : i32, i32
  }
  func.func @transform_3(%arg0: i32) -> (i32, i32) {
    %c0_i32 = arith.constant 0 : i32
    %c0_i32_0 = arith.constant 0 : i32
    return %c0_i32, %arg0 : i32, i32
  }
}

module attributes {stable_mosaic.version = 11 : i64} {
  func.func @_conv_mm_kernel(%arg0: i32, %arg1: memref<3x72xbf16, #tpu.memory_space<vmem>>, %arg2: memref<72x128xbf16, #tpu.memory_space<vmem>>, %arg3: memref<3x1xf32, #tpu.memory_space<vmem>>, %arg4: memref<3x128xf32, #tpu.memory_space<vmem>>) attributes {dimension_semantics = [#tpu.dimension_semantics<parallel>], iteration_bounds = array<i64: 9>, scalar_prefetch = 0 : i64, scratch_operands = 0 : i64, tpu.core_type = #tpu.core_type<tc>, window_params = [{pipeline_mode = #tpu.pipeline_mode<synchronous>, transform_indices = @transform_0, window_bounds = array<i64: 3, 72>}, {transform_indices = @transform_1, window_bounds = array<i64: 72, 128>}, {pipeline_mode = #tpu.pipeline_mode<synchronous>, transform_indices = @transform_2, window_bounds = array<i64: 3, 1>}, {transform_indices = @transform_3, window_bounds = array<i64: 3, 128>}]} {
    %c0 = arith.constant 0 : index
    %c0_0 = arith.constant 0 : index
    %0 = vector.load %arg1[%c0, %c0_0] : memref<3x72xbf16, #tpu.memory_space<vmem>>, vector<3x72xbf16>
    %c0_1 = arith.constant 0 : index
    %c0_2 = arith.constant 0 : index
    %1 = vector.load %arg2[%c0_1, %c0_2] : memref<72x128xbf16, #tpu.memory_space<vmem>>, vector<72x128xbf16>
    %cst = arith.constant dense<0.000000e+00> : vector<3x128xf32>
    %2 = tpu.matmul %0, %1, %cst {dimension_numbers = #tpu.dot_dimension_numbers<[1], [0], [0], [1], [0, 0, 1, 1], [], []>} : vector<3x72xbf16>, vector<72x128xbf16>, vector<3x128xf32> -> vector<3x128xf32>
    %c0_3 = arith.constant 0 : index
    %c0_4 = arith.constant 0 : index
    %3 = vector.load %arg3[%c0_3, %c0_4] : memref<3x1xf32, #tpu.memory_space<vmem>>, vector<3x1xf32>
    %4 = vector.broadcast %3 : vector<3x1xf32> to vector<3x128xf32>
    %5 = arith.addf %2, %4 : vector<3x128xf32>
    %c0_5 = arith.constant 0 : index
    %c0_6 = arith.constant 0 : index
    %6 = vector.load %arg4[%c0_5, %c0_6] : memref<3x128xf32, #tpu.memory_space<vmem>>, vector<3x128xf32>
    tpu.vector_store %arg4[%c0_5, %c0_6], %5 {strides = array<i32>} : memref<3x128xf32, #tpu.memory_space<vmem>>, vector<3x128xf32>,
    return
  }
  func.func @transform_0(%arg0: i32) -> (i32, i32) {
    %c0_i32 = arith.constant 0 : i32
    %c0_i32_0 = arith.constant 0 : i32
    %c0_i32_1 = arith.constant 0 : i32
    return %c0_i32, %c0_i32_0 : i32, i32
  }
  func.func @transform_1(%arg0: i32) -> (i32, i32) {
    %c0_i32 = arith.constant 0 : i32
    %c0_i32_0 = arith.constant 0 : i32
    return %c0_i32, %arg0 : i32, i32
  }
  func.func @transform_2(%arg0: i32) -> (i32, i32) {
    %c0_i32 = arith.constant 0 : i32
    %c0_i32_0 = arith.constant 0 : i32
    %c0_i32_1 = arith.constant 0 : i32
    return %c0_i32, %c0_i32_0 : i32, i32
  }
  func.func @transform_3(%arg0: i32) -> (i32, i32) {
    %c0_i32 = arith.constant 0 : i32
    %c0_i32_0 = arith.constant 0 : i32
    return %c0_i32, %arg0 : i32, i32
  }
}

</mosaic_0001>

<llo_original>
// kernel: _lambda_.9
$region0: #{_lambda_.9}
  #allocation0 [shape = 'u32[]', space=smem, size = 0x4, offset = 0x4, fixed_abs, tag = 'smem constant byte address 0x4 - core index']
  #allocation1 [shape = 'u32[144,128]{1,0:T(1,128)}', space=vmem, size = 0x12000, scoped, tag = 'internal scratch']
  %s0 = inlined_call_operand.vmem [shape: bf16[8,27], index: 0, kind: input, shape index: {}]
  %s1 = inlined_call_operand.vmem [shape: bf16[27,384], index: 1, kind: input, shape index: {}]
  %s2 = inlined_call_operand.vmem [shape: f32[8,1], index: 2, kind: input, shape index: {}]
  %s3 = inlined_call_operand.vmem [shape: f32[8,384], index: 3, kind: output, shape index: {}]
  %s4 = sld [smem:[#allocation0]]
  $region86: #{_lambda_.9} parent=0
    _
  %s6 = ssub.s32 1, %s4
  %s7 = scalar_select 0, %s6, %s4
  $region1: #{_lambda_.9} parent=0
    #allocation2 [shape = 'u8[16384]{0}', space=vmem, size = 0x4000, scoped, tag = 'input window, operand 1']
    loop: start=0, step=1, limit=5
    $region2: #{_lambda_.9} parent=1 // loop_pre_header
      _
    $region3: #{_lambda_.9} parent=1 // loop_header
      %s9 = sphi 0, %s13
      %p10 = scmp.ge.s32.totalorder %s9, 5
      %s17 = sphi 0, %s17
      %s19 = sphi 0, %s17
      %s20 = sphi 0, %s19
      %s34 = sphi 0, %s20
      %s40 = sphi 0, %s42
      %s43 = sphi 0, %s40
      %s44 = sphi 0, %s43
      %s60 = sphi 0, %s44
      %s64 = sphi 0, %s64
      %s66 = sphi 0, %s64
      %s67 = sphi 0, %s66
      %s81 = sphi 0, %s67
      %s87 = sphi 0, %s89
      %s90 = sphi 0, %s87
      %s91 = sphi 0, %s90
      %s107 = sphi 0, %s91
    $region4: #{_lambda_.9} parent=1 // loop_header_branch
      %12 = sbr.rel (%p10) target = $region8
    $region5: #{_lambda_.9} parent=1 // loop_body
      %s14 = ssub.s32 %s9, 1
      %s15 = ssub.s32 %s9, 2
      %s16 = sadd.s32 %s9, 1
      %s18 = sadd.s32 %s17, 1
      %p21 = scmp.eq.s32.totalorder %s9, 2
      %p22 = scmp.ne.s32.totalorder %s17, %s19
      %p23 = scmp.eq.s32.totalorder %s9, 0
      %p24 = por %p22, %p23
      %p25 = scmp.ne.s32.totalorder %s17, %s19
      %p26 = scmp.eq.s32.totalorder %s14, 2
      %p27 = por %p25, %p26
      %p28 = scmp.ne.s32.totalorder %s19, %s20
      %p29 = scmp.eq.s32.totalorder %s14, 0
      %p30 = por %p28, %p29
      %p31 = scmp.ne.s32.totalorder %s19, %s20
      %p32 = scmp.eq.s32.totalorder %s15, 2
      %p33 = por %p31, %p32
      %p35 = scmp.ne.s32.totalorder %s20, %s34
      %p36 = scmp.eq.s32.totalorder %s15, 0
      %p37 = por %p35, %p36
      %s38 = ssub.s32 %s9, %s16
      %p39 = scmp.eq.s32.totalorder %s38, 0
      %s41 = sadd.s32 %s40, 1
      %s42 = scalar_select %p39, %s40, %s41
      %p45 = pneg %p39
      %p46 = scmp.eq.s32.totalorder %s9, 2
      %p47 = por %p45, %p46
      %p48 = scmp.ne.s32.totalorder %s40, %s43
      %p49 = scmp.eq.s32.totalorder %s9, 0
      %p50 = por %p48, %p49
      %p51 = scmp.ne.s32.totalorder %s40, %s43
      %p52 = scmp.eq.s32.totalorder %s14, 2
      %p53 = por %p51, %p52
      %p54 = scmp.ne.s32.totalorder %s43, %s44
      %p55 = scmp.eq.s32.totalorder %s14, 0
      %p56 = por %p54, %p55
      %p57 = scmp.ne.s32.totalorder %s43, %s44
      %p58 = scmp.eq.s32.totalorder %s15, 2
      %p59 = por %p57, %p58
      %p61 = scmp.ne.s32.totalorder %s44, %s60
      %p62 = scmp.eq.s32.totalorder %s15, 0
      %p63 = por %p61, %p62
      %s65 = sadd.s32 %s64, 1
      %p68 = scmp.eq.s32.totalorder %s9, 2
      %p69 = scmp.ne.s32.totalorder %s64, %s66
      %p70 = scmp.eq.s32.totalorder %s9, 0
      %p71 = por %p69, %p70
      %p72 = scmp.ne.s32.totalorder %s64, %s66
      %p73 = scmp.eq.s32.totalorder %s14, 2
      %p74 = por %p72, %p73
      %p75 = scmp.ne.s32.totalorder %s66, %s67
      %p76 = scmp.eq.s32.totalorder %s14, 0
      %p77 = por %p75, %p76
      %p78 = scmp.ne.s32.totalorder %s66, %s67
      %p79 = scmp.eq.s32.totalorder %s15, 2
      %p80 = por %p78, %p79
      %p82 = scmp.ne.s32.totalorder %s67, %s81
      %p83 = scmp.eq.s32.totalorder %s15, 0
      %p84 = por %p82, %p83
      %s85 = ssub.s32 %s9, %s16
      %p86 = scmp.eq.s32.totalorder %s85, 0
      %s88 = sadd.s32 %s87, 1
      %s89 = scalar_select %p86, %s87, %s88
      %p92 = pneg %p86
      %p93 = scmp.eq.s32.totalorder %s9, 2
      %p94 = por %p92, %p93
      %p95 = scmp.ne.s32.totalorder %s87, %s90
      %p96 = scmp.eq.s32.totalorder %s9, 0
      %p97 = por %p95, %p96
      %p98 = scmp.ne.s32.totalorder %s87, %s90
      %p99 = scmp.eq.s32.totalorder %s14, 2
      %p100 = por %p98, %p99
      %p101 = scmp.ne.s32.totalorder %s90, %s91
      %p102 = scmp.eq.s32.totalorder %s14, 0
      %p103 = por %p101, %p102
      %p104 = scmp.ne.s32.totalorder %s90, %s91
      %p105 = scmp.eq.s32.totalorder %s15, 2
      %p106 = por %p104, %p105
      %p108 = scmp.ne.s32.totalorder %s91, %s107
      %p109 = scmp.eq.s32.totalorder %s15, 0
      %p110 = por %p108, %p109
      %p111 = scmp.le.s32.totalorder 1, %s9
      %p112 = scmp.lt.s32.totalorder %s9, 4
      %p113 = pnand %p111, %p112
      %p114 = pneg %p113
      // Predicated region
      $region9: #{_lambda_.9} parent=5 // pred_check
        _
      $region10: #{_lambda_.9} parent=5 // pred_check_branch
        %116 = sbr.rel (%p113) target = $region12
      $region11: #{_lambda_.9} parent=5 // pred_region
        %s117 = ssub.s32 %s9, 1
        // Predicated region
        $region13: #{_lambda_.9} parent=11 // pred_check
          %p118 = pneg %p30
        $region14: #{_lambda_.9} parent=11 // pred_check_branch
          %120 = sbr.rel (%p118) target = $region16
        $region15: #{_lambda_.9} parent=11 // pred_region
          _
        $region16: #{_lambda_.9} parent=11 // pred_fallthru
          _
        // Predicated region
        $region17: #{_lambda_.9} parent=11 // pred_check
          %p121 = pneg %p77
        $region18: #{_lambda_.9} parent=11 // pred_check_branch
          %123 = sbr.rel (%p121) target = $region20
        $region19: #{_lambda_.9} parent=11 // pred_region
          _
        $region20: #{_lambda_.9} parent=11 // pred_fallthru
          _
      $region12: #{_lambda_.9} parent=5 // pred_fallthru
        _
      %p124 = scmp.lt.s32.totalorder %s9, 3
      // Predicated region
      $region21: #{_lambda_.9} parent=5 // pred_check
        %p125 = pneg %p124
      $region22: #{_lambda_.9} parent=5 // pred_check_branch
        %127 = sbr.rel (%p125) target = $region24
      $region23: #{_lambda_.9} parent=5 // pred_region
        // Predicated region
        $region25: #{_lambda_.9} parent=23 // pred_check
          %p128 = pneg %p50
        $region26: #{_lambda_.9} parent=23 // pred_check_branch
          %130 = sbr.rel (%p128) target = $region28
        $region27: #{_lambda_.9} parent=23 // pred_region
          %s131 = sand.u32 %s40, 1
          %s132 = sand.u32 %s40, 1
          %s133 = smul.addr %s132, 16
          %s134 = scalar_lea.vmem [#allocation2], %s133
          %s135 = smul.addr %s9, 4
          %s136 = scalar_lea.vmem %s1, %s135
          // Predicated region
          $region29: #{_lambda_.9} parent=27 // pred_check
            _
          $region30: #{_lambda_.9} parent=27 // pred_check_branch
            %138 = sbr.rel (0) target = $region32
          $region31: #{_lambda_.9} parent=27 // pred_region
            // Predicated region
            $region33: #{_lambda_.9} parent=31 // pred_check
              _
            $region34: #{_lambda_.9} parent=31 // pred_check_branch
              %140 = sbr.rel target = $region36
            $region35: #{_lambda_.9} parent=31 // pred_region
              // Predicated region
              $region48: #{_lambda_.9} parent=35 // pred_check
                _
              $region49: #{_lambda_.9} parent=35 // pred_check_branch
                %162 = sbr.rel (0) target = $region51
              $region50: #{_lambda_.9} parent=35 // pred_region
                loop: start=0, step=1, limit=1
                $region52: #{_lambda_.9} parent=50 // loop_pre_header
                  _
                $region53: #{_lambda_.9} parent=50 // loop_header
                  %s164 = sphi 0, %s168
                  %p165 = scmp.ge.s32.totalorder %s164, 1
                  %s169 = sphi %s136, %s136
                  %s170 = sphi %s134, %s134
                $region54: #{_lambda_.9} parent=50 // loop_header_branch
                  %167 = sbr.rel (%p165) target = $region58
                $region55: #{_lambda_.9} parent=50 // loop_body
                  _
                $region56: #{_lambda_.9} parent=50 // loop_footer
                  %s168 = sadd.s32 1, %s164
                $region57: #{_lambda_.9} parent=50 // loop_footer_branch
                  %163 = sbr.rel target = $region53
                $region58: #{_lambda_.9} parent=50 // loop_exit
                  _
                %s172 = ssub.s32 16, 1
                loop: start=0, step=1, limit=1
                $region59: #{_lambda_.9} parent=50 // loop_pre_header
                  _
                $region60: #{_lambda_.9} parent=50 // loop_header
                  %s174 = sphi 0, %s178
                  %p175 = scmp.ge.s32.totalorder %s174, 1
                  %s179 = sphi %s136, %s136
                  %s180 = sphi %s134, %s134
                $region61: #{_lambda_.9} parent=50 // loop_header_branch
                  %177 = sbr.rel (%p175) target = $region65
                $region62: #{_lambda_.9} parent=50 // loop_body
                  %v181 = vld [vmem:[%s179] sm:%s172]
                  %182 = vst [vmem:[%s180] sm:%s172] %v181
                  %v183 = vld [vmem:[%s179 + $0xc] sm:%s172]
                  %184 = vst [vmem:[%s180 + $0x4] sm:%s172] %v183
                  %v185 = vld [vmem:[%s179 + $0x18] sm:%s172]
                  %186 = vst [vmem:[%s180 + $0x8] sm:%s172] %v185
                  %v187 = vld [vmem:[%s179 + $0x24] sm:%s172]
                  %188 = vst [vmem:[%s180 + $0xc] sm:%s172] %v187
                $region63: #{_lambda_.9} parent=50 // loop_footer
                  %s178 = sadd.s32 1, %s174
                $region64: #{_lambda_.9} parent=50 // loop_footer_branch
                  %173 = sbr.rel target = $region60
                $region65: #{_lambda_.9} parent=50 // loop_exit
                  _
              $region51: #{_lambda_.9} parent=35 // pred_fallthru
                _
            $region36: #{_lambda_.9} parent=31 // pred_fallthru
              _
            // Predicated region
            $region37: #{_lambda_.9} parent=31 // pred_check
              _
            $region38: #{_lambda_.9} parent=31 // pred_check_branch
              %142 = sbr.rel (0) target = $region40
            $region39: #{_lambda_.9} parent=31 // pred_region
              %s144 = ssub.s32 16, 1
              loop: start=0, step=1, limit=1
              $region41: #{_lambda_.9} parent=39 // loop_pre_header
                _
              $region42: #{_lambda_.9} parent=39 // loop_header
                %s146 = sphi 0, %s150
                %p147 = scmp.ge.s32.totalorder %s146, 1
                %s151 = sphi %s136, %s136
                %s152 = sphi %s134, %s134
              $region43: #{_lambda_.9} parent=39 // loop_header_branch
                %149 = sbr.rel (%p147) target = $region47
              $region44: #{_lambda_.9} parent=39 // loop_body
                %v153 = vld [vmem:[%s151] sm:%s144]
                %154 = vst [vmem:[%s152] sm:%s144] %v153
                %v155 = vld [vmem:[%s151 + $0xc] sm:%s144]
                %156 = vst [vmem:[%s152 + $0x4] sm:%s144] %v155
                %v157 = vld [vmem:[%s151 + $0x18] sm:%s144]
                %158 = vst [vmem:[%s152 + $0x8] sm:%s144] %v157
                %v159 = vld [vmem:[%s151 + $0x24] sm:%s144]
                %160 = vst [vmem:[%s152 + $0xc] sm:%s144] %v159
              $region45: #{_lambda_.9} parent=39 // loop_footer
                %s150 = sadd.s32 1, %s146
              $region46: #{_lambda_.9} parent=39 // loop_footer_branch
                %145 = sbr.rel target = $region42
              $region47: #{_lambda_.9} parent=39 // loop_exit
                _
            $region40: #{_lambda_.9} parent=31 // pred_fallthru
              _
          $region32: #{_lambda_.9} parent=27 // pred_fallthru
            _
          %189 = vnop
        $region28: #{_lambda_.9} parent=23 // pred_fallthru
          _
      $region24: #{_lambda_.9} parent=5 // pred_fallthru
        _
      %p190 = scmp.le.s32.totalorder 1, %s9
      %p191 = scmp.lt.s32.totalorder %s9, 4
      %p192 = pnand %p190, %p191
      %p193 = pneg %p192
      // Predicated region
      $region66: #{_lambda_.9} parent=5 // pred_check
        _
      $region67: #{_lambda_.9} parent=5 // pred_check_branch
        %195 = sbr.rel (%p192) target = $region69
      $region68: #{_lambda_.9} parent=5 // pred_region
        %s196 = ssub.s32 %s9, 1
        %s197 = sand.u32 %s43, 1
        %s198 = sand.u32 %s43, 1
        %s199 = smul.addr %s198, 16
        %s200 = scalar_lea.vmem [#allocation2], %s199
        // Predicated region
        $region70: #{_lambda_.9} parent=68 // pred_check
          %p201 = pneg %p56
        $region71: #{_lambda_.9} parent=68 // pred_check_branch
          %203 = sbr.rel (%p201) target = $region73
        $region72: #{_lambda_.9} parent=68 // pred_region
          _
        $region73: #{_lambda_.9} parent=68 // pred_fallthru
          _
        %p204 = pneg %p30
        %p205 = pneg %p27
        %s206 = sand.u32 %s43, 1
        %s207 = sand.u32 %s43, 1
        %s208 = smul.addr %s207, 16
        %s209 = scalar_lea.vmem [#allocation2], %s208
        %p210 = pneg %p56
        %p211 = pneg %p53
        %p212 = pneg %p77
        %p213 = pneg %p74
        %p214 = pneg %p103
        %p215 = pneg %p100
        %p216 = scmp.lt.s32.totalorder %s14, 2
        %s217 = scalar_select %p216, %s14, 2
        %s218 = smul.addr %s217, 8
        %s219 = scalar_lea.vmem %s3, %s218
        %p220 = scmp.lt.s32.totalorder %s14, 2
        %s221 = scalar_select %p220, %s14, 2
        %s222 = smul.addr %s221, 8
        %s223 = scalar_lea.vmem %s3, %s222
        %v225 = vld [vmem:[%s0] sm:$0xf]
        %v226 = vld [vmem:[%s200] sm:$0xf]
        %v227 = vld [vmem:[%s200 + $0x4] sm:$0xf]
        %v228 = vld [vmem:[%s200 + $0x8] sm:$0xf]
        %v229 = vld [vmem:[%s200 + $0xc] sm:$0x3]
        %v230 = vld [vmem:[%s2] sm:$0xff]
        %232 = vset.pattern.permute.xlu0 0
        %233 = vperm.xlu0 %232, %v230
        %v234 = vpop.permute.xlu0 %233
        %v240 = vunpack.c.l.b16 %v226
        %v241 = vunpack.c.l.b16 %v227
        %v242 = vunpack.c.l.b16 %v228
        %v243 = vunpack.c.l.b16 %v229
        %v244 = vpack.c.b16 %v241, %v240
        %v245 = vpack.c.b16 %v243, %v242
        %vm247 = vcmask 220160
        %v249 = vsel %vm247, %v225, 0
        %vm251 = vcmask 1044480
        %vm252 = vcmask 1045504
        %v253 = vsel %vm251, 4294967295, 65535
        %v254 = vsel %vm252, %v253, 0
        %v256 = vand.u32 %v245, %v254
        %258 = vmatprep.subr.bf16.mxu0 0
        %259 = vmatpush1.bf16.msra.mxu0 0
        %260 = vmatprep.subr.bf16.mxu0 0
        %261 = vmatpush1.bf16.msra.mxu0 0
        %262 = vmatprep.subr.bf16.mxu0 0
        %263 = vmatpush1.bf16.msra.mxu0 0
        %264 = vmatprep.subr.bf16.mxu0 0
        %265 = vmatpush1.bf16.msra.mxu0 0
        %266 = vmatprep.subr.bf16.mxu0 0
        %267 = vmatpush1.bf16.msra.mxu0 0
        %268 = vmatprep.subr.bf16.mxu0 0
        %269 = vmatpush1.bf16.msra.mxu0 0
        %270 = vmatprep.subr.bf16.mxu0 0
        %271 = vmatpush1.bf16.msra.mxu0 %v256
        %272 = vmatprep.subr.bf16.mxu0 0
        %273 = vmatpush1.bf16.msra.mxu0 %v244
        %274 = vmatprep.subr.bf16.mxu0 0
        %275 = vmatpush2.bf16.msra.mxu0 0
        %276 = vmatprep.subr.bf16.mxu0 0
        %277 = vmatpush2.bf16.msra.mxu0 0
        %278 = vmatprep.subr.bf16.mxu0 0
        %279 = vmatpush2.bf16.msra.mxu0 0
        %280 = vmatprep.subr.bf16.mxu0 0
        %281 = vmatpush2.bf16.msra.mxu0 0
        %282 = vmatprep.subr.bf16.mxu0 0
        %283 = vmatpush2.bf16.msra.mxu0 0
        %284 = vmatprep.subr.bf16.mxu0 0
        %285 = vmatpush2.bf16.msra.mxu0 0
        %286 = vmatprep.subr.bf16.mxu0 0
        %287 = vmatpush2.bf16.msra.mxu0 0
        %288 = vmatprep.subr.bf16.mxu0 0
        %289 = vmatpush2.bf16.msra.mxu0 0
        %290 = vmatprep.mubr.bf16.mxu0 0
        %291 = vmatmul.mubr.bf16.gmra.mxu0 %v249
        %v292 = vpop.f32.mrf.mxu0
        %v293 = vadd.f32 %v234, %v292
        %v294 = vpop.f32.mrf.mxu0
        %v295 = vpop.f32.mrf.mxu0
        %v296 = vpop.f32.mrf.mxu0
        %297 = vdwg.mxu0
        %298 = vst [vmem:[%s223] sm:$0xff] %v293
        %p299 = scmp.lt.s32.totalorder %s14, 2
        %s300 = scalar_select %p299, %s14, 2
        %s301 = smul.addr %s300, 8
        %s302 = scalar_lea.vmem %s3, %s301
        // Predicated region
        $region74: #{_lambda_.9} parent=68 // pred_check
          %p303 = pneg %p100
        $region75: #{_lambda_.9} parent=68 // pred_check_branch
          %305 = sbr.rel (%p303) target = $region77
        $region76: #{_lambda_.9} parent=68 // pred_region
          _
        $region77: #{_lambda_.9} parent=68 // pred_fallthru
          _
      $region69: #{_lambda_.9} parent=5 // pred_fallthru
        _
      %p306 = scmp.le.s32.totalorder 2, %s9
      // Predicated region
      $region78: #{_lambda_.9} parent=5 // pred_check
        %p307 = pneg %p306
      $region79: #{_lambda_.9} parent=5 // pred_check_branch
        %309 = sbr.rel (%p307) target = $region81
      $region80: #{_lambda_.9} parent=5 // pred_region
        %s310 = ssub.s32 %s9, 2
        // Predicated region
        $region82: #{_lambda_.9} parent=80 // pred_check
          %p311 = pneg %p106
        $region83: #{_lambda_.9} parent=80 // pred_check_branch
          %313 = sbr.rel (%p311) target = $region85
        $region84: #{_lambda_.9} parent=80 // pred_region
          %p314 = scmp.lt.s32.totalorder %s15, 2
          %s315 = scalar_select %p314, %s15, 2
          %s316 = smul.addr %s315, 8
          %s317 = scalar_lea.vmem %s3, %s316
        $region85: #{_lambda_.9} parent=80 // pred_fallthru
          _
      $region81: #{_lambda_.9} parent=5 // pred_fallthru
        _
    $region6: #{_lambda_.9} parent=1 // loop_footer
      %s13 = sadd.s32 1, %s9
    $region7: #{_lambda_.9} parent=1 // loop_footer_branch
      %8 = sbr.rel target = $region3
    $region8: #{_lambda_.9} parent=1 // loop_exit
      _

// kernel: _lambda_.10
$region0: #{_lambda_.10}
  #allocation0 [shape = 'u32[]', space=smem, size = 0x4, offset = 0x4, fixed_abs, tag = 'smem constant byte address 0x4 - core index']
  #allocation1 [shape = 'u32[144,128]{1,0:T(1,128)}', space=vmem, size = 0x12000, scoped, tag = 'internal scratch']
  %s0 = inlined_call_operand.vmem [shape: bf16[16,72], index: 0, kind: input, shape index: {}]
  %s1 = inlined_call_operand.vmem [shape: bf16[2,72,16], index: 1, kind: input, shape index: {}]
  %s2 = inlined_call_operand.vmem [shape: f32[2,16,16], index: 2, kind: output, shape index: {}]
  %s3 = sld [smem:[#allocation0]]
  $region41: #{_lambda_.10} parent=0
    _
  %s5 = ssub.s32 1, %s3
  %s6 = scalar_select 0, %s5, %s3
  loop: start=0, step=1, limit=4
  $region2: #{_lambda_.10} parent=0 // loop_pre_header
    _
  $region3: #{_lambda_.10} parent=0 // loop_header
    %s8 = sphi 0, %s12
    %p9 = scmp.ge.s32.totalorder %s8, 4
    %s16 = sphi 0, %s16
    %s18 = sphi 0, %s16
    %s19 = sphi 0, %s18
    %s33 = sphi 0, %s19
    %s39 = sphi 0, %s41
    %s42 = sphi 0, %s39
    %s43 = sphi 0, %s42
    %s59 = sphi 0, %s43
    %s65 = sphi 0, %s67
    %s68 = sphi 0, %s65
    %s69 = sphi 0, %s68
    %s85 = sphi 0, %s69
  $region4: #{_lambda_.10} parent=0 // loop_header_branch
    %11 = sbr.rel (%p9) target = $region8
  $region5: #{_lambda_.10} parent=0 // loop_body
    %s13 = ssub.s32 %s8, 1
    %s14 = ssub.s32 %s8, 2
    %s15 = sadd.s32 %s8, 1
    %s17 = sadd.s32 %s16, 1
    %p20 = scmp.eq.s32.totalorder %s8, 1
    %p21 = scmp.ne.s32.totalorder %s16, %s18
    %p22 = scmp.eq.s32.totalorder %s8, 0
    %p23 = por %p21, %p22
    %p24 = scmp.ne.s32.totalorder %s16, %s18
    %p25 = scmp.eq.s32.totalorder %s13, 1
    %p26 = por %p24, %p25
    %p27 = scmp.ne.s32.totalorder %s18, %s19
    %p28 = scmp.eq.s32.totalorder %s13, 0
    %p29 = por %p27, %p28
    %p30 = scmp.ne.s32.totalorder %s18, %s19
    %p31 = scmp.eq.s32.totalorder %s14, 1
    %p32 = por %p30, %p31
    %p34 = scmp.ne.s32.totalorder %s19, %s33
    %p35 = scmp.eq.s32.totalorder %s14, 0
    %p36 = por %p34, %p35
    %s37 = ssub.s32 %s8, %s15
    %p38 = scmp.eq.s32.totalorder %s37, 0
    %s40 = sadd.s32 %s39, 1
    %s41 = scalar_select %p38, %s39, %s40
    %p44 = pneg %p38
    %p45 = scmp.eq.s32.totalorder %s8, 1
    %p46 = por %p44, %p45
    %p47 = scmp.ne.s32.totalorder %s39, %s42
    %p48 = scmp.eq.s32.totalorder %s8, 0
    %p49 = por %p47, %p48
    %p50 = scmp.ne.s32.totalorder %s39, %s42
    %p51 = scmp.eq.s32.totalorder %s13, 1
    %p52 = por %p50, %p51
    %p53 = scmp.ne.s32.totalorder %s42, %s43
    %p54 = scmp.eq.s32.totalorder %s13, 0
    %p55 = por %p53, %p54
    %p56 = scmp.ne.s32.totalorder %s42, %s43
    %p57 = scmp.eq.s32.totalorder %s14, 1
    %p58 = por %p56, %p57
    %p60 = scmp.ne.s32.totalorder %s43, %s59
    %p61 = scmp.eq.s32.totalorder %s14, 0
    %p62 = por %p60, %p61
    %s63 = ssub.s32 %s8, %s15
    %p64 = scmp.eq.s32.totalorder %s63, 0
    %s66 = sadd.s32 %s65, 1
    %s67 = scalar_select %p64, %s65, %s66
    %p70 = pneg %p64
    %p71 = scmp.eq.s32.totalorder %s8, 1
    %p72 = por %p70, %p71
    %p73 = scmp.ne.s32.totalorder %s65, %s68
    %p74 = scmp.eq.s32.totalorder %s8, 0
    %p75 = por %p73, %p74
    %p76 = scmp.ne.s32.totalorder %s65, %s68
    %p77 = scmp.eq.s32.totalorder %s13, 1
    %p78 = por %p76, %p77
    %p79 = scmp.ne.s32.totalorder %s68, %s69
    %p80 = scmp.eq.s32.totalorder %s13, 0
    %p81 = por %p79, %p80
    %p82 = scmp.ne.s32.totalorder %s68, %s69
    %p83 = scmp.eq.s32.totalorder %s14, 1
    %p84 = por %p82, %p83
    %p86 = scmp.ne.s32.totalorder %s69, %s85
    %p87 = scmp.eq.s32.totalorder %s14, 0
    %p88 = por %p86, %p87
    %p89 = scmp.le.s32.totalorder 1, %s8
    %p90 = scmp.lt.s32.totalorder %s8, 3
    %p91 = pnand %p89, %p90
    %p92 = pneg %p91
    // Predicated region
    $region9: #{_lambda_.10} parent=5 // pred_check
      _
    $region10: #{_lambda_.10} parent=5 // pred_check_branch
      %94 = sbr.rel (%p91) target = $region12
    $region11: #{_lambda_.10} parent=5 // pred_region
      %s95 = ssub.s32 %s8, 1
      // Predicated region
      $region13: #{_lambda_.10} parent=11 // pred_check
        %p96 = pneg %p29
      $region14: #{_lambda_.10} parent=11 // pred_check_branch
        %98 = sbr.rel (%p96) target = $region16
      $region15: #{_lambda_.10} parent=11 // pred_region
        _
      $region16: #{_lambda_.10} parent=11 // pred_fallthru
        _
    $region12: #{_lambda_.10} parent=5 // pred_fallthru
      _
    %p99 = scmp.lt.s32.totalorder %s8, 2
    // Predicated region
    $region17: #{_lambda_.10} parent=5 // pred_check
      %p100 = pneg %p99
    $region18: #{_lambda_.10} parent=5 // pred_check_branch
      %102 = sbr.rel (%p100) target = $region20
    $region19: #{_lambda_.10} parent=5 // pred_region
      // Predicated region
      $region21: #{_lambda_.10} parent=19 // pred_check
        %p103 = pneg %p49
      $region22: #{_lambda_.10} parent=19 // pred_check_branch
        %105 = sbr.rel (%p103) target = $region24
      $region23: #{_lambda_.10} parent=19 // pred_region
        %p106 = scmp.lt.s32.totalorder %s8, 1
        %s107 = scalar_select %p106, %s8, 1
        %s108 = smul.addr %s107, 9
        %s109 = smul.addr %s108, 4
        %s110 = scalar_lea.vmem %s1, %s109
      $region24: #{_lambda_.10} parent=19 // pred_fallthru
        _
    $region20: #{_lambda_.10} parent=5 // pred_fallthru
      _
    %p111 = scmp.le.s32.totalorder 1, %s8
    %p112 = scmp.lt.s32.totalorder %s8, 3
    %p113 = pnand %p111, %p112
    %p114 = pneg %p113
    // Predicated region
    $region25: #{_lambda_.10} parent=5 // pred_check
      _
    $region26: #{_lambda_.10} parent=5 // pred_check_branch
      %116 = sbr.rel (%p113) target = $region28
    $region27: #{_lambda_.10} parent=5 // pred_region
      %s117 = ssub.s32 %s8, 1
      %p118 = pneg %p29
      %p119 = pneg %p26
      %p120 = scmp.lt.s32.totalorder %s13, 1
      %s121 = scalar_select %p120, %s13, 1
      %s122 = smul.addr %s121, 9
      %s123 = smul.addr %s122, 4
      %s124 = scalar_lea.vmem %s1, %s123
      %p125 = pneg %p55
      %p126 = pneg %p52
      %p127 = pneg %p81
      %p128 = pneg %p78
      %p129 = scmp.lt.s32.totalorder %s13, 1
      %s130 = scalar_select %p129, %s13, 1
      %s131 = smul.addr %s130, 2
      %s132 = smul.addr %s131, 8
      %s133 = scalar_lea.vmem %s2, %s132
      %p134 = scmp.lt.s32.totalorder %s13, 1
      %s135 = scalar_select %p134, %s13, 1
      %s136 = smul.addr %s135, 9
      %s137 = smul.addr %s136, 4
      %s138 = scalar_lea.vmem %s1, %s137
      %p139 = scmp.lt.s32.totalorder %s13, 1
      %s140 = scalar_select %p139, %s13, 1
      %s141 = smul.addr %s140, 2
      %s142 = smul.addr %s141, 8
      %s143 = scalar_lea.vmem %s2, %s142
      %v145 = vld [vmem:[%s0] sm:$0xf]
      %v146 = vld [vmem:[%s0 + $0x4] sm:$0xf]
      %v147 = vld [vmem:[%s138] sm:$0xf]
      %v148 = vld [vmem:[%s138 + $0x4] sm:$0xf]
      %v149 = vld [vmem:[%s138 + $0x8] sm:$0xf]
      %v150 = vld [vmem:[%s138 + $0xc] sm:$0xf]
      %v151 = vld [vmem:[%s138 + $0x10] sm:$0xf]
      %v152 = vld [vmem:[%s138 + $0x14] sm:$0xf]
      %v153 = vld [vmem:[%s138 + $0x18] sm:$0xf]
      %v154 = vld [vmem:[%s138 + $0x1c] sm:$0xf]
      %v155 = vld [vmem:[%s138 + $0x20] sm:$0xf]
      %v158 = vunpack.c.l.b16 %v145
      %v159 = vunpack.c.l.b16 %v146
      %v160 = vpack.c.b16 %v159, %v158
      %v170 = vunpack.c.l.b16 %v147
      %v171 = vunpack.c.l.b16 %v148
      %v172 = vunpack.c.l.b16 %v149
      %v173 = vunpack.c.l.b16 %v150
      %v174 = vunpack.c.l.b16 %v151
      %v175 = vunpack.c.l.b16 %v152
      %v176 = vunpack.c.l.b16 %v153
      %v177 = vunpack.c.l.b16 %v154
      %v178 = vunpack.c.l.b16 %v155
      %v179 = vpack.c.b16 %v171, %v170
      %v180 = vpack.c.b16 %v173, %v172
      %v181 = vpack.c.b16 %v175, %v174
      %v182 = vpack.c.b16 %v177, %v176
      %v183 = vpack.c.b16 %v178, %v178
      %vm188 = vcmask 588800
      %v190 = vsel %vm188, %v160, 0
      %vm192 = vcmask 1043456
      %v194 = vsel %vm192, %v183, 0
      %196 = vmatprep.subr.bf16.mxu0 0
      %197 = vmatpush1.bf16.msra.mxu0 0
      %198 = vmatprep.subr.bf16.mxu0 0
      %199 = vmatpush1.bf16.msra.mxu0 0
      %200 = vmatprep.subr.bf16.mxu0 0
      %201 = vmatpush1.bf16.msra.mxu0 0
      %202 = vmatprep.subr.bf16.mxu0 0
      %203 = vmatpush1.bf16.msra.mxu0 %v194
      %204 = vmatprep.subr.bf16.mxu0 0
      %205 = vmatpush1.bf16.msra.mxu0 %v182
      %206 = vmatprep.subr.bf16.mxu0 0
      %207 = vmatpush1.bf16.msra.mxu0 %v181
      %208 = vmatprep.subr.bf16.mxu0 0
      %209 = vmatpush1.bf16.msra.mxu0 %v180
      %210 = vmatprep.subr.bf16.mxu0 0
      %211 = vmatpush1.bf16.msra.mxu0 %v179
      %212 = vmatprep.subr.bf16.mxu0 0
      %213 = vmatpush2.bf16.msra.mxu0 0
      %214 = vmatprep.subr.bf16.mxu0 0
      %215 = vmatpush2.bf16.msra.mxu0 0
      %216 = vmatprep.subr.bf16.mxu0 0
      %217 = vmatpush2.bf16.msra.mxu0 0
      %218 = vmatprep.subr.bf16.mxu0 0
      %219 = vmatpush2.bf16.msra.mxu0 0
      %220 = vmatprep.subr.bf16.mxu0 0
      %221 = vmatpush2.bf16.msra.mxu0 0
      %222 = vmatprep.subr.bf16.mxu0 0
      %223 = vmatpush2.bf16.msra.mxu0 0
      %224 = vmatprep.subr.bf16.mxu0 0
      %225 = vmatpush2.bf16.msra.mxu0 0
      %226 = vmatprep.subr.bf16.mxu0 0
      %227 = vmatpush2.bf16.msra.mxu0 0
      %228 = vmatprep.mubr.bf16.mxu0 0
      %229 = vmatmul.mubr.bf16.gmra.mxu0 %v190
      %v230 = vpop.f32.mrf.mxu0
      %v231 = vadd.f32 0.0, %v230
      %v232 = vpop.f32.mrf.mxu0
      %v233 = vpop.f32.mrf.mxu0
      %v234 = vadd.f32 0.0, %v233
      %v235 = vpop.f32.mrf.mxu0
      %236 = vdwg.mxu0
      %v237 = vmul.f32 %v231, %v231
      %vm238 = vcmask 130048
      %v239 = vsel %vm238, %v237, 0.0
      %240 = vadd.xlane.f32.xlu0 %v239
      %v241 = vpop.xlane.xlu0 %240
      %v242 = vrot.slane %v241, 4
      %v243 = vadd.f32 %v241, %v242
      %v244 = vrot.slane %v243, 2
      %v245 = vadd.f32 %v243, %v244
      %v246 = vrot.slane %v245, 1
      %v247 = vadd.f32 %v245, %v246
      %v248 = vmul.f32 %v234, %v234
      %v249 = vsel %vm238, %v248, 0.0
      %250 = vadd.xlane.f32.xlu0 %v249
      %v251 = vpop.xlane.xlu0 %250
      %v252 = vrot.slane %v251, 4
      %v253 = vadd.f32 %v251, %v252
      %v254 = vrot.slane %v253, 2
      %v255 = vadd.f32 %v253, %v254
      %v256 = vrot.slane %v255, 1
      %v257 = vadd.f32 %v255, %v256
      %v258 = vrsqrt.pop %v247
      %v259 = vmul.f32 %v247, %v258
      %vm260 = vcmp.eq.f32.partialorder %v247, inf
      %v261 = vsel %vm260, %v247, %v259
      %vm262 = vcmp.eq.f32.partialorder %v247, 0.0
      %v263 = vand.u32 %v247, 2147483648
      %v264 = vsel %vm262, %v263, %v261
      %v265 = vmax.f32 %v264, 1e-12
      %v266 = vrcp.pop %v265
      %v267 = vmul.f32 1.0, %v266
      %v268 = vrsqrt.pop %v257
      %v269 = vmul.f32 %v257, %v268
      %vm270 = vcmp.eq.f32.partialorder %v257, inf
      %v271 = vsel %vm270, %v257, %v269
      %vm272 = vcmp.eq.f32.partialorder %v257, 0.0
      %v273 = vand.u32 %v257, 2147483648
      %v274 = vsel %vm272, %v273, %v271
      %v275 = vmax.f32 %v274, 1e-12
      %v276 = vrcp.pop %v275
      %v277 = vmul.f32 1.0, %v276
      %v278 = vmul.f32 %v231, %v267
      %279 = vst.msk [vmem:[%s143] sm:$0xff] %vm238, %v278
      %v280 = vmul.f32 %v234, %v277
      %281 = vst.msk [vmem:[%s143 + $0x8] sm:$0xff] %vm238, %v280
      %p282 = scmp.lt.s32.totalorder %s13, 1
      %s283 = scalar_select %p282, %s13, 1
      %s284 = smul.addr %s283, 2
      %s285 = smul.addr %s284, 8
      %s286 = scalar_lea.vmem %s2, %s285
      // Predicated region
      $region29: #{_lambda_.10} parent=27 // pred_check
        %p287 = pneg %p78
      $region30: #{_lambda_.10} parent=27 // pred_check_branch
        %289 = sbr.rel (%p287) target = $region32
      $region31: #{_lambda_.10} parent=27 // pred_region
        _
      $region32: #{_lambda_.10} parent=27 // pred_fallthru
        _
    $region28: #{_lambda_.10} parent=5 // pred_fallthru
      _
    %p290 = scmp.le.s32.totalorder 2, %s8
    // Predicated region
    $region33: #{_lambda_.10} parent=5 // pred_check
      %p291 = pneg %p290
    $region34: #{_lambda_.10} parent=5 // pred_check_branch
      %293 = sbr.rel (%p291) target = $region36
    $region35: #{_lambda_.10} parent=5 // pred_region
      %s294 = ssub.s32 %s8, 2
      // Predicated region
      $region37: #{_lambda_.10} parent=35 // pred_check
        %p295 = pneg %p84
      $region38: #{_lambda_.10} parent=35 // pred_check_branch
        %297 = sbr.rel (%p295) target = $region40
      $region39: #{_lambda_.10} parent=35 // pred_region
        %p298 = scmp.lt.s32.totalorder %s14, 1
        %s299 = scalar_select %p298, %s14, 1
        %s300 = smul.addr %s299, 2
        %s301 = smul.addr %s300, 8
        %s302 = scalar_lea.vmem %s2, %s301
      $region40: #{_lambda_.10} parent=35 // pred_fallthru
        _
    $region36: #{_lambda_.10} parent=5 // pred_fallthru
      _
  $region6: #{_lambda_.10} parent=0 // loop_footer
    %s12 = sadd.s32 1, %s8
  $region7: #{_lambda_.10} parent=0 // loop_footer_branch
    %7 = sbr.rel target = $region3
  $region8: #{_lambda_.10} parent=0 // loop_exit
    _

// kernel: _lambda_.11
$region0: #{_lambda_.11}
  #allocation0 [shape = 'u32[]', space=smem, size = 0x4, offset = 0x4, fixed_abs, tag = 'smem constant byte address 0x4 - core index']
  #allocation1 [shape = 'u32[144,128]{1,0:T(1,128)}', space=vmem, size = 0x12000, scoped, tag = 'internal scratch']
  %s0 = inlined_call_operand.vmem [shape: bf16[2,8,16], index: 0, kind: input, shape index: {}]
  %s1 = inlined_call_operand.vmem [shape: bf16[2,200,16], index: 1, kind: input, shape index: {}]
  %s2 = inlined_call_operand.vmem [shape: f32[2,8,200], index: 2, kind: output, shape index: {}]
  %s3 = sld [smem:[#allocation0]]
  $region41: #{_lambda_.11} parent=0
    _
  %s5 = ssub.s32 1, %s3
  %s6 = scalar_select 0, %s5, %s3
  loop: start=0, step=1, limit=4
  $region2: #{_lambda_.11} parent=0 // loop_pre_header
    _
  $region3: #{_lambda_.11} parent=0 // loop_header
    %s8 = sphi 0, %s12
    %p9 = scmp.ge.s32.totalorder %s8, 4
    %s18 = sphi 0, %s20
    %s21 = sphi 0, %s18
    %s22 = sphi 0, %s21
    %s38 = sphi 0, %s22
    %s44 = sphi 0, %s46
    %s47 = sphi 0, %s44
    %s48 = sphi 0, %s47
    %s64 = sphi 0, %s48
    %s70 = sphi 0, %s72
    %s73 = sphi 0, %s70
    %s74 = sphi 0, %s73
    %s90 = sphi 0, %s74
  $region4: #{_lambda_.11} parent=0 // loop_header_branch
    %11 = sbr.rel (%p9) target = $region8
  $region5: #{_lambda_.11} parent=0 // loop_body
    %s13 = ssub.s32 %s8, 1
    %s14 = ssub.s32 %s8, 2
    %s15 = sadd.s32 %s8, 1
    %s16 = ssub.s32 %s8, %s15
    %p17 = scmp.eq.s32.totalorder %s16, 0
    %s19 = sadd.s32 %s18, 1
    %s20 = scalar_select %p17, %s18, %s19
    %p23 = pneg %p17
    %p24 = scmp.eq.s32.totalorder %s8, 1
    %p25 = por %p23, %p24
    %p26 = scmp.ne.s32.totalorder %s18, %s21
    %p27 = scmp.eq.s32.totalorder %s8, 0
    %p28 = por %p26, %p27
    %p29 = scmp.ne.s32.totalorder %s18, %s21
    %p30 = scmp.eq.s32.totalorder %s13, 1
    %p31 = por %p29, %p30
    %p32 = scmp.ne.s32.totalorder %s21, %s22
    %p33 = scmp.eq.s32.totalorder %s13, 0
    %p34 = por %p32, %p33
    %p35 = scmp.ne.s32.totalorder %s21, %s22
    %p36 = scmp.eq.s32.totalorder %s14, 1
    %p37 = por %p35, %p36
    %p39 = scmp.ne.s32.totalorder %s22, %s38
    %p40 = scmp.eq.s32.totalorder %s14, 0
    %p41 = por %p39, %p40
    %s42 = ssub.s32 %s8, %s15
    %p43 = scmp.eq.s32.totalorder %s42, 0
    %s45 = sadd.s32 %s44, 1
    %s46 = scalar_select %p43, %s44, %s45
    %p49 = pneg %p43
    %p50 = scmp.eq.s32.totalorder %s8, 1
    %p51 = por %p49, %p50
    %p52 = scmp.ne.s32.totalorder %s44, %s47
    %p53 = scmp.eq.s32.totalorder %s8, 0
    %p54 = por %p52, %p53
    %p55 = scmp.ne.s32.totalorder %s44, %s47
    %p56 = scmp.eq.s32.totalorder %s13, 1
    %p57 = por %p55, %p56
    %p58 = scmp.ne.s32.totalorder %s47, %s48
    %p59 = scmp.eq.s32.totalorder %s13, 0
    %p60 = por %p58, %p59
    %p61 = scmp.ne.s32.totalorder %s47, %s48
    %p62 = scmp.eq.s32.totalorder %s14, 1
    %p63 = por %p61, %p62
    %p65 = scmp.ne.s32.totalorder %s48, %s64
    %p66 = scmp.eq.s32.totalorder %s14, 0
    %p67 = por %p65, %p66
    %s68 = ssub.s32 %s8, %s15
    %p69 = scmp.eq.s32.totalorder %s68, 0
    %s71 = sadd.s32 %s70, 1
    %s72 = scalar_select %p69, %s70, %s71
    %p75 = pneg %p69
    %p76 = scmp.eq.s32.totalorder %s8, 1
    %p77 = por %p75, %p76
    %p78 = scmp.ne.s32.totalorder %s70, %s73
    %p79 = scmp.eq.s32.totalorder %s8, 0
    %p80 = por %p78, %p79
    %p81 = scmp.ne.s32.totalorder %s70, %s73
    %p82 = scmp.eq.s32.totalorder %s13, 1
    %p83 = por %p81, %p82
    %p84 = scmp.ne.s32.totalorder %s73, %s74
    %p85 = scmp.eq.s32.totalorder %s13, 0
    %p86 = por %p84, %p85
    %p87 = scmp.ne.s32.totalorder %s73, %s74
    %p88 = scmp.eq.s32.totalorder %s14, 1
    %p89 = por %p87, %p88
    %p91 = scmp.ne.s32.totalorder %s74, %s90
    %p92 = scmp.eq.s32.totalorder %s14, 0
    %p93 = por %p91, %p92
    %p94 = scmp.le.s32.totalorder 1, %s8
    %p95 = scmp.lt.s32.totalorder %s8, 3
    %p96 = pnand %p94, %p95
    %p97 = pneg %p96
    // Predicated region
    $region9: #{_lambda_.11} parent=5 // pred_check
      _
    $region10: #{_lambda_.11} parent=5 // pred_check_branch
      %99 = sbr.rel (%p96) target = $region12
    $region11: #{_lambda_.11} parent=5 // pred_region
      %s100 = ssub.s32 %s8, 1
    $region12: #{_lambda_.11} parent=5 // pred_fallthru
      _
    %p101 = scmp.lt.s32.totalorder %s8, 2
    // Predicated region
    $region13: #{_lambda_.11} parent=5 // pred_check
      %p102 = pneg %p101
    $region14: #{_lambda_.11} parent=5 // pred_check_branch
      %104 = sbr.rel (%p102) target = $region16
    $region15: #{_lambda_.11} parent=5 // pred_region
      // Predicated region
      $region17: #{_lambda_.11} parent=15 // pred_check
        %p105 = pneg %p28
      $region18: #{_lambda_.11} parent=15 // pred_check_branch
        %107 = sbr.rel (%p105) target = $region20
      $region19: #{_lambda_.11} parent=15 // pred_region
        %p108 = scmp.lt.s32.totalorder %s8, 1
        %s109 = scalar_select %p108, %s8, 1
        %s110 = smul.addr %s109, 4
        %s111 = scalar_lea.vmem %s0, %s110
      $region20: #{_lambda_.11} parent=15 // pred_fallthru
        _
      // Predicated region
      $region21: #{_lambda_.11} parent=15 // pred_check
        %p112 = pneg %p54
      $region22: #{_lambda_.11} parent=15 // pred_check_branch
        %114 = sbr.rel (%p112) target = $region24
      $region23: #{_lambda_.11} parent=15 // pred_region
        %p115 = scmp.lt.s32.totalorder %s8, 1
        %s116 = scalar_select %p115, %s8, 1
        %s117 = smul.addr %s116, 25
        %s118 = smul.addr %s117, 4
        %s119 = scalar_lea.vmem %s1, %s118
      $region24: #{_lambda_.11} parent=15 // pred_fallthru
        _
    $region16: #{_lambda_.11} parent=5 // pred_fallthru
      _
    %p120 = scmp.le.s32.totalorder 1, %s8
    %p121 = scmp.lt.s32.totalorder %s8, 3
    %p122 = pnand %p120, %p121
    %p123 = pneg %p122
    // Predicated region
    $region25: #{_lambda_.11} parent=5 // pred_check
      _
    $region26: #{_lambda_.11} parent=5 // pred_check_branch
      %125 = sbr.rel (%p122) target = $region28
    $region27: #{_lambda_.11} parent=5 // pred_region
      %s126 = ssub.s32 %s8, 1
      %p127 = scmp.lt.s32.totalorder %s13, 1
      %s128 = scalar_select %p127, %s13, 1
      %s129 = smul.addr %s128, 4
      %s130 = scalar_lea.vmem %s0, %s129
      %p131 = pneg %p34
      %p132 = pneg %p31
      %p133 = scmp.lt.s32.totalorder %s13, 1
      %s134 = scalar_select %p133, %s13, 1
      %s135 = smul.addr %s134, 25
      %s136 = smul.addr %s135, 4
      %s137 = scalar_lea.vmem %s1, %s136
      %p138 = pneg %p60
      %p139 = pneg %p57
      %p140 = pneg %p86
      %p141 = pneg %p83
      %p142 = scmp.lt.s32.totalorder %s13, 1
      %s143 = scalar_select %p142, %s13, 1
      %s144 = smul.addr %s143, 2
      %s145 = smul.addr %s144, 8
      %s146 = scalar_lea.vmem %s2, %s145
      %p147 = scmp.lt.s32.totalorder %s13, 1
      %s148 = scalar_select %p147, %s13, 1
      %s149 = smul.addr %s148, 4
      %s150 = scalar_lea.vmem %s0, %s149
      %p151 = scmp.lt.s32.totalorder %s13, 1
      %s152 = scalar_select %p151, %s13, 1
      %s153 = smul.addr %s152, 25
      %s154 = smul.addr %s153, 4
      %s155 = scalar_lea.vmem %s1, %s154
      %p156 = scmp.lt.s32.totalorder %s13, 1
      %s157 = scalar_select %p156, %s13, 1
      %s158 = smul.addr %s157, 2
      %s159 = smul.addr %s158, 8
      %s160 = scalar_lea.vmem %s2, %s159
      %v162 = vld [vmem:[%s150] sm:$0xf]
      %v163 = vld [vmem:[%s155] sm:$0xf]
      %v164 = vld [vmem:[%s155 + $0x4] sm:$0xf]
      %v165 = vld [vmem:[%s155 + $0x8] sm:$0xf]
      %v166 = vld [vmem:[%s155 + $0xc] sm:$0xf]
      %v167 = vld [vmem:[%s155 + $0x10] sm:$0xf]
      %v168 = vld [vmem:[%s155 + $0x14] sm:$0xf]
      %v169 = vld [vmem:[%s155 + $0x18] sm:$0xf]
      %v170 = vld [vmem:[%s155 + $0x1c] sm:$0xf]
      %v171 = vld [vmem:[%s155 + $0x20] sm:$0xf]
      %v172 = vld [vmem:[%s155 + $0x24] sm:$0xf]
      %v173 = vld [vmem:[%s155 + $0x28] sm:$0xf]
      %v174 = vld [vmem:[%s155 + $0x2c] sm:$0xf]
      %v175 = vld [vmem:[%s155 + $0x30] sm:$0xf]
      %v176 = vld [vmem:[%s155 + $0x34] sm:$0xf]
      %v177 = vld [vmem:[%s155 + $0x38] sm:$0xf]
      %v178 = vld [vmem:[%s155 + $0x3c] sm:$0xf]
      %v179 = vld [vmem:[%s155 + $0x40] sm:$0xf]
      %v180 = vld [vmem:[%s155 + $0x44] sm:$0xf]
      %v181 = vld [vmem:[%s155 + $0x48] sm:$0xf]
      %v182 = vld [vmem:[%s155 + $0x4c] sm:$0xf]
      %v183 = vld [vmem:[%s155 + $0x50] sm:$0xf]
      %v184 = vld [vmem:[%s155 + $0x54] sm:$0xf]
      %v185 = vld [vmem:[%s155 + $0x58] sm:$0xf]
      %v186 = vld [vmem:[%s155 + $0x5c] sm:$0xf]
      %v187 = vld [vmem:[%s155 + $0x60] sm:$0xf]
      %v213 = vunpack.c.l.b16 %v163
      %v214 = vunpack.c.l.b16 %v164
      %v215 = vunpack.c.l.b16 %v165
      %v216 = vunpack.c.l.b16 %v166
      %v217 = vunpack.c.l.b16 %v167
      %v218 = vunpack.c.l.b16 %v168
      %v219 = vunpack.c.l.b16 %v169
      %v220 = vunpack.c.l.b16 %v170
      %v221 = vunpack.c.l.b16 %v171
      %v222 = vunpack.c.l.b16 %v172
      %v223 = vunpack.c.l.b16 %v173
      %v224 = vunpack.c.l.b16 %v174
      %v225 = vunpack.c.l.b16 %v175
      %v226 = vunpack.c.l.b16 %v176
      %v227 = vunpack.c.l.b16 %v177
      %v228 = vunpack.c.l.b16 %v178
      %v229 = vunpack.c.l.b16 %v179
      %v230 = vunpack.c.l.b16 %v180
      %v231 = vunpack.c.l.b16 %v181
      %v232 = vunpack.c.l.b16 %v182
      %v233 = vunpack.c.l.b16 %v183
      %v234 = vunpack.c.l.b16 %v184
      %v235 = vunpack.c.l.b16 %v185
      %v236 = vunpack.c.l.b16 %v186
      %v237 = vunpack.c.l.b16 %v187
      %v238 = vpack.c.b16 %v214, %v213
      %v239 = vpack.c.b16 %v216, %v215
      %v240 = vpack.c.b16 %v218, %v217
      %v241 = vpack.c.b16 %v220, %v219
      %v242 = vpack.c.b16 %v222, %v221
      %v243 = vpack.c.b16 %v224, %v223
      %v244 = vpack.c.b16 %v226, %v225
      %v245 = vpack.c.b16 %v228, %v227
      %v246 = vpack.c.b16 %v230, %v229
      %v247 = vpack.c.b16 %v232, %v231
      %v248 = vpack.c.b16 %v234, %v233
      %v249 = vpack.c.b16 %v236, %v235
      %v250 = vpack.c.b16 %v237, %v237
      %vm251 = vcmask 130048
      %v253 = vsel %vm251, %v162, 0
      %v256 = vsel %vm251, %v238, 0
      %v259 = vsel %vm251, %v239, 0
      %v262 = vsel %vm251, %v240, 0
      %v265 = vsel %vm251, %v241, 0
      %v268 = vsel %vm251, %v242, 0
      %v271 = vsel %vm251, %v243, 0
      %v274 = vsel %vm251, %v244, 0
      %v277 = vsel %vm251, %v245, 0
      %v280 = vsel %vm251, %v246, 0
      %v283 = vsel %vm251, %v247, 0
      %v286 = vsel %vm251, %v248, 0
      %v289 = vsel %vm251, %v249, 0
      %v292 = vsel %vm251, %v250, 0
      %294 = vmatprep.subr.bf16.mxu0 0
      %295 = vmatpush1.bf16.xpose.msra.mxu0 %v277
      %296 = vmatprep.subr.bf16.mxu0 0
      %297 = vmatpush1.bf16.xpose.msra.mxu0 %v274
      %298 = vmatprep.subr.bf16.mxu0 0
      %299 = vmatpush1.bf16.xpose.msra.mxu0 %v271
      %300 = vmatprep.subr.bf16.mxu0 0
      %301 = vmatpush1.bf16.xpose.msra.mxu0 %v268
      %302 = vmatprep.subr.bf16.mxu0 0
      %303 = vmatpush1.bf16.xpose.msra.mxu0 %v265
      %304 = vmatprep.subr.bf16.mxu0 0
      %305 = vmatpush1.bf16.xpose.msra.mxu0 %v262
      %306 = vmatprep.subr.bf16.mxu0 0
      %307 = vmatpush1.bf16.xpose.msra.mxu0 %v259
      %308 = vmatprep.subr.bf16.mxu0 0
      %309 = vmatpush1.bf16.xpose.msra.mxu0 %v256
      %310 = vmatprep.subr.bf16.mxu0 0
      %311 = vmatpush2.bf16.xpose.msra.mxu0 0
      %312 = vmatprep.subr.bf16.mxu0 0
      %313 = vmatpush2.bf16.xpose.msra.mxu0 0
      %314 = vmatprep.subr.bf16.mxu0 0
      %315 = vmatpush2.bf16.xpose.msra.mxu0 0
      %316 = vmatprep.subr.bf16.mxu0 0
      %317 = vmatpush2.bf16.xpose.msra.mxu0 %v292
      %318 = vmatprep.subr.bf16.mxu0 0
      %319 = vmatpush2.bf16.xpose.msra.mxu0 %v289
      %320 = vmatprep.subr.bf16.mxu0 0
      %321 = vmatpush2.bf16.xpose.msra.mxu0 %v286
      %322 = vmatprep.subr.bf16.mxu0 0
      %323 = vmatpush2.bf16.xpose.msra.mxu0 %v283
      %324 = vmatprep.subr.bf16.mxu0 0
      %325 = vmatpush2.bf16.xpose.msra.mxu0 %v280
      %326 = vmatprep.mubr.bf16.mxu0 0
      %327 = vmatmul.mubr.bf16.gmra.mxu0 %v253
      %v328 = vpop.f32.mrf.mxu0
      %v329 = vadd.f32 0.0, %v328
      %v330 = vpop.f32.mrf.mxu0
      %v331 = vadd.f32 0.0, %v330
      %v332 = vpop.f32.mrf.mxu0
      %v333 = vpop.f32.mrf.mxu0
      %334 = vdwg.mxu0
      %335 = vst [vmem:[%s160] sm:$0xff] %v329
      %vm336 = vcmask 588800
      %337 = vst.msk [vmem:[%s160 + $0x8] sm:$0xff] %vm336, %v331
      %p338 = scmp.lt.s32.totalorder %s13, 1
      %s339 = scalar_select %p338, %s13, 1
      %s340 = smul.addr %s339, 2
      %s341 = smul.addr %s340, 8
      %s342 = scalar_lea.vmem %s2, %s341
      // Predicated region
      $region29: #{_lambda_.11} parent=27 // pred_check
        %p343 = pneg %p83
      $region30: #{_lambda_.11} parent=27 // pred_check_branch
        %345 = sbr.rel (%p343) target = $region32
      $region31: #{_lambda_.11} parent=27 // pred_region
        _
      $region32: #{_lambda_.11} parent=27 // pred_fallthru
        _
    $region28: #{_lambda_.11} parent=5 // pred_fallthru
      _
    %p346 = scmp.le.s32.totalorder 2, %s8
    // Predicated region
    $region33: #{_lambda_.11} parent=5 // pred_check
      %p347 = pneg %p346
    $region34: #{_lambda_.11} parent=5 // pred_check_branch
      %349 = sbr.rel (%p347) target = $region36
    $region35: #{_lambda_.11} parent=5 // pred_region
      %s350 = ssub.s32 %s8, 2
      // Predicated region
      $region37: #{_lambda_.11} parent=35 // pred_check
        %p351 = pneg %p89
      $region38: #{_lambda_.11} parent=35 // pred_check_branch
        %353 = sbr.rel (%p351) target = $region40
      $region39: #{_lambda_.11} parent=35 // pred_region
        %p354 = scmp.lt.s32.totalorder %s14, 1
        %s355 = scalar_select %p354, %s14, 1
        %s356 = smul.addr %s355, 2
        %s357 = smul.addr %s356, 8
        %s358 = scalar_lea.vmem %s2, %s357
      $region40: #{_lambda_.11} parent=35 // pred_fallthru
        _
    $region36: #{_lambda_.11} parent=5 // pred_fallthru
      _
  $region6: #{_lambda_.11} parent=0 // loop_footer
    %s12 = sadd.s32 1, %s8
  $region7: #{_lambda_.11} parent=0 // loop_footer_branch
    %7 = sbr.rel target = $region3
  $region8: #{_lambda_.11} parent=0 // loop_exit
    _

// kernel: _lambda_.12
$region0: #{_lambda_.12}
  #allocation0 [shape = 'u32[]', space=smem, size = 0x4, offset = 0x4, fixed_abs, tag = 'smem constant byte address 0x4 - core index']
  #allocation1 [shape = 'u32[144,128]{1,0:T(1,128)}', space=vmem, size = 0x12000, scoped, tag = 'internal scratch']
  #allocation2 [shape = 'f32[1,1]{1,0:T(1,128)S(1)}', space=vmem, size = 0x200, scoped, tag = 'scoped memory for _lambda_.12']
  %s0 = inlined_call_operand.vmem [shape: bf16[8,72], index: 0, kind: input, shape index: {}]
  %s1 = inlined_call_operand.vmem [shape: bf16[2,72,72], index: 1, kind: input, shape index: {}]
  %s2 = inlined_call_operand.vmem [shape: f32[8,72], index: 2, kind: input, shape index: {}]
  %s3 = inlined_call_operand.<no memory space> [shape: f32[1,1], index: 3, kind: input, shape index: {}]
  %s4 = inlined_call_operand.vmem [shape: f32[2,8,72], index: 4, kind: output, shape index: {}]
  %s5 = sld [smem:[#allocation0]]
  $region49: #{_lambda_.12} parent=0
    _
  %s7 = ssub.s32 1, %s5
  %s8 = scalar_select 0, %s7, %s5
  %v9 = vstv %s3
  %10 = vst [vmem:[#allocation2] sm:$0x1] %v9
  loop: start=0, step=1, limit=4
  $region2: #{_lambda_.12} parent=0 // loop_pre_header
    _
  $region3: #{_lambda_.12} parent=0 // loop_header
    %s12 = sphi 0, %s16
    %p13 = scmp.ge.s32.totalorder %s12, 4
    %s20 = sphi 0, %s20
    %s22 = sphi 0, %s20
    %s23 = sphi 0, %s22
    %s37 = sphi 0, %s23
    %s43 = sphi 0, %s45
    %s46 = sphi 0, %s43
    %s47 = sphi 0, %s46
    %s63 = sphi 0, %s47
    %s67 = sphi 0, %s67
    %s69 = sphi 0, %s67
    %s70 = sphi 0, %s69
    %s84 = sphi 0, %s70
    %s88 = sphi 0, %s88
    %s90 = sphi 0, %s88
    %s91 = sphi 0, %s90
    %s105 = sphi 0, %s91
    %s111 = sphi 0, %s113
    %s114 = sphi 0, %s111
    %s115 = sphi 0, %s114
    %s131 = sphi 0, %s115
  $region4: #{_lambda_.12} parent=0 // loop_header_branch
    %15 = sbr.rel (%p13) target = $region8
  $region5: #{_lambda_.12} parent=0 // loop_body
    %s17 = ssub.s32 %s12, 1
    %s18 = ssub.s32 %s12, 2
    %s19 = sadd.s32 %s12, 1
    %s21 = sadd.s32 %s20, 1
    %p24 = scmp.eq.s32.totalorder %s12, 1
    %p25 = scmp.ne.s32.totalorder %s20, %s22
    %p26 = scmp.eq.s32.totalorder %s12, 0
    %p27 = por %p25, %p26
    %p28 = scmp.ne.s32.totalorder %s20, %s22
    %p29 = scmp.eq.s32.totalorder %s17, 1
    %p30 = por %p28, %p29
    %p31 = scmp.ne.s32.totalorder %s22, %s23
    %p32 = scmp.eq.s32.totalorder %s17, 0
    %p33 = por %p31, %p32
    %p34 = scmp.ne.s32.totalorder %s22, %s23
    %p35 = scmp.eq.s32.totalorder %s18, 1
    %p36 = por %p34, %p35
    %p38 = scmp.ne.s32.totalorder %s23, %s37
    %p39 = scmp.eq.s32.totalorder %s18, 0
    %p40 = por %p38, %p39
    %s41 = ssub.s32 %s12, %s19
    %p42 = scmp.eq.s32.totalorder %s41, 0
    %s44 = sadd.s32 %s43, 1
    %s45 = scalar_select %p42, %s43, %s44
    %p48 = pneg %p42
    %p49 = scmp.eq.s32.totalorder %s12, 1
    %p50 = por %p48, %p49
    %p51 = scmp.ne.s32.totalorder %s43, %s46
    %p52 = scmp.eq.s32.totalorder %s12, 0
    %p53 = por %p51, %p52
    %p54 = scmp.ne.s32.totalorder %s43, %s46
    %p55 = scmp.eq.s32.totalorder %s17, 1
    %p56 = por %p54, %p55
    %p57 = scmp.ne.s32.totalorder %s46, %s47
    %p58 = scmp.eq.s32.totalorder %s17, 0
    %p59 = por %p57, %p58
    %p60 = scmp.ne.s32.totalorder %s46, %s47
    %p61 = scmp.eq.s32.totalorder %s18, 1
    %p62 = por %p60, %p61
    %p64 = scmp.ne.s32.totalorder %s47, %s63
    %p65 = scmp.eq.s32.totalorder %s18, 0
    %p66 = por %p64, %p65
    %s68 = sadd.s32 %s67, 1
    %p71 = scmp.eq.s32.totalorder %s12, 1
    %p72 = scmp.ne.s32.totalorder %s67, %s69
    %p73 = scmp.eq.s32.totalorder %s12, 0
    %p74 = por %p72, %p73
    %p75 = scmp.ne.s32.totalorder %s67, %s69
    %p76 = scmp.eq.s32.totalorder %s17, 1
    %p77 = por %p75, %p76
    %p78 = scmp.ne.s32.totalorder %s69, %s70
    %p79 = scmp.eq.s32.totalorder %s17, 0
    %p80 = por %p78, %p79
    %p81 = scmp.ne.s32.totalorder %s69, %s70
    %p82 = scmp.eq.s32.totalorder %s18, 1
    %p83 = por %p81, %p82
    %p85 = scmp.ne.s32.totalorder %s70, %s84
    %p86 = scmp.eq.s32.totalorder %s18, 0
    %p87 = por %p85, %p86
    %s89 = sadd.s32 %s88, 1
    %p92 = scmp.eq.s32.totalorder %s12, 1
    %p93 = scmp.ne.s32.totalorder %s88, %s90
    %p94 = scmp.eq.s32.totalorder %s12, 0
    %p95 = por %p93, %p94
    %p96 = scmp.ne.s32.totalorder %s88, %s90
    %p97 = scmp.eq.s32.totalorder %s17, 1
    %p98 = por %p96, %p97
    %p99 = scmp.ne.s32.totalorder %s90, %s91
    %p100 = scmp.eq.s32.totalorder %s17, 0
    %p101 = por %p99, %p100
    %p102 = scmp.ne.s32.totalorder %s90, %s91
    %p103 = scmp.eq.s32.totalorder %s18, 1
    %p104 = por %p102, %p103
    %p106 = scmp.ne.s32.totalorder %s91, %s105
    %p107 = scmp.eq.s32.totalorder %s18, 0
    %p108 = por %p106, %p107
    %s109 = ssub.s32 %s12, %s19
    %p110 = scmp.eq.s32.totalorder %s109, 0
    %s112 = sadd.s32 %s111, 1
    %s113 = scalar_select %p110, %s111, %s112
    %p116 = pneg %p110
    %p117 = scmp.eq.s32.totalorder %s12, 1
    %p118 = por %p116, %p117
    %p119 = scmp.ne.s32.totalorder %s111, %s114
    %p120 = scmp.eq.s32.totalorder %s12, 0
    %p121 = por %p119, %p120
    %p122 = scmp.ne.s32.totalorder %s111, %s114
    %p123 = scmp.eq.s32.totalorder %s17, 1
    %p124 = por %p122, %p123
    %p125 = scmp.ne.s32.totalorder %s114, %s115
    %p126 = scmp.eq.s32.totalorder %s17, 0
    %p127 = por %p125, %p126
    %p128 = scmp.ne.s32.totalorder %s114, %s115
    %p129 = scmp.eq.s32.totalorder %s18, 1
    %p130 = por %p128, %p129
    %p132 = scmp.ne.s32.totalorder %s115, %s131
    %p133 = scmp.eq.s32.totalorder %s18, 0
    %p134 = por %p132, %p133
    %p135 = scmp.le.s32.totalorder 1, %s12
    %p136 = scmp.lt.s32.totalorder %s12, 3
    %p137 = pnand %p135, %p136
    %p138 = pneg %p137
    // Predicated region
    $region9: #{_lambda_.12} parent=5 // pred_check
      _
    $region10: #{_lambda_.12} parent=5 // pred_check_branch
      %140 = sbr.rel (%p137) target = $region12
    $region11: #{_lambda_.12} parent=5 // pred_region
      %s141 = ssub.s32 %s12, 1
      // Predicated region
      $region13: #{_lambda_.12} parent=11 // pred_check
        %p142 = pneg %p33
      $region14: #{_lambda_.12} parent=11 // pred_check_branch
        %144 = sbr.rel (%p142) target = $region16
      $region15: #{_lambda_.12} parent=11 // pred_region
        _
      $region16: #{_lambda_.12} parent=11 // pred_fallthru
        _
      // Predicated region
      $region17: #{_lambda_.12} parent=11 // pred_check
        %p145 = pneg %p80
      $region18: #{_lambda_.12} parent=11 // pred_check_branch
        %147 = sbr.rel (%p145) target = $region20
      $region19: #{_lambda_.12} parent=11 // pred_region
        _
      $region20: #{_lambda_.12} parent=11 // pred_fallthru
        _
      // Predicated region
      $region21: #{_lambda_.12} parent=11 // pred_check
        %p148 = pneg %p101
      $region22: #{_lambda_.12} parent=11 // pred_check_branch
        %150 = sbr.rel (%p148) target = $region24
      $region23: #{_lambda_.12} parent=11 // pred_region
        _
      $region24: #{_lambda_.12} parent=11 // pred_fallthru
        _
    $region12: #{_lambda_.12} parent=5 // pred_fallthru
      _
    %p151 = scmp.lt.s32.totalorder %s12, 2
    // Predicated region
    $region25: #{_lambda_.12} parent=5 // pred_check
      %p152 = pneg %p151
    $region26: #{_lambda_.12} parent=5 // pred_check_branch
      %154 = sbr.rel (%p152) target = $region28
    $region27: #{_lambda_.12} parent=5 // pred_region
      // Predicated region
      $region29: #{_lambda_.12} parent=27 // pred_check
        %p155 = pneg %p53
      $region30: #{_lambda_.12} parent=27 // pred_check_branch
        %157 = sbr.rel (%p155) target = $region32
      $region31: #{_lambda_.12} parent=27 // pred_region
        %p158 = scmp.lt.s32.totalorder %s12, 1
        %s159 = scalar_select %p158, %s12, 1
        %s160 = smul.addr %s159, 9
        %s161 = smul.addr %s160, 4
        %s162 = scalar_lea.vmem %s1, %s161
      $region32: #{_lambda_.12} parent=27 // pred_fallthru
        _
    $region28: #{_lambda_.12} parent=5 // pred_fallthru
      _
    %p163 = scmp.le.s32.totalorder 1, %s12
    %p164 = scmp.lt.s32.totalorder %s12, 3
    %p165 = pnand %p163, %p164
    %p166 = pneg %p165
    // Predicated region
    $region33: #{_lambda_.12} parent=5 // pred_check
      _
    $region34: #{_lambda_.12} parent=5 // pred_check_branch
      %168 = sbr.rel (%p165) target = $region36
    $region35: #{_lambda_.12} parent=5 // pred_region
      %s169 = ssub.s32 %s12, 1
      %p170 = pneg %p33
      %p171 = pneg %p30
      %p172 = scmp.lt.s32.totalorder %s17, 1
      %s173 = scalar_select %p172, %s17, 1
      %s174 = smul.addr %s173, 9
      %s175 = smul.addr %s174, 4
      %s176 = scalar_lea.vmem %s1, %s175
      %p177 = pneg %p59
      %p178 = pneg %p56
      %p179 = pneg %p80
      %p180 = pneg %p77
      %p181 = pneg %p101
      %p182 = pneg %p98
      %p183 = pneg %p127
      %p184 = pneg %p124
      %p185 = scmp.lt.s32.totalorder %s17, 1
      %s186 = scalar_select %p185, %s17, 1
      %s187 = smul.addr %s186, 8
      %s188 = scalar_lea.vmem %s4, %s187
      %p189 = scmp.lt.s32.totalorder %s17, 1
      %s190 = scalar_select %p189, %s17, 1
      %s191 = smul.addr %s190, 9
      %s192 = smul.addr %s191, 4
      %s193 = scalar_lea.vmem %s1, %s192
      %p194 = scmp.lt.s32.totalorder %s17, 1
      %s195 = scalar_select %p194, %s17, 1
      %s196 = smul.addr %s195, 8
      %s197 = scalar_lea.vmem %s4, %s196
      %v199 = vld [vmem:[%s0] sm:$0xf]
      %v200 = vld [vmem:[%s193] sm:$0xf]
      %v201 = vld [vmem:[%s193 + $0x4] sm:$0xf]
      %v202 = vld [vmem:[%s193 + $0x8] sm:$0xf]
      %v203 = vld [vmem:[%s193 + $0xc] sm:$0xf]
      %v204 = vld [vmem:[%s193 + $0x10] sm:$0xf]
      %v205 = vld [vmem:[%s193 + $0x14] sm:$0xf]
      %v206 = vld [vmem:[%s193 + $0x18] sm:$0xf]
      %v207 = vld [vmem:[%s193 + $0x1c] sm:$0xf]
      %v208 = vld [vmem:[%s193 + $0x20] sm:$0xf]
      %v218 = vunpack.c.l.b16 %v200
      %v219 = vunpack.c.l.b16 %v201
      %v220 = vunpack.c.l.b16 %v202
      %v221 = vunpack.c.l.b16 %v203
      %v222 = vunpack.c.l.b16 %v204
      %v223 = vunpack.c.l.b16 %v205
      %v224 = vunpack.c.l.b16 %v206
      %v225 = vunpack.c.l.b16 %v207
      %v226 = vunpack.c.l.b16 %v208
      %v227 = vpack.c.b16 %v219, %v218
      %v228 = vpack.c.b16 %v221, %v220
      %v229 = vpack.c.b16 %v223, %v222
      %v230 = vpack.c.b16 %v225, %v224
      %v231 = vpack.c.b16 %v226, %v226
      %vm236 = vcmask 588800
      %v238 = vsel %vm236, %v199, 0
      %vm240 = vcmask 1043456
      %v242 = vsel %vm240, %v231, 0
      %244 = vmatprep.subr.bf16.mxu0 0
      %245 = vmatpush1.bf16.msra.mxu0 0
      %246 = vmatprep.subr.bf16.mxu0 0
      %247 = vmatpush1.bf16.msra.mxu0 0
      %248 = vmatprep.subr.bf16.mxu0 0
      %249 = vmatpush1.bf16.msra.mxu0 0
      %250 = vmatprep.subr.bf16.mxu0 0
      %251 = vmatpush1.bf16.msra.mxu0 %v242
      %252 = vmatprep.subr.bf16.mxu0 0
      %253 = vmatpush1.bf16.msra.mxu0 %v230
      %254 = vmatprep.subr.bf16.mxu0 0
      %255 = vmatpush1.bf16.msra.mxu0 %v229
      %256 = vmatprep.subr.bf16.mxu0 0
      %257 = vmatpush1.bf16.msra.mxu0 %v228
      %258 = vmatprep.subr.bf16.mxu0 0
      %259 = vmatpush1.bf16.msra.mxu0 %v227
      %260 = vmatprep.subr.bf16.mxu0 0
      %261 = vmatpush2.bf16.msra.mxu0 0
      %262 = vmatprep.subr.bf16.mxu0 0
      %263 = vmatpush2.bf16.msra.mxu0 0
      %264 = vmatprep.subr.bf16.mxu0 0
      %265 = vmatpush2.bf16.msra.mxu0 0
      %266 = vmatprep.subr.bf16.mxu0 0
      %267 = vmatpush2.bf16.msra.mxu0 0
      %268 = vmatprep.subr.bf16.mxu0 0
      %269 = vmatpush2.bf16.msra.mxu0 0
      %270 = vmatprep.subr.bf16.mxu0 0
      %271 = vmatpush2.bf16.msra.mxu0 0
      %272 = vmatprep.subr.bf16.mxu0 0
      %273 = vmatpush2.bf16.msra.mxu0 0
      %274 = vmatprep.subr.bf16.mxu0 0
      %275 = vmatpush2.bf16.msra.mxu0 0
      %276 = vmatprep.mubr.bf16.mxu0 0
      %277 = vmatmul.mubr.bf16.gmra.mxu0 %v238
      %v278 = vpop.f32.mrf.mxu0
      %v279 = vadd.f32 0.0, %v278
      %v280 = vpop.f32.mrf.mxu0
      %v281 = vpop.f32.mrf.mxu0
      %v282 = vpop.f32.mrf.mxu0
      %283 = vdwg.mxu0
      %v284 = vmul.f32 %v279, %v279
      %v285 = vsel %vm236, %v284, 0.0
      %286 = vadd.xlane.f32.xlu0 %v285
      %v287 = vpop.xlane.xlu0 %286
      %v288 = vrsqrt.pop %v287
      %v289 = vmul.f32 %v287, %v288
      %vm290 = vcmp.eq.f32.partialorder %v287, inf
      %v291 = vsel %vm290, %v287, %v289
      %vm292 = vcmp.eq.f32.partialorder %v287, 0.0
      %v293 = vand.u32 %v287, 2147483648
      %v294 = vsel %vm292, %v293, %v291
      %v295 = vmax.f32 %v294, 1e-12
      %v296 = vrcp.pop %v295
      %v297 = vmul.f32 %v279, %v296
      %v298 = vld [vmem:[%s2] sm:$0xff]
      %v299 = vld [vmem:[#allocation2] sm:$0x1]
      %v301 = vlaneseq
      %v302 = vshrl.u32 %v301, 7
      %v303 = vsub.s32 0, %v302
      %v304 = vrot.slane %v299, %v303
      %305 = vset.pattern.permute.xlu0 0
      %306 = vperm.xlu0 %305, %v304
      %v307 = vpop.permute.xlu0 %306
      %v309 = vmul.f32 %v297, %v307
      %v310 = vadd.f32 %v298, %v309
      %311 = vst.msk [vmem:[%s197] sm:$0xff] %vm236, %v310
      %p312 = scmp.lt.s32.totalorder %s17, 1
      %s313 = scalar_select %p312, %s17, 1
      %s314 = smul.addr %s313, 8
      %s315 = scalar_lea.vmem %s4, %s314
      // Predicated region
      $region37: #{_lambda_.12} parent=35 // pred_check
        %p316 = pneg %p124
      $region38: #{_lambda_.12} parent=35 // pred_check_branch
        %318 = sbr.rel (%p316) target = $region40
      $region39: #{_lambda_.12} parent=35 // pred_region
        _
      $region40: #{_lambda_.12} parent=35 // pred_fallthru
        _
    $region36: #{_lambda_.12} parent=5 // pred_fallthru
      _
    %p319 = scmp.le.s32.totalorder 2, %s12
    // Predicated region
    $region41: #{_lambda_.12} parent=5 // pred_check
      %p320 = pneg %p319
    $region42: #{_lambda_.12} parent=5 // pred_check_branch
      %322 = sbr.rel (%p320) target = $region44
    $region43: #{_lambda_.12} parent=5 // pred_region
      %s323 = ssub.s32 %s12, 2
      // Predicated region
      $region45: #{_lambda_.12} parent=43 // pred_check
        %p324 = pneg %p130
      $region46: #{_lambda_.12} parent=43 // pred_check_branch
        %326 = sbr.rel (%p324) target = $region48
      $region47: #{_lambda_.12} parent=43 // pred_region
        %p327 = scmp.lt.s32.totalorder %s18, 1
        %s328 = scalar_select %p327, %s18, 1
        %s329 = smul.addr %s328, 8
        %s330 = scalar_lea.vmem %s4, %s329
      $region48: #{_lambda_.12} parent=43 // pred_fallthru
        _
    $region44: #{_lambda_.12} parent=5 // pred_fallthru
      _
  $region6: #{_lambda_.12} parent=0 // loop_footer
    %s16 = sadd.s32 1, %s12
  $region7: #{_lambda_.12} parent=0 // loop_footer_branch
    %11 = sbr.rel target = $region3
  $region8: #{_lambda_.12} parent=0 // loop_exit
    _

// kernel: _lambda_.13
$region0: #{_lambda_.13}
  #allocation0 [shape = 'u32[]', space=smem, size = 0x4, offset = 0x4, fixed_abs, tag = 'smem constant byte address 0x4 - core index']
  #allocation1 [shape = 'u32[144,128]{1,0:T(1,128)}', space=vmem, size = 0x12000, scoped, tag = 'internal scratch']
  %s0 = inlined_call_operand.vmem [shape: bf16[2,8,72], index: 0, kind: input, shape index: {}]
  %s1 = inlined_call_operand.vmem [shape: bf16[2,72,144], index: 1, kind: input, shape index: {}]
  %s2 = inlined_call_operand.vmem [shape: f32[2,8,144], index: 2, kind: output, shape index: {}]
  %s3 = sld [smem:[#allocation0]]
  $region41: #{_lambda_.13} parent=0
    _
  %s5 = ssub.s32 1, %s3
  %s6 = scalar_select 0, %s5, %s3
  loop: start=0, step=1, limit=4
  $region2: #{_lambda_.13} parent=0 // loop_pre_header
    _
  $region3: #{_lambda_.13} parent=0 // loop_header
    %s8 = sphi 0, %s12
    %p9 = scmp.ge.s32.totalorder %s8, 4
    %s18 = sphi 0, %s20
    %s21 = sphi 0, %s18
    %s22 = sphi 0, %s21
    %s38 = sphi 0, %s22
    %s44 = sphi 0, %s46
    %s47 = sphi 0, %s44
    %s48 = sphi 0, %s47
    %s64 = sphi 0, %s48
    %s70 = sphi 0, %s72
    %s73 = sphi 0, %s70
    %s74 = sphi 0, %s73
    %s90 = sphi 0, %s74
  $region4: #{_lambda_.13} parent=0 // loop_header_branch
    %11 = sbr.rel (%p9) target = $region8
  $region5: #{_lambda_.13} parent=0 // loop_body
    %s13 = ssub.s32 %s8, 1
    %s14 = ssub.s32 %s8, 2
    %s15 = sadd.s32 %s8, 1
    %s16 = ssub.s32 %s8, %s15
    %p17 = scmp.eq.s32.totalorder %s16, 0
    %s19 = sadd.s32 %s18, 1
    %s20 = scalar_select %p17, %s18, %s19
    %p23 = pneg %p17
    %p24 = scmp.eq.s32.totalorder %s8, 1
    %p25 = por %p23, %p24
    %p26 = scmp.ne.s32.totalorder %s18, %s21
    %p27 = scmp.eq.s32.totalorder %s8, 0
    %p28 = por %p26, %p27
    %p29 = scmp.ne.s32.totalorder %s18, %s21
    %p30 = scmp.eq.s32.totalorder %s13, 1
    %p31 = por %p29, %p30
    %p32 = scmp.ne.s32.totalorder %s21, %s22
    %p33 = scmp.eq.s32.totalorder %s13, 0
    %p34 = por %p32, %p33
    %p35 = scmp.ne.s32.totalorder %s21, %s22
    %p36 = scmp.eq.s32.totalorder %s14, 1
    %p37 = por %p35, %p36
    %p39 = scmp.ne.s32.totalorder %s22, %s38
    %p40 = scmp.eq.s32.totalorder %s14, 0
    %p41 = por %p39, %p40
    %s42 = ssub.s32 %s8, %s15
    %p43 = scmp.eq.s32.totalorder %s42, 0
    %s45 = sadd.s32 %s44, 1
    %s46 = scalar_select %p43, %s44, %s45
    %p49 = pneg %p43
    %p50 = scmp.eq.s32.totalorder %s8, 1
    %p51 = por %p49, %p50
    %p52 = scmp.ne.s32.totalorder %s44, %s47
    %p53 = scmp.eq.s32.totalorder %s8, 0
    %p54 = por %p52, %p53
    %p55 = scmp.ne.s32.totalorder %s44, %s47
    %p56 = scmp.eq.s32.totalorder %s13, 1
    %p57 = por %p55, %p56
    %p58 = scmp.ne.s32.totalorder %s47, %s48
    %p59 = scmp.eq.s32.totalorder %s13, 0
    %p60 = por %p58, %p59
    %p61 = scmp.ne.s32.totalorder %s47, %s48
    %p62 = scmp.eq.s32.totalorder %s14, 1
    %p63 = por %p61, %p62
    %p65 = scmp.ne.s32.totalorder %s48, %s64
    %p66 = scmp.eq.s32.totalorder %s14, 0
    %p67 = por %p65, %p66
    %s68 = ssub.s32 %s8, %s15
    %p69 = scmp.eq.s32.totalorder %s68, 0
    %s71 = sadd.s32 %s70, 1
    %s72 = scalar_select %p69, %s70, %s71
    %p75 = pneg %p69
    %p76 = scmp.eq.s32.totalorder %s8, 1
    %p77 = por %p75, %p76
    %p78 = scmp.ne.s32.totalorder %s70, %s73
    %p79 = scmp.eq.s32.totalorder %s8, 0
    %p80 = por %p78, %p79
    %p81 = scmp.ne.s32.totalorder %s70, %s73
    %p82 = scmp.eq.s32.totalorder %s13, 1
    %p83 = por %p81, %p82
    %p84 = scmp.ne.s32.totalorder %s73, %s74
    %p85 = scmp.eq.s32.totalorder %s13, 0
    %p86 = por %p84, %p85
    %p87 = scmp.ne.s32.totalorder %s73, %s74
    %p88 = scmp.eq.s32.totalorder %s14, 1
    %p89 = por %p87, %p88
    %p91 = scmp.ne.s32.totalorder %s74, %s90
    %p92 = scmp.eq.s32.totalorder %s14, 0
    %p93 = por %p91, %p92
    %p94 = scmp.le.s32.totalorder 1, %s8
    %p95 = scmp.lt.s32.totalorder %s8, 3
    %p96 = pnand %p94, %p95
    %p97 = pneg %p96
    // Predicated region
    $region9: #{_lambda_.13} parent=5 // pred_check
      _
    $region10: #{_lambda_.13} parent=5 // pred_check_branch
      %99 = sbr.rel (%p96) target = $region12
    $region11: #{_lambda_.13} parent=5 // pred_region
      %s100 = ssub.s32 %s8, 1
    $region12: #{_lambda_.13} parent=5 // pred_fallthru
      _
    %p101 = scmp.lt.s32.totalorder %s8, 2
    // Predicated region
    $region13: #{_lambda_.13} parent=5 // pred_check
      %p102 = pneg %p101
    $region14: #{_lambda_.13} parent=5 // pred_check_branch
      %104 = sbr.rel (%p102) target = $region16
    $region15: #{_lambda_.13} parent=5 // pred_region
      // Predicated region
      $region17: #{_lambda_.13} parent=15 // pred_check
        %p105 = pneg %p28
      $region18: #{_lambda_.13} parent=15 // pred_check_branch
        %107 = sbr.rel (%p105) target = $region20
      $region19: #{_lambda_.13} parent=15 // pred_region
        %p108 = scmp.lt.s32.totalorder %s8, 1
        %s109 = scalar_select %p108, %s8, 1
        %s110 = smul.addr %s109, 4
        %s111 = scalar_lea.vmem %s0, %s110
      $region20: #{_lambda_.13} parent=15 // pred_fallthru
        _
      // Predicated region
      $region21: #{_lambda_.13} parent=15 // pred_check
        %p112 = pneg %p54
      $region22: #{_lambda_.13} parent=15 // pred_check_branch
        %114 = sbr.rel (%p112) target = $region24
      $region23: #{_lambda_.13} parent=15 // pred_region
        %p115 = scmp.lt.s32.totalorder %s8, 1
        %s116 = scalar_select %p115, %s8, 1
        %s117 = smul.addr %s116, 18
        %s118 = smul.addr %s117, 4
        %s119 = scalar_lea.vmem %s1, %s118
      $region24: #{_lambda_.13} parent=15 // pred_fallthru
        _
    $region16: #{_lambda_.13} parent=5 // pred_fallthru
      _
    %p120 = scmp.le.s32.totalorder 1, %s8
    %p121 = scmp.lt.s32.totalorder %s8, 3
    %p122 = pnand %p120, %p121
    %p123 = pneg %p122
    // Predicated region
    $region25: #{_lambda_.13} parent=5 // pred_check
      _
    $region26: #{_lambda_.13} parent=5 // pred_check_branch
      %125 = sbr.rel (%p122) target = $region28
    $region27: #{_lambda_.13} parent=5 // pred_region
      %s126 = ssub.s32 %s8, 1
      %p127 = scmp.lt.s32.totalorder %s13, 1
      %s128 = scalar_select %p127, %s13, 1
      %s129 = smul.addr %s128, 4
      %s130 = scalar_lea.vmem %s0, %s129
      %p131 = pneg %p34
      %p132 = pneg %p31
      %p133 = scmp.lt.s32.totalorder %s13, 1
      %s134 = scalar_select %p133, %s13, 1
      %s135 = smul.addr %s134, 18
      %s136 = smul.addr %s135, 4
      %s137 = scalar_lea.vmem %s1, %s136
      %p138 = pneg %p60
      %p139 = pneg %p57
      %p140 = pneg %p86
      %p141 = pneg %p83
      %p142 = scmp.lt.s32.totalorder %s13, 1
      %s143 = scalar_select %p142, %s13, 1
      %s144 = smul.addr %s143, 2
      %s145 = smul.addr %s144, 8
      %s146 = scalar_lea.vmem %s2, %s145
      %p147 = scmp.lt.s32.totalorder %s13, 1
      %s148 = scalar_select %p147, %s13, 1
      %s149 = smul.addr %s148, 4
      %s150 = scalar_lea.vmem %s0, %s149
      %p151 = scmp.lt.s32.totalorder %s13, 1
      %s152 = scalar_select %p151, %s13, 1
      %s153 = smul.addr %s152, 18
      %s154 = smul.addr %s153, 4
      %s155 = scalar_lea.vmem %s1, %s154
      %p156 = scmp.lt.s32.totalorder %s13, 1
      %s157 = scalar_select %p156, %s13, 1
      %s158 = smul.addr %s157, 2
      %s159 = smul.addr %s158, 8
      %s160 = scalar_lea.vmem %s2, %s159
      %v162 = vld [vmem:[%s150] sm:$0xf]
      %v163 = vld [vmem:[%s155] sm:$0xff]
      %v164 = vld [vmem:[%s155 + $0x8] sm:$0xff]
      %v165 = vld [vmem:[%s155 + $0x10] sm:$0xff]
      %v166 = vld [vmem:[%s155 + $0x18] sm:$0xff]
      %v167 = vld [vmem:[%s155 + $0x20] sm:$0xff]
      %v168 = vld [vmem:[%s155 + $0x28] sm:$0xff]
      %v169 = vld [vmem:[%s155 + $0x30] sm:$0xff]
      %v170 = vld [vmem:[%s155 + $0x38] sm:$0xff]
      %v171 = vld [vmem:[%s155 + $0x40] sm:$0xff]
      %v181 = vunpack.c.l.b16 %v163
      %v182 = vunpack.c.h.b16 %v163
      %v183 = vunpack.c.l.b16 %v164
      %v184 = vunpack.c.h.b16 %v164
      %v185 = vunpack.c.l.b16 %v165
      %v186 = vunpack.c.h.b16 %v165
      %v187 = vunpack.c.l.b16 %v166
      %v188 = vunpack.c.h.b16 %v166
      %v189 = vunpack.c.l.b16 %v167
      %v190 = vunpack.c.h.b16 %v167
      %v191 = vunpack.c.l.b16 %v168
      %v192 = vunpack.c.h.b16 %v168
      %v193 = vunpack.c.l.b16 %v169
      %v194 = vunpack.c.h.b16 %v169
      %v195 = vunpack.c.l.b16 %v170
      %v196 = vunpack.c.h.b16 %v170
      %v197 = vunpack.c.l.b16 %v171
      %v198 = vunpack.c.h.b16 %v171
      %v199 = vpack.c.b16 %v183, %v181
      %v200 = vpack.c.b16 %v184, %v182
      %v201 = vpack.c.b16 %v187, %v185
      %v202 = vpack.c.b16 %v188, %v186
      %v203 = vpack.c.b16 %v191, %v189
      %v204 = vpack.c.b16 %v192, %v190
      %v205 = vpack.c.b16 %v195, %v193
      %v206 = vpack.c.b16 %v196, %v194
      %v207 = vpack.c.b16 %v197, %v197
      %v208 = vpack.c.b16 %v198, %v198
      %vm217 = vcmask 588800
      %v219 = vsel %vm217, %v162, 0
      %vm221 = vcmask 1043456
      %v223 = vsel %vm221, %v207, 0
      %v226 = vsel %vm221, %v208, 0
      %228 = vmatprep.subr.bf16.mxu0 0
      %229 = vmatpush1.bf16.msra.mxu0 0
      %230 = vmatprep.subr.bf16.mxu0 0
      %231 = vmatpush1.bf16.msra.mxu0 0
      %232 = vmatprep.subr.bf16.mxu0 0
      %233 = vmatpush1.bf16.msra.mxu0 0
      %234 = vmatprep.subr.bf16.mxu0 %v226
      %235 = vmatpush1.bf16.msra.mxu0 %v223
      %236 = vmatprep.subr.bf16.mxu0 %v206
      %237 = vmatpush1.bf16.msra.mxu0 %v205
      %238 = vmatprep.subr.bf16.mxu0 %v204
      %239 = vmatpush1.bf16.msra.mxu0 %v203
      %240 = vmatprep.subr.bf16.mxu0 %v202
      %241 = vmatpush1.bf16.msra.mxu0 %v201
      %242 = vmatprep.subr.bf16.mxu0 %v200
      %243 = vmatpush1.bf16.msra.mxu0 %v199
      %244 = vmatprep.subr.bf16.mxu0 0
      %245 = vmatpush2.bf16.msra.mxu0 0
      %246 = vmatprep.subr.bf16.mxu0 0
      %247 = vmatpush2.bf16.msra.mxu0 0
      %248 = vmatprep.subr.bf16.mxu0 0
      %249 = vmatpush2.bf16.msra.mxu0 0
      %250 = vmatprep.subr.bf16.mxu0 0
      %251 = vmatpush2.bf16.msra.mxu0 0
      %252 = vmatprep.subr.bf16.mxu0 0
      %253 = vmatpush2.bf16.msra.mxu0 0
      %254 = vmatprep.subr.bf16.mxu0 0
      %255 = vmatpush2.bf16.msra.mxu0 0
      %256 = vmatprep.subr.bf16.mxu0 0
      %257 = vmatpush2.bf16.msra.mxu0 0
      %258 = vmatprep.subr.bf16.mxu0 0
      %259 = vmatpush2.bf16.msra.mxu0 0
      %260 = vmatprep.mubr.bf16.mxu0 0
      %261 = vmatmul.mubr.bf16.gmra.mxu0 %v219
      %v262 = vpop.f32.mrf.mxu0
      %v263 = vadd.f32 0.0, %v262
      %v264 = vpop.f32.mrf.mxu0
      %v265 = vadd.f32 0.0, %v264
      %v266 = vpop.f32.mrf.mxu0
      %v267 = vpop.f32.mrf.mxu0
      %268 = vdwg.mxu0
      %v269 = vmax.f32 %v263, 0.0
      %v270 = vmax.f32 %v265, 0.0
      %271 = vst [vmem:[%s160] sm:$0xff] %v269
      %vm272 = vcmask 130048
      %273 = vst.msk [vmem:[%s160 + $0x8] sm:$0xff] %vm272, %v270
      %p274 = scmp.lt.s32.totalorder %s13, 1
      %s275 = scalar_select %p274, %s13, 1
      %s276 = smul.addr %s275, 2
      %s277 = smul.addr %s276, 8
      %s278 = scalar_lea.vmem %s2, %s277
      // Predicated region
      $region29: #{_lambda_.13} parent=27 // pred_check
        %p279 = pneg %p83
      $region30: #{_lambda_.13} parent=27 // pred_check_branch
        %281 = sbr.rel (%p279) target = $region32
      $region31: #{_lambda_.13} parent=27 // pred_region
        _
      $region32: #{_lambda_.13} parent=27 // pred_fallthru
        _
    $region28: #{_lambda_.13} parent=5 // pred_fallthru
      _
    %p282 = scmp.le.s32.totalorder 2, %s8
    // Predicated region
    $region33: #{_lambda_.13} parent=5 // pred_check
      %p283 = pneg %p282
    $region34: #{_lambda_.13} parent=5 // pred_check_branch
      %285 = sbr.rel (%p283) target = $region36
    $region35: #{_lambda_.13} parent=5 // pred_region
      %s286 = ssub.s32 %s8, 2
      // Predicated region
      $region37: #{_lambda_.13} parent=35 // pred_check
        %p287 = pneg %p89
      $region38: #{_lambda_.13} parent=35 // pred_check_branch
        %289 = sbr.rel (%p287) target = $region40
      $region39: #{_lambda_.13} parent=35 // pred_region
        %p290 = scmp.lt.s32.totalorder %s14, 1
        %s291 = scalar_select %p290, %s14, 1
        %s292 = smul.addr %s291, 2
        %s293 = smul.addr %s292, 8
        %s294 = scalar_lea.vmem %s2, %s293
      $region40: #{_lambda_.13} parent=35 // pred_fallthru
        _
    $region36: #{_lambda_.13} parent=5 // pred_fallthru
      _
  $region6: #{_lambda_.13} parent=0 // loop_footer
    %s12 = sadd.s32 1, %s8
  $region7: #{_lambda_.13} parent=0 // loop_footer_branch
    %7 = sbr.rel target = $region3
  $region8: #{_lambda_.13} parent=0 // loop_exit
    _

// kernel: _lambda_.14
$region0: #{_lambda_.14}
  #allocation0 [shape = 'u32[]', space=smem, size = 0x4, offset = 0x4, fixed_abs, tag = 'smem constant byte address 0x4 - core index']
  #allocation1 [shape = 'u32[144,128]{1,0:T(1,128)}', space=vmem, size = 0x12000, scoped, tag = 'internal scratch']
  %s0 = inlined_call_operand.vmem [shape: bf16[8,72], index: 0, kind: input, shape index: {}]
  %s1 = inlined_call_operand.vmem [shape: bf16[72,384], index: 1, kind: input, shape index: {}]
  %s2 = inlined_call_operand.vmem [shape: f32[8,1], index: 2, kind: input, shape index: {}]
  %s3 = inlined_call_operand.vmem [shape: f32[8,384], index: 3, kind: input, shape index: {}]
  %s4 = inlined_call_operand.vmem [shape: f32[8,384], index: 4, kind: output, shape index: {}]
  %s5 = sld [smem:[#allocation0]]
  $region90: #{_lambda_.14} parent=0
    _
  %s7 = ssub.s32 1, %s5
  %s8 = scalar_select 0, %s7, %s5
  $region1: #{_lambda_.14} parent=0
    #allocation2 [shape = 'u8[36864]{0}', space=vmem, size = 0x9000, scoped, tag = 'input window, operand 1']
    loop: start=0, step=1, limit=5
    $region2: #{_lambda_.14} parent=1 // loop_pre_header
      _
    $region3: #{_lambda_.14} parent=1 // loop_header
      %s10 = sphi 0, %s14
      %p11 = scmp.ge.s32.totalorder %s10, 5
      %s18 = sphi 0, %s18
      %s20 = sphi 0, %s18
      %s21 = sphi 0, %s20
      %s35 = sphi 0, %s21
      %s41 = sphi 0, %s43
      %s44 = sphi 0, %s41
      %s45 = sphi 0, %s44
      %s61 = sphi 0, %s45
      %s65 = sphi 0, %s65
      %s67 = sphi 0, %s65
      %s68 = sphi 0, %s67
      %s82 = sphi 0, %s68
      %s88 = sphi 0, %s90
      %s91 = sphi 0, %s88
      %s92 = sphi 0, %s91
      %s108 = sphi 0, %s92
      %s114 = sphi 0, %s116
      %s117 = sphi 0, %s114
      %s118 = sphi 0, %s117
      %s134 = sphi 0, %s118
    $region4: #{_lambda_.14} parent=1 // loop_header_branch
      %13 = sbr.rel (%p11) target = $region8
    $region5: #{_lambda_.14} parent=1 // loop_body
      %s15 = ssub.s32 %s10, 1
      %s16 = ssub.s32 %s10, 2
      %s17 = sadd.s32 %s10, 1
      %s19 = sadd.s32 %s18, 1
      %p22 = scmp.eq.s32.totalorder %s10, 2
      %p23 = scmp.ne.s32.totalorder %s18, %s20
      %p24 = scmp.eq.s32.totalorder %s10, 0
      %p25 = por %p23, %p24
      %p26 = scmp.ne.s32.totalorder %s18, %s20
      %p27 = scmp.eq.s32.totalorder %s15, 2
      %p28 = por %p26, %p27
      %p29 = scmp.ne.s32.totalorder %s20, %s21
      %p30 = scmp.eq.s32.totalorder %s15, 0
      %p31 = por %p29, %p30
      %p32 = scmp.ne.s32.totalorder %s20, %s21
      %p33 = scmp.eq.s32.totalorder %s16, 2
      %p34 = por %p32, %p33
      %p36 = scmp.ne.s32.totalorder %s21, %s35
      %p37 = scmp.eq.s32.totalorder %s16, 0
      %p38 = por %p36, %p37
      %s39 = ssub.s32 %s10, %s17
      %p40 = scmp.eq.s32.totalorder %s39, 0
      %s42 = sadd.s32 %s41, 1
      %s43 = scalar_select %p40, %s41, %s42
      %p46 = pneg %p40
      %p47 = scmp.eq.s32.totalorder %s10, 2
      %p48 = por %p46, %p47
      %p49 = scmp.ne.s32.totalorder %s41, %s44
      %p50 = scmp.eq.s32.totalorder %s10, 0
      %p51 = por %p49, %p50
      %p52 = scmp.ne.s32.totalorder %s41, %s44
      %p53 = scmp.eq.s32.totalorder %s15, 2
      %p54 = por %p52, %p53
      %p55 = scmp.ne.s32.totalorder %s44, %s45
      %p56 = scmp.eq.s32.totalorder %s15, 0
      %p57 = por %p55, %p56
      %p58 = scmp.ne.s32.totalorder %s44, %s45
      %p59 = scmp.eq.s32.totalorder %s16, 2
      %p60 = por %p58, %p59
      %p62 = scmp.ne.s32.totalorder %s45, %s61
      %p63 = scmp.eq.s32.totalorder %s16, 0
      %p64 = por %p62, %p63
      %s66 = sadd.s32 %s65, 1
      %p69 = scmp.eq.s32.totalorder %s10, 2
      %p70 = scmp.ne.s32.totalorder %s65, %s67
      %p71 = scmp.eq.s32.totalorder %s10, 0
      %p72 = por %p70, %p71
      %p73 = scmp.ne.s32.totalorder %s65, %s67
      %p74 = scmp.eq.s32.totalorder %s15, 2
      %p75 = por %p73, %p74
      %p76 = scmp.ne.s32.totalorder %s67, %s68
      %p77 = scmp.eq.s32.totalorder %s15, 0
      %p78 = por %p76, %p77
      %p79 = scmp.ne.s32.totalorder %s67, %s68
      %p80 = scmp.eq.s32.totalorder %s16, 2
      %p81 = por %p79, %p80
      %p83 = scmp.ne.s32.totalorder %s68, %s82
      %p84 = scmp.eq.s32.totalorder %s16, 0
      %p85 = por %p83, %p84
      %s86 = ssub.s32 %s10, %s17
      %p87 = scmp.eq.s32.totalorder %s86, 0
      %s89 = sadd.s32 %s88, 1
      %s90 = scalar_select %p87, %s88, %s89
      %p93 = pneg %p87
      %p94 = scmp.eq.s32.totalorder %s10, 2
      %p95 = por %p93, %p94
      %p96 = scmp.ne.s32.totalorder %s88, %s91
      %p97 = scmp.eq.s32.totalorder %s10, 0
      %p98 = por %p96, %p97
      %p99 = scmp.ne.s32.totalorder %s88, %s91
      %p100 = scmp.eq.s32.totalorder %s15, 2
      %p101 = por %p99, %p100
      %p102 = scmp.ne.s32.totalorder %s91, %s92
      %p103 = scmp.eq.s32.totalorder %s15, 0
      %p104 = por %p102, %p103
      %p105 = scmp.ne.s32.totalorder %s91, %s92
      %p106 = scmp.eq.s32.totalorder %s16, 2
      %p107 = por %p105, %p106
      %p109 = scmp.ne.s32.totalorder %s92, %s108
      %p110 = scmp.eq.s32.totalorder %s16, 0
      %p111 = por %p109, %p110
      %s112 = ssub.s32 %s10, %s17
      %p113 = scmp.eq.s32.totalorder %s112, 0
      %s115 = sadd.s32 %s114, 1
      %s116 = scalar_select %p113, %s114, %s115
      %p119 = pneg %p113
      %p120 = scmp.eq.s32.totalorder %s10, 2
      %p121 = por %p119, %p120
      %p122 = scmp.ne.s32.totalorder %s114, %s117
      %p123 = scmp.eq.s32.totalorder %s10, 0
      %p124 = por %p122, %p123
      %p125 = scmp.ne.s32.totalorder %s114, %s117
      %p126 = scmp.eq.s32.totalorder %s15, 2
      %p127 = por %p125, %p126
      %p128 = scmp.ne.s32.totalorder %s117, %s118
      %p129 = scmp.eq.s32.totalorder %s15, 0
      %p130 = por %p128, %p129
      %p131 = scmp.ne.s32.totalorder %s117, %s118
      %p132 = scmp.eq.s32.totalorder %s16, 2
      %p133 = por %p131, %p132
      %p135 = scmp.ne.s32.totalorder %s118, %s134
      %p136 = scmp.eq.s32.totalorder %s16, 0
      %p137 = por %p135, %p136
      %p138 = scmp.le.s32.totalorder 1, %s10
      %p139 = scmp.lt.s32.totalorder %s10, 4
      %p140 = pnand %p138, %p139
      %p141 = pneg %p140
      // Predicated region
      $region9: #{_lambda_.14} parent=5 // pred_check
        _
      $region10: #{_lambda_.14} parent=5 // pred_check_branch
        %143 = sbr.rel (%p140) target = $region12
      $region11: #{_lambda_.14} parent=5 // pred_region
        %s144 = ssub.s32 %s10, 1
        // Predicated region
        $region13: #{_lambda_.14} parent=11 // pred_check
          %p145 = pneg %p31
        $region14: #{_lambda_.14} parent=11 // pred_check_branch
          %147 = sbr.rel (%p145) target = $region16
        $region15: #{_lambda_.14} parent=11 // pred_region
          _
        $region16: #{_lambda_.14} parent=11 // pred_fallthru
          _
        // Predicated region
        $region17: #{_lambda_.14} parent=11 // pred_check
          %p148 = pneg %p78
        $region18: #{_lambda_.14} parent=11 // pred_check_branch
          %150 = sbr.rel (%p148) target = $region20
        $region19: #{_lambda_.14} parent=11 // pred_region
          _
        $region20: #{_lambda_.14} parent=11 // pred_fallthru
          _
      $region12: #{_lambda_.14} parent=5 // pred_fallthru
        _
      %p151 = scmp.lt.s32.totalorder %s10, 3
      // Predicated region
      $region21: #{_lambda_.14} parent=5 // pred_check
        %p152 = pneg %p151
      $region22: #{_lambda_.14} parent=5 // pred_check_branch
        %154 = sbr.rel (%p152) target = $region24
      $region23: #{_lambda_.14} parent=5 // pred_region
        // Predicated region
        $region25: #{_lambda_.14} parent=23 // pred_check
          %p155 = pneg %p51
        $region26: #{_lambda_.14} parent=23 // pred_check_branch
          %157 = sbr.rel (%p155) target = $region28
        $region27: #{_lambda_.14} parent=23 // pred_region
          %s158 = sand.u32 %s41, 1
          %s159 = sand.u32 %s41, 1
          %s160 = smul.addr %s159, 36
          %s161 = scalar_lea.vmem [#allocation2], %s160
          %s162 = smul.addr %s10, 4
          %s163 = scalar_lea.vmem %s1, %s162
          // Predicated region
          $region29: #{_lambda_.14} parent=27 // pred_check
            _
          $region30: #{_lambda_.14} parent=27 // pred_check_branch
            %165 = sbr.rel (0) target = $region32
          $region31: #{_lambda_.14} parent=27 // pred_region
            // Predicated region
            $region33: #{_lambda_.14} parent=31 // pred_check
              _
            $region34: #{_lambda_.14} parent=31 // pred_check_branch
              %167 = sbr.rel target = $region36
            $region35: #{_lambda_.14} parent=31 // pred_region
              // Predicated region
              $region48: #{_lambda_.14} parent=35 // pred_check
                _
              $region49: #{_lambda_.14} parent=35 // pred_check_branch
                %199 = sbr.rel (0) target = $region51
              $region50: #{_lambda_.14} parent=35 // pred_region
                loop: start=0, step=1, limit=1
                $region52: #{_lambda_.14} parent=50 // loop_pre_header
                  _
                $region53: #{_lambda_.14} parent=50 // loop_header
                  %s201 = sphi 0, %s205
                  %p202 = scmp.ge.s32.totalorder %s201, 1
                  %s206 = sphi %s163, %s163
                  %s207 = sphi %s161, %s161
                $region54: #{_lambda_.14} parent=50 // loop_header_branch
                  %204 = sbr.rel (%p202) target = $region58
                $region55: #{_lambda_.14} parent=50 // loop_body
                  _
                $region56: #{_lambda_.14} parent=50 // loop_footer
                  %s205 = sadd.s32 1, %s201
                $region57: #{_lambda_.14} parent=50 // loop_footer_branch
                  %200 = sbr.rel target = $region53
                $region58: #{_lambda_.14} parent=50 // loop_exit
                  _
                %s209 = ssub.s32 16, 1
                loop: start=0, step=1, limit=1
                $region59: #{_lambda_.14} parent=50 // loop_pre_header
                  _
                $region60: #{_lambda_.14} parent=50 // loop_header
                  %s211 = sphi 0, %s215
                  %p212 = scmp.ge.s32.totalorder %s211, 1
                  %s216 = sphi %s163, %s163
                  %s217 = sphi %s161, %s161
                $region61: #{_lambda_.14} parent=50 // loop_header_branch
                  %214 = sbr.rel (%p212) target = $region65
                $region62: #{_lambda_.14} parent=50 // loop_body
                  %v218 = vld [vmem:[%s216] sm:%s209]
                  %219 = vst [vmem:[%s217] sm:%s209] %v218
                  %v220 = vld [vmem:[%s216 + $0xc] sm:%s209]
                  %221 = vst [vmem:[%s217 + $0x4] sm:%s209] %v220
                  %v222 = vld [vmem:[%s216 + $0x18] sm:%s209]
                  %223 = vst [vmem:[%s217 + $0x8] sm:%s209] %v222
                  %v224 = vld [vmem:[%s216 + $0x24] sm:%s209]
                  %225 = vst [vmem:[%s217 + $0xc] sm:%s209] %v224
                  %v226 = vld [vmem:[%s216 + $0x30] sm:%s209]
                  %227 = vst [vmem:[%s217 + $0x10] sm:%s209] %v226
                  %v228 = vld [vmem:[%s216 + $0x3c] sm:%s209]
                  %229 = vst [vmem:[%s217 + $0x14] sm:%s209] %v228
                  %v230 = vld [vmem:[%s216 + $0x48] sm:%s209]
                  %231 = vst [vmem:[%s217 + $0x18] sm:%s209] %v230
                  %v232 = vld [vmem:[%s216 + $0x54] sm:%s209]
                  %233 = vst [vmem:[%s217 + $0x1c] sm:%s209] %v232
                  %v234 = vld [vmem:[%s216 + $0x60] sm:%s209]
                  %235 = vst [vmem:[%s217 + $0x20] sm:%s209] %v234
                $region63: #{_lambda_.14} parent=50 // loop_footer
                  %s215 = sadd.s32 1, %s211
                $region64: #{_lambda_.14} parent=50 // loop_footer_branch
                  %210 = sbr.rel target = $region60
                $region65: #{_lambda_.14} parent=50 // loop_exit
                  _
              $region51: #{_lambda_.14} parent=35 // pred_fallthru
                _
            $region36: #{_lambda_.14} parent=31 // pred_fallthru
              _
            // Predicated region
            $region37: #{_lambda_.14} parent=31 // pred_check
              _
            $region38: #{_lambda_.14} parent=31 // pred_check_branch
              %169 = sbr.rel (0) target = $region40
            $region39: #{_lambda_.14} parent=31 // pred_region
              %s171 = ssub.s32 16, 1
              loop: start=0, step=1, limit=1
              $region41: #{_lambda_.14} parent=39 // loop_pre_header
                _
              $region42: #{_lambda_.14} parent=39 // loop_header
                %s173 = sphi 0, %s177
                %p174 = scmp.ge.s32.totalorder %s173, 1
                %s178 = sphi %s163, %s163
                %s179 = sphi %s161, %s161
              $region43: #{_lambda_.14} parent=39 // loop_header_branch
                %176 = sbr.rel (%p174) target = $region47
              $region44: #{_lambda_.14} parent=39 // loop_body
                %v180 = vld [vmem:[%s178] sm:%s171]
                %181 = vst [vmem:[%s179] sm:%s171] %v180
                %v182 = vld [vmem:[%s178 + $0xc] sm:%s171]
                %183 = vst [vmem:[%s179 + $0x4] sm:%s171] %v182
                %v184 = vld [vmem:[%s178 + $0x18] sm:%s171]
                %185 = vst [vmem:[%s179 + $0x8] sm:%s171] %v184
                %v186 = vld [vmem:[%s178 + $0x24] sm:%s171]
                %187 = vst [vmem:[%s179 + $0xc] sm:%s171] %v186
                %v188 = vld [vmem:[%s178 + $0x30] sm:%s171]
                %189 = vst [vmem:[%s179 + $0x10] sm:%s171] %v188
                %v190 = vld [vmem:[%s178 + $0x3c] sm:%s171]
                %191 = vst [vmem:[%s179 + $0x14] sm:%s171] %v190
                %v192 = vld [vmem:[%s178 + $0x48] sm:%s171]
                %193 = vst [vmem:[%s179 + $0x18] sm:%s171] %v192
                %v194 = vld [vmem:[%s178 + $0x54] sm:%s171]
                %195 = vst [vmem:[%s179 + $0x1c] sm:%s171] %v194
                %v196 = vld [vmem:[%s178 + $0x60] sm:%s171]
                %197 = vst [vmem:[%s179 + $0x20] sm:%s171] %v196
              $region45: #{_lambda_.14} parent=39 // loop_footer
                %s177 = sadd.s32 1, %s173
              $region46: #{_lambda_.14} parent=39 // loop_footer_branch
                %172 = sbr.rel target = $region42
              $region47: #{_lambda_.14} parent=39 // loop_exit
                _
            $region40: #{_lambda_.14} parent=31 // pred_fallthru
              _
          $region32: #{_lambda_.14} parent=27 // pred_fallthru
            _
          %236 = vnop
        $region28: #{_lambda_.14} parent=23 // pred_fallthru
          _
        // Predicated region
        $region66: #{_lambda_.14} parent=23 // pred_check
          %p237 = pneg %p98
        $region67: #{_lambda_.14} parent=23 // pred_check_branch
          %239 = sbr.rel (%p237) target = $region69
        $region68: #{_lambda_.14} parent=23 // pred_region
          %p240 = scmp.lt.s32.totalorder %s10, 2
          %s241 = scalar_select %p240, %s10, 2
          %s242 = smul.addr %s241, 8
          %s243 = scalar_lea.vmem %s3, %s242
        $region69: #{_lambda_.14} parent=23 // pred_fallthru
          _
      $region24: #{_lambda_.14} parent=5 // pred_fallthru
        _
      %p244 = scmp.le.s32.totalorder 1, %s10
      %p245 = scmp.lt.s32.totalorder %s10, 4
      %p246 = pnand %p244, %p245
      %p247 = pneg %p246
      // Predicated region
      $region70: #{_lambda_.14} parent=5 // pred_check
        _
      $region71: #{_lambda_.14} parent=5 // pred_check_branch
        %249 = sbr.rel (%p246) target = $region73
      $region72: #{_lambda_.14} parent=5 // pred_region
        %s250 = ssub.s32 %s10, 1
        %s251 = sand.u32 %s44, 1
        %s252 = sand.u32 %s44, 1
        %s253 = smul.addr %s252, 36
        %s254 = scalar_lea.vmem [#allocation2], %s253
        // Predicated region
        $region74: #{_lambda_.14} parent=72 // pred_check
          %p255 = pneg %p57
        $region75: #{_lambda_.14} parent=72 // pred_check_branch
          %257 = sbr.rel (%p255) target = $region77
        $region76: #{_lambda_.14} parent=72 // pred_region
          _
        $region77: #{_lambda_.14} parent=72 // pred_fallthru
          _
        %p258 = pneg %p31
        %p259 = pneg %p28
        %s260 = sand.u32 %s44, 1
        %s261 = sand.u32 %s44, 1
        %s262 = smul.addr %s261, 36
        %s263 = scalar_lea.vmem [#allocation2], %s262
        %p264 = pneg %p57
        %p265 = pneg %p54
        %p266 = pneg %p78
        %p267 = pneg %p75
        %p268 = scmp.lt.s32.totalorder %s15, 2
        %s269 = scalar_select %p268, %s15, 2
        %s270 = smul.addr %s269, 8
        %s271 = scalar_lea.vmem %s3, %s270
        %p272 = pneg %p104
        %p273 = pneg %p101
        %p274 = pneg %p130
        %p275 = pneg %p127
        %p276 = scmp.lt.s32.totalorder %s15, 2
        %s277 = scalar_select %p276, %s15, 2
        %s278 = smul.addr %s277, 8
        %s279 = scalar_lea.vmem %s4, %s278
        %p280 = scmp.lt.s32.totalorder %s15, 2
        %s281 = scalar_select %p280, %s15, 2
        %s282 = smul.addr %s281, 8
        %s283 = scalar_lea.vmem %s3, %s282
        %p284 = scmp.lt.s32.totalorder %s15, 2
        %s285 = scalar_select %p284, %s15, 2
        %s286 = smul.addr %s285, 8
        %s287 = scalar_lea.vmem %s4, %s286
        %v289 = vld [vmem:[%s0] sm:$0xf]
        %v290 = vld [vmem:[%s254] sm:$0xf]
        %v291 = vld [vmem:[%s254 + $0x4] sm:$0xf]
        %v292 = vld [vmem:[%s254 + $0x8] sm:$0xf]
        %v293 = vld [vmem:[%s254 + $0xc] sm:$0xf]
        %v294 = vld [vmem:[%s254 + $0x10] sm:$0xf]
        %v295 = vld [vmem:[%s254 + $0x14] sm:$0xf]
        %v296 = vld [vmem:[%s254 + $0x18] sm:$0xf]
        %v297 = vld [vmem:[%s254 + $0x1c] sm:$0xf]
        %v298 = vld [vmem:[%s254 + $0x20] sm:$0xf]
        %v299 = vld [vmem:[%s2] sm:$0xff]
        %301 = vset.pattern.permute.xlu0 0
        %302 = vperm.xlu0 %301, %v299
        %v303 = vpop.permute.xlu0 %302
        %v314 = vunpack.c.l.b16 %v290
        %v315 = vunpack.c.l.b16 %v291
        %v316 = vunpack.c.l.b16 %v292
        %v317 = vunpack.c.l.b16 %v293
        %v318 = vunpack.c.l.b16 %v294
        %v319 = vunpack.c.l.b16 %v295
        %v320 = vunpack.c.l.b16 %v296
        %v321 = vunpack.c.l.b16 %v297
        %v322 = vunpack.c.l.b16 %v298
        %v323 = vpack.c.b16 %v315, %v314
        %v324 = vpack.c.b16 %v317, %v316
        %v325 = vpack.c.b16 %v319, %v318
        %v326 = vpack.c.b16 %v321, %v320
        %v327 = vpack.c.b16 %v322, %v322
        %vm332 = vcmask 588800
        %v334 = vsel %vm332, %v289, 0
        %vm336 = vcmask 1043456
        %v338 = vsel %vm336, %v327, 0
        %340 = vmatprep.subr.bf16.mxu0 0
        %341 = vmatpush1.bf16.msra.mxu0 0
        %342 = vmatprep.subr.bf16.mxu0 0
        %343 = vmatpush1.bf16.msra.mxu0 0
        %344 = vmatprep.subr.bf16.mxu0 0
        %345 = vmatpush1.bf16.msra.mxu0 0
        %346 = vmatprep.subr.bf16.mxu0 0
        %347 = vmatpush1.bf16.msra.mxu0 %v338
        %348 = vmatprep.subr.bf16.mxu0 0
        %349 = vmatpush1.bf16.msra.mxu0 %v326
        %350 = vmatprep.subr.bf16.mxu0 0
        %351 = vmatpush1.bf16.msra.mxu0 %v325
        %352 = vmatprep.subr.bf16.mxu0 0
        %353 = vmatpush1.bf16.msra.mxu0 %v324
        %354 = vmatprep.subr.bf16.mxu0 0
        %355 = vmatpush1.bf16.msra.mxu0 %v323
        %356 = vmatprep.subr.bf16.mxu0 0
        %357 = vmatpush2.bf16.msra.mxu0 0
        %358 = vmatprep.subr.bf16.mxu0 0
        %359 = vmatpush2.bf16.msra.mxu0 0
        %360 = vmatprep.subr.bf16.mxu0 0
        %361 = vmatpush2.bf16.msra.mxu0 0
        %362 = vmatprep.subr.bf16.mxu0 0
        %363 = vmatpush2.bf16.msra.mxu0 0
        %364 = vmatprep.subr.bf16.mxu0 0
        %365 = vmatpush2.bf16.msra.mxu0 0
        %366 = vmatprep.subr.bf16.mxu0 0
        %367 = vmatpush2.bf16.msra.mxu0 0
        %368 = vmatprep.subr.bf16.mxu0 0
        %369 = vmatpush2.bf16.msra.mxu0 0
        %370 = vmatprep.subr.bf16.mxu0 0
        %371 = vmatpush2.bf16.msra.mxu0 0
        %372 = vmatprep.mubr.bf16.mxu0 0
        %373 = vmatmul.mubr.bf16.gmra.mxu0 %v334
        %v374 = vpop.f32.mrf.mxu0
        %v375 = vadd.f32 %v303, %v374
        %v376 = vpop.f32.mrf.mxu0
        %v377 = vpop.f32.mrf.mxu0
        %v378 = vpop.f32.mrf.mxu0
        %379 = vdwg.mxu0
        %v380 = vld [vmem:[%s283] sm:$0xff]
        %v381 = vadd.f32 %v375, %v380
        %382 = vst [vmem:[%s287] sm:$0xff] %v381
        %p383 = scmp.lt.s32.totalorder %s15, 2
        %s384 = scalar_select %p383, %s15, 2
        %s385 = smul.addr %s384, 8
        %s386 = scalar_lea.vmem %s4, %s385
        // Predicated region
        $region78: #{_lambda_.14} parent=72 // pred_check
          %p387 = pneg %p127
        $region79: #{_lambda_.14} parent=72 // pred_check_branch
          %389 = sbr.rel (%p387) target = $region81
        $region80: #{_lambda_.14} parent=72 // pred_region
          _
        $region81: #{_lambda_.14} parent=72 // pred_fallthru
          _
      $region73: #{_lambda_.14} parent=5 // pred_fallthru
        _
      %p390 = scmp.le.s32.totalorder 2, %s10
      // Predicated region
      $region82: #{_lambda_.14} parent=5 // pred_check
        %p391 = pneg %p390
      $region83: #{_lambda_.14} parent=5 // pred_check_branch
        %393 = sbr.rel (%p391) target = $region85
      $region84: #{_lambda_.14} parent=5 // pred_region
        %s394 = ssub.s32 %s10, 2
        // Predicated region
        $region86: #{_lambda_.14} parent=84 // pred_check
          %p395 = pneg %p133
        $region87: #{_lambda_.14} parent=84 // pred_check_branch
          %397 = sbr.rel (%p395) target = $region89
        $region88: #{_lambda_.14} parent=84 // pred_region
          %p398 = scmp.lt.s32.totalorder %s16, 2
          %s399 = scalar_select %p398, %s16, 2
          %s400 = smul.addr %s399, 8
          %s401 = scalar_lea.vmem %s4, %s400
        $region89: #{_lambda_.14} parent=84 // pred_fallthru
          _
      $region85: #{_lambda_.14} parent=5 // pred_fallthru
        _
    $region6: #{_lambda_.14} parent=1 // loop_footer
      %s14 = sadd.s32 1, %s10
    $region7: #{_lambda_.14} parent=1 // loop_footer_branch
      %9 = sbr.rel target = $region3
    $region8: #{_lambda_.14} parent=1 // loop_exit
      _

// kernel: _lambda_.16
$region0: #{_lambda_.16}
  #allocation0 [shape = 'u32[]', space=smem, size = 0x4, offset = 0x4, fixed_abs, tag = 'smem constant byte address 0x4 - core index']
  #allocation1 [shape = 'u32[144,128]{1,0:T(1,128)}', space=vmem, size = 0x12000, scoped, tag = 'internal scratch']
  %s0 = inlined_call_operand.vmem [shape: bf16[32,72], index: 0, kind: input, shape index: {}]
  %s1 = inlined_call_operand.vmem [shape: bf16[72,384], index: 1, kind: input, shape index: {}]
  %s2 = inlined_call_operand.vmem [shape: f32[32,1], index: 2, kind: input, shape index: {}]
  %s3 = inlined_call_operand.vmem [shape: f32[32,384], index: 3, kind: output, shape index: {}]
  %s4 = sld [smem:[#allocation0]]
  $region120: #{_lambda_.16} parent=0
    _
  %s6 = ssub.s32 1, %s4
  %s7 = scalar_select 0, %s6, %s4
  $region1: #{_lambda_.16} parent=0
    #allocation2 [shape = 'u8[36864]{0}', space=vmem, size = 0x9000, scoped, tag = 'input window, operand 1']
    #allocation3 [shape = 'u8[32768]{0}', space=vmem, size = 0x8000, scoped, tag = 'output window, operand 0']
    loop: start=0, step=1, limit=5
    $region2: #{_lambda_.16} parent=1 // loop_pre_header
      _
    $region3: #{_lambda_.16} parent=1 // loop_header
      %s9 = sphi 0, %s13
      %p10 = scmp.ge.s32.totalorder %s9, 5
      %s17 = sphi 0, %s17
      %s19 = sphi 0, %s17
      %s20 = sphi 0, %s19
      %s34 = sphi 0, %s20
      %s40 = sphi 0, %s42
      %s43 = sphi 0, %s40
      %s44 = sphi 0, %s43
      %s60 = sphi 0, %s44
      %s64 = sphi 0, %s64
      %s66 = sphi 0, %s64
      %s67 = sphi 0, %s66
      %s81 = sphi 0, %s67
      %s87 = sphi 0, %s89
      %s90 = sphi 0, %s87
      %s91 = sphi 0, %s90
      %s107 = sphi 0, %s91
    $region4: #{_lambda_.16} parent=1 // loop_header_branch
      %12 = sbr.rel (%p10) target = $region8
    $region5: #{_lambda_.16} parent=1 // loop_body
      %s14 = ssub.s32 %s9, 1
      %s15 = ssub.s32 %s9, 2
      %s16 = sadd.s32 %s9, 1
      %s18 = sadd.s32 %s17, 1
      %p21 = scmp.eq.s32.totalorder %s9, 2
      %p22 = scmp.ne.s32.totalorder %s17, %s19
      %p23 = scmp.eq.s32.totalorder %s9, 0
      %p24 = por %p22, %p23
      %p25 = scmp.ne.s32.totalorder %s17, %s19
      %p26 = scmp.eq.s32.totalorder %s14, 2
      %p27 = por %p25, %p26
      %p28 = scmp.ne.s32.totalorder %s19, %s20
      %p29 = scmp.eq.s32.totalorder %s14, 0
      %p30 = por %p28, %p29
      %p31 = scmp.ne.s32.totalorder %s19, %s20
      %p32 = scmp.eq.s32.totalorder %s15, 2
      %p33 = por %p31, %p32
      %p35 = scmp.ne.s32.totalorder %s20, %s34
      %p36 = scmp.eq.s32.totalorder %s15, 0
      %p37 = por %p35, %p36
      %s38 = ssub.s32 %s9, %s16
      %p39 = scmp.eq.s32.totalorder %s38, 0
      %s41 = sadd.s32 %s40, 1
      %s42 = scalar_select %p39, %s40, %s41
      %p45 = pneg %p39
      %p46 = scmp.eq.s32.totalorder %s9, 2
      %p47 = por %p45, %p46
      %p48 = scmp.ne.s32.totalorder %s40, %s43
      %p49 = scmp.eq.s32.totalorder %s9, 0
      %p50 = por %p48, %p49
      %p51 = scmp.ne.s32.totalorder %s40, %s43
      %p52 = scmp.eq.s32.totalorder %s14, 2
      %p53 = por %p51, %p52
      %p54 = scmp.ne.s32.totalorder %s43, %s44
      %p55 = scmp.eq.s32.totalorder %s14, 0
      %p56 = por %p54, %p55
      %p57 = scmp.ne.s32.totalorder %s43, %s44
      %p58 = scmp.eq.s32.totalorder %s15, 2
      %p59 = por %p57, %p58
      %p61 = scmp.ne.s32.totalorder %s44, %s60
      %p62 = scmp.eq.s32.totalorder %s15, 0
      %p63 = por %p61, %p62
      %s65 = sadd.s32 %s64, 1
      %p68 = scmp.eq.s32.totalorder %s9, 2
      %p69 = scmp.ne.s32.totalorder %s64, %s66
      %p70 = scmp.eq.s32.totalorder %s9, 0
      %p71 = por %p69, %p70
      %p72 = scmp.ne.s32.totalorder %s64, %s66
      %p73 = scmp.eq.s32.totalorder %s14, 2
      %p74 = por %p72, %p73
      %p75 = scmp.ne.s32.totalorder %s66, %s67
      %p76 = scmp.eq.s32.totalorder %s14, 0
      %p77 = por %p75, %p76
      %p78 = scmp.ne.s32.totalorder %s66, %s67
      %p79 = scmp.eq.s32.totalorder %s15, 2
      %p80 = por %p78, %p79
      %p82 = scmp.ne.s32.totalorder %s67, %s81
      %p83 = scmp.eq.s32.totalorder %s15, 0
      %p84 = por %p82, %p83
      %s85 = ssub.s32 %s9, %s16
      %p86 = scmp.eq.s32.totalorder %s85, 0
      %s88 = sadd.s32 %s87, 1
      %s89 = scalar_select %p86, %s87, %s88
      %p92 = pneg %p86
      %p93 = scmp.eq.s32.totalorder %s9, 2
      %p94 = por %p92, %p93
      %p95 = scmp.ne.s32.totalorder %s87, %s90
      %p96 = scmp.eq.s32.totalorder %s9, 0
      %p97 = por %p95, %p96
      %p98 = scmp.ne.s32.totalorder %s87, %s90
      %p99 = scmp.eq.s32.totalorder %s14, 2
      %p100 = por %p98, %p99
      %p101 = scmp.ne.s32.totalorder %s90, %s91
      %p102 = scmp.eq.s32.totalorder %s14, 0
      %p103 = por %p101, %p102
      %p104 = scmp.ne.s32.totalorder %s90, %s91
      %p105 = scmp.eq.s32.totalorder %s15, 2
      %p106 = por %p104, %p105
      %p108 = scmp.ne.s32.totalorder %s91, %s107
      %p109 = scmp.eq.s32.totalorder %s15, 0
      %p110 = por %p108, %p109
      %p111 = scmp.le.s32.totalorder 1, %s9
      %p112 = scmp.lt.s32.totalorder %s9, 4
      %p113 = pnand %p111, %p112
      %p114 = pneg %p113
      // Predicated region
      $region9: #{_lambda_.16} parent=5 // pred_check
        _
      $region10: #{_lambda_.16} parent=5 // pred_check_branch
        %116 = sbr.rel (%p113) target = $region12
      $region11: #{_lambda_.16} parent=5 // pred_region
        %s117 = ssub.s32 %s9, 1
        // Predicated region
        $region13: #{_lambda_.16} parent=11 // pred_check
          %p118 = pneg %p30
        $region14: #{_lambda_.16} parent=11 // pred_check_branch
          %120 = sbr.rel (%p118) target = $region16
        $region15: #{_lambda_.16} parent=11 // pred_region
          _
        $region16: #{_lambda_.16} parent=11 // pred_fallthru
          _
        // Predicated region
        $region17: #{_lambda_.16} parent=11 // pred_check
          %p121 = pneg %p77
        $region18: #{_lambda_.16} parent=11 // pred_check_branch
          %123 = sbr.rel (%p121) target = $region20
        $region19: #{_lambda_.16} parent=11 // pred_region
          _
        $region20: #{_lambda_.16} parent=11 // pred_fallthru
          _
      $region12: #{_lambda_.16} parent=5 // pred_fallthru
        _
      %p124 = scmp.lt.s32.totalorder %s9, 3
      // Predicated region
      $region21: #{_lambda_.16} parent=5 // pred_check
        %p125 = pneg %p124
      $region22: #{_lambda_.16} parent=5 // pred_check_branch
        %127 = sbr.rel (%p125) target = $region24
      $region23: #{_lambda_.16} parent=5 // pred_region
        // Predicated region
        $region25: #{_lambda_.16} parent=23 // pred_check
          %p128 = pneg %p50
        $region26: #{_lambda_.16} parent=23 // pred_check_branch
          %130 = sbr.rel (%p128) target = $region28
        $region27: #{_lambda_.16} parent=23 // pred_region
          %s131 = sand.u32 %s40, 1
          %s132 = sand.u32 %s40, 1
          %s133 = smul.addr %s132, 36
          %s134 = scalar_lea.vmem [#allocation2], %s133
          %s135 = smul.addr %s9, 4
          %s136 = scalar_lea.vmem %s1, %s135
          // Predicated region
          $region29: #{_lambda_.16} parent=27 // pred_check
            _
          $region30: #{_lambda_.16} parent=27 // pred_check_branch
            %138 = sbr.rel (0) target = $region32
          $region31: #{_lambda_.16} parent=27 // pred_region
            // Predicated region
            $region33: #{_lambda_.16} parent=31 // pred_check
              _
            $region34: #{_lambda_.16} parent=31 // pred_check_branch
              %140 = sbr.rel target = $region36
            $region35: #{_lambda_.16} parent=31 // pred_region
              // Predicated region
              $region48: #{_lambda_.16} parent=35 // pred_check
                _
              $region49: #{_lambda_.16} parent=35 // pred_check_branch
                %172 = sbr.rel (0) target = $region51
              $region50: #{_lambda_.16} parent=35 // pred_region
                loop: start=0, step=1, limit=1
                $region52: #{_lambda_.16} parent=50 // loop_pre_header
                  _
                $region53: #{_lambda_.16} parent=50 // loop_header
                  %s174 = sphi 0, %s178
                  %p175 = scmp.ge.s32.totalorder %s174, 1
                  %s179 = sphi %s136, %s136
                  %s180 = sphi %s134, %s134
                $region54: #{_lambda_.16} parent=50 // loop_header_branch
                  %177 = sbr.rel (%p175) target = $region58
                $region55: #{_lambda_.16} parent=50 // loop_body
                  _
                $region56: #{_lambda_.16} parent=50 // loop_footer
                  %s178 = sadd.s32 1, %s174
                $region57: #{_lambda_.16} parent=50 // loop_footer_branch
                  %173 = sbr.rel target = $region53
                $region58: #{_lambda_.16} parent=50 // loop_exit
                  _
                %s182 = ssub.s32 16, 1
                loop: start=0, step=1, limit=1
                $region59: #{_lambda_.16} parent=50 // loop_pre_header
                  _
                $region60: #{_lambda_.16} parent=50 // loop_header
                  %s184 = sphi 0, %s188
                  %p185 = scmp.ge.s32.totalorder %s184, 1
                  %s189 = sphi %s136, %s136
                  %s190 = sphi %s134, %s134
                $region61: #{_lambda_.16} parent=50 // loop_header_branch
                  %187 = sbr.rel (%p185) target = $region65
                $region62: #{_lambda_.16} parent=50 // loop_body
                  %v191 = vld [vmem:[%s189] sm:%s182]
                  %192 = vst [vmem:[%s190] sm:%s182] %v191
                  %v193 = vld [vmem:[%s189 + $0xc] sm:%s182]
                  %194 = vst [vmem:[%s190 + $0x4] sm:%s182] %v193
                  %v195 = vld [vmem:[%s189 + $0x18] sm:%s182]
                  %196 = vst [vmem:[%s190 + $0x8] sm:%s182] %v195
                  %v197 = vld [vmem:[%s189 + $0x24] sm:%s182]
                  %198 = vst [vmem:[%s190 + $0xc] sm:%s182] %v197
                  %v199 = vld [vmem:[%s189 + $0x30] sm:%s182]
                  %200 = vst [vmem:[%s190 + $0x10] sm:%s182] %v199
                  %v201 = vld [vmem:[%s189 + $0x3c] sm:%s182]
                  %202 = vst [vmem:[%s190 + $0x14] sm:%s182] %v201
                  %v203 = vld [vmem:[%s189 + $0x48] sm:%s182]
                  %204 = vst [vmem:[%s190 + $0x18] sm:%s182] %v203
                  %v205 = vld [vmem:[%s189 + $0x54] sm:%s182]
                  %206 = vst [vmem:[%s190 + $0x1c] sm:%s182] %v205
                  %v207 = vld [vmem:[%s189 + $0x60] sm:%s182]
                  %208 = vst [vmem:[%s190 + $0x20] sm:%s182] %v207
                $region63: #{_lambda_.16} parent=50 // loop_footer
                  %s188 = sadd.s32 1, %s184
                $region64: #{_lambda_.16} parent=50 // loop_footer_branch
                  %183 = sbr.rel target = $region60
                $region65: #{_lambda_.16} parent=50 // loop_exit
                  _
              $region51: #{_lambda_.16} parent=35 // pred_fallthru
                _
            $region36: #{_lambda_.16} parent=31 // pred_fallthru
              _
            // Predicated region
            $region37: #{_lambda_.16} parent=31 // pred_check
              _
            $region38: #{_lambda_.16} parent=31 // pred_check_branch
              %142 = sbr.rel (0) target = $region40
            $region39: #{_lambda_.16} parent=31 // pred_region
              %s144 = ssub.s32 16, 1
              loop: start=0, step=1, limit=1
              $region41: #{_lambda_.16} parent=39 // loop_pre_header
                _
              $region42: #{_lambda_.16} parent=39 // loop_header
                %s146 = sphi 0, %s150
                %p147 = scmp.ge.s32.totalorder %s146, 1
                %s151 = sphi %s136, %s136
                %s152 = sphi %s134, %s134
              $region43: #{_lambda_.16} parent=39 // loop_header_branch
                %149 = sbr.rel (%p147) target = $region47
              $region44: #{_lambda_.16} parent=39 // loop_body
                %v153 = vld [vmem:[%s151] sm:%s144]
                %154 = vst [vmem:[%s152] sm:%s144] %v153
                %v155 = vld [vmem:[%s151 + $0xc] sm:%s144]
                %156 = vst [vmem:[%s152 + $0x4] sm:%s144] %v155
                %v157 = vld [vmem:[%s151 + $0x18] sm:%s144]
                %158 = vst [vmem:[%s152 + $0x8] sm:%s144] %v157
                %v159 = vld [vmem:[%s151 + $0x24] sm:%s144]
                %160 = vst [vmem:[%s152 + $0xc] sm:%s144] %v159
                %v161 = vld [vmem:[%s151 + $0x30] sm:%s144]
                %162 = vst [vmem:[%s152 + $0x10] sm:%s144] %v161
                %v163 = vld [vmem:[%s151 + $0x3c] sm:%s144]
                %164 = vst [vmem:[%s152 + $0x14] sm:%s144] %v163
                %v165 = vld [vmem:[%s151 + $0x48] sm:%s144]
                %166 = vst [vmem:[%s152 + $0x18] sm:%s144] %v165
                %v167 = vld [vmem:[%s151 + $0x54] sm:%s144]
                %168 = vst [vmem:[%s152 + $0x1c] sm:%s144] %v167
                %v169 = vld [vmem:[%s151 + $0x60] sm:%s144]
                %170 = vst [vmem:[%s152 + $0x20] sm:%s144] %v169
              $region45: #{_lambda_.16} parent=39 // loop_footer
                %s150 = sadd.s32 1, %s146
              $region46: #{_lambda_.16} parent=39 // loop_footer_branch
                %145 = sbr.rel target = $region42
              $region47: #{_lambda_.16} parent=39 // loop_exit
                _
            $region40: #{_lambda_.16} parent=31 // pred_fallthru
              _
          $region32: #{_lambda_.16} parent=27 // pred_fallthru
            _
          %209 = vnop
        $region28: #{_lambda_.16} parent=23 // pred_fallthru
          _
      $region24: #{_lambda_.16} parent=5 // pred_fallthru
        _
      %p210 = scmp.le.s32.totalorder 1, %s9
      %p211 = scmp.lt.s32.totalorder %s9, 4
      %p212 = pnand %p210, %p211
      %p213 = pneg %p212
      // Predicated region
      $region66: #{_lambda_.16} parent=5 // pred_check
        _
      $region67: #{_lambda_.16} parent=5 // pred_check_branch
        %215 = sbr.rel (%p212) target = $region69
      $region68: #{_lambda_.16} parent=5 // pred_region
        %s216 = ssub.s32 %s9, 1
        %s217 = sand.u32 %s43, 1
        %s218 = sand.u32 %s43, 1
        %s219 = smul.addr %s218, 36
        %s220 = scalar_lea.vmem [#allocation2], %s219
        // Predicated region
        $region70: #{_lambda_.16} parent=68 // pred_check
          %p221 = pneg %p56
        $region71: #{_lambda_.16} parent=68 // pred_check_branch
          %223 = sbr.rel (%p221) target = $region73
        $region72: #{_lambda_.16} parent=68 // pred_region
          _
        $region73: #{_lambda_.16} parent=68 // pred_fallthru
          _
        %p224 = pneg %p30
        %p225 = pneg %p27
        %s226 = sand.u32 %s43, 1
        %s227 = sand.u32 %s43, 1
        %s228 = smul.addr %s227, 36
        %s229 = scalar_lea.vmem [#allocation2], %s228
        %p230 = pneg %p56
        %p231 = pneg %p53
        %p232 = pneg %p77
        %p233 = pneg %p74
        %p234 = pneg %p103
        %p235 = pneg %p100
        %s236 = sand.u32 %s90, 1
        %s237 = sand.u32 %s90, 1
        %s238 = smul.addr %s237, 32
        %s239 = scalar_lea.vmem [#allocation3], %s238
        %v241 = vld [vmem:[%s0] sm:$0xf]
        %v242 = vld [vmem:[%s0 + $0x4] sm:$0xf]
        %v243 = vld [vmem:[%s0 + $0x8] sm:$0xf]
        %v244 = vld [vmem:[%s0 + $0xc] sm:$0xf]
        %v245 = vld [vmem:[%s220] sm:$0xf]
        %v246 = vld [vmem:[%s220 + $0x4] sm:$0xf]
        %v247 = vld [vmem:[%s220 + $0x8] sm:$0xf]
        %v248 = vld [vmem:[%s220 + $0xc] sm:$0xf]
        %v249 = vld [vmem:[%s220 + $0x10] sm:$0xf]
        %v250 = vld [vmem:[%s220 + $0x14] sm:$0xf]
        %v251 = vld [vmem:[%s220 + $0x18] sm:$0xf]
        %v252 = vld [vmem:[%s220 + $0x1c] sm:$0xf]
        %v253 = vld [vmem:[%s220 + $0x20] sm:$0xf]
        %v254 = vld [vmem:[%s2] sm:$0xff]
        %v255 = vld [vmem:[%s2 + $0x8] sm:$0xff]
        %v256 = vld [vmem:[%s2 + $0x10] sm:$0xff]
        %v257 = vld [vmem:[%s2 + $0x18] sm:$0xff]
        %259 = vset.pattern.permute.xlu0 0
        %260 = vperm.xlu0 %259, %v254
        %v261 = vpop.permute.xlu0 %260
        %264 = vset.pattern.permute.xlu0 0
        %265 = vperm.xlu0 %264, %v255
        %v266 = vpop.permute.xlu0 %265
        %269 = vset.pattern.permute.xlu0 0
        %270 = vperm.xlu0 %269, %v256
        %v271 = vpop.permute.xlu0 %270
        %274 = vset.pattern.permute.xlu0 0
        %275 = vperm.xlu0 %274, %v257
        %v276 = vpop.permute.xlu0 %275
        %v282 = vunpack.c.l.b16 %v241
        %v283 = vunpack.c.l.b16 %v242
        %v284 = vunpack.c.l.b16 %v243
        %v285 = vunpack.c.l.b16 %v244
        %v286 = vpack.c.b16 %v283, %v282
        %v287 = vpack.c.b16 %v285, %v284
        %v297 = vunpack.c.l.b16 %v245
        %v298 = vunpack.c.l.b16 %v246
        %v299 = vunpack.c.l.b16 %v247
        %v300 = vunpack.c.l.b16 %v248
        %v301 = vunpack.c.l.b16 %v249
        %v302 = vunpack.c.l.b16 %v250
        %v303 = vunpack.c.l.b16 %v251
        %v304 = vunpack.c.l.b16 %v252
        %v305 = vunpack.c.l.b16 %v253
        %v306 = vpack.c.b16 %v298, %v297
        %v307 = vpack.c.b16 %v300, %v299
        %v308 = vpack.c.b16 %v302, %v301
        %v309 = vpack.c.b16 %v304, %v303
        %v310 = vpack.c.b16 %v305, %v305
        %vm315 = vcmask 588800
        %v317 = vsel %vm315, %v286, 0
        %v320 = vsel %vm315, %v287, 0
        %vm322 = vcmask 1043456
        %v324 = vsel %vm322, %v310, 0
        %326 = vmatprep.subr.bf16.mxu0 0
        %327 = vmatpush1.bf16.msra.mxu0 0
        %328 = vmatprep.subr.bf16.mxu0 0
        %329 = vmatpush1.bf16.msra.mxu0 0
        %330 = vmatprep.subr.bf16.mxu0 0
        %331 = vmatpush1.bf16.msra.mxu0 0
        %332 = vmatprep.subr.bf16.mxu0 0
        %333 = vmatpush1.bf16.msra.mxu0 %v324
        %334 = vmatprep.subr.bf16.mxu0 0
        %335 = vmatpush1.bf16.msra.mxu0 %v309
        %336 = vmatprep.subr.bf16.mxu0 0
        %337 = vmatpush1.bf16.msra.mxu0 %v308
        %338 = vmatprep.subr.bf16.mxu0 0
        %339 = vmatpush1.bf16.msra.mxu0 %v307
        %340 = vmatprep.subr.bf16.mxu0 0
        %341 = vmatpush1.bf16.msra.mxu0 %v306
        %342 = vmatprep.subr.bf16.mxu0 0
        %343 = vmatpush2.bf16.msra.mxu0 0
        %344 = vmatprep.subr.bf16.mxu0 0
        %345 = vmatpush2.bf16.msra.mxu0 0
        %346 = vmatprep.subr.bf16.mxu0 0
        %347 = vmatpush2.bf16.msra.mxu0 0
        %348 = vmatprep.subr.bf16.mxu0 0
        %349 = vmatpush2.bf16.msra.mxu0 0
        %350 = vmatprep.subr.bf16.mxu0 0
        %351 = vmatpush2.bf16.msra.mxu0 0
        %352 = vmatprep.subr.bf16.mxu0 0
        %353 = vmatpush2.bf16.msra.mxu0 0
        %354 = vmatprep.subr.bf16.mxu0 0
        %355 = vmatpush2.bf16.msra.mxu0 0
        %356 = vmatprep.subr.bf16.mxu0 0
        %357 = vmatpush2.bf16.msra.mxu0 0
        %358 = vmatprep.mubr.bf16.mxu0 0
        %359 = vmatmul.mubr.bf16.gmra.mxu0 %v317
        %v360 = vpop.f32.mrf.mxu0
        %v361 = vadd.f32 %v261, %v360
        %v362 = vpop.f32.mrf.mxu0
        %v363 = vpop.f32.mrf.mxu0
        %v364 = vadd.f32 %v266, %v363
        %v365 = vpop.f32.mrf.mxu0
        %366 = vmatprep.mubr.bf16.mxu0 0
        %367 = vmatmul.mubr.bf16.gmra.mxu0 %v320
        %v368 = vpop.f32.mrf.mxu0
        %v369 = vadd.f32 %v271, %v368
        %v370 = vpop.f32.mrf.mxu0
        %v371 = vpop.f32.mrf.mxu0
        %v372 = vadd.f32 %v276, %v371
        %v373 = vpop.f32.mrf.mxu0
        %374 = vdwg.mxu0
        %375 = vst [vmem:[%s239] sm:$0xff] %v361
        %376 = vst [vmem:[%s239 + $0x8] sm:$0xff] %v364
        %377 = vst [vmem:[%s239 + $0x10] sm:$0xff] %v369
        %378 = vst [vmem:[%s239 + $0x18] sm:$0xff] %v372
        %s379 = sand.u32 %s90, 1
        %s380 = sand.u32 %s90, 1
        %s381 = smul.addr %s380, 32
        %s382 = scalar_lea.vmem [#allocation3], %s381
        // Predicated region
        $region74: #{_lambda_.16} parent=68 // pred_check
          %p383 = pneg %p100
        $region75: #{_lambda_.16} parent=68 // pred_check_branch
          %385 = sbr.rel (%p383) target = $region77
        $region76: #{_lambda_.16} parent=68 // pred_region
          %s386 = smul.addr %s14, 8
          %s387 = scalar_lea.vmem %s3, %s386
          // Predicated region
          $region78: #{_lambda_.16} parent=76 // pred_check
            _
          $region79: #{_lambda_.16} parent=76 // pred_check_branch
            %389 = sbr.rel (0) target = $region81
          $region80: #{_lambda_.16} parent=76 // pred_region
            // Predicated region
            $region82: #{_lambda_.16} parent=80 // pred_check
              _
            $region83: #{_lambda_.16} parent=80 // pred_check_branch
              %391 = sbr.rel (0) target = $region85
            $region84: #{_lambda_.16} parent=80 // pred_region
              // Predicated region
              $region97: #{_lambda_.16} parent=84 // pred_check
                _
              $region98: #{_lambda_.16} parent=84 // pred_check_branch
                %413 = sbr.rel (0) target = $region100
              $region99: #{_lambda_.16} parent=84 // pred_region
                loop: start=0, step=1, limit=1
                $region101: #{_lambda_.16} parent=99 // loop_pre_header
                  _
                $region102: #{_lambda_.16} parent=99 // loop_header
                  %s415 = sphi 0, %s419
                  %p416 = scmp.ge.s32.totalorder %s415, 1
                  %s420 = sphi %s382, %s382
                  %s421 = sphi %s387, %s387
                $region103: #{_lambda_.16} parent=99 // loop_header_branch
                  %418 = sbr.rel (%p416) target = $region107
                $region104: #{_lambda_.16} parent=99 // loop_body
                  %v422 = vld [vmem:[%s420] sm:$0xff]
                  %423 = vst [vmem:[%s421] sm:$0xff] %v422
                  %v424 = vld [vmem:[%s420 + $0x8] sm:$0xff]
                  %425 = vst [vmem:[%s421 + $0x18] sm:$0xff] %v424
                  %v426 = vld [vmem:[%s420 + $0x10] sm:$0xff]
                  %427 = vst [vmem:[%s421 + $0x30] sm:$0xff] %v426
                  %v428 = vld [vmem:[%s420 + $0x18] sm:$0xff]
                  %429 = vst [vmem:[%s421 + $0x48] sm:$0xff] %v428
                $region105: #{_lambda_.16} parent=99 // loop_footer
                  %s419 = sadd.s32 1, %s415
                $region106: #{_lambda_.16} parent=99 // loop_footer_branch
                  %414 = sbr.rel target = $region102
                $region107: #{_lambda_.16} parent=99 // loop_exit
                  _
              $region100: #{_lambda_.16} parent=84 // pred_fallthru
                _
              // Predicated region
              $region108: #{_lambda_.16} parent=84 // pred_check
                _
              $region109: #{_lambda_.16} parent=84 // pred_check_branch
                %431 = sbr.rel target = $region111
              $region110: #{_lambda_.16} parent=84 // pred_region
                _
              $region111: #{_lambda_.16} parent=84 // pred_fallthru
                _
            $region85: #{_lambda_.16} parent=80 // pred_fallthru
              _
            // Predicated region
            $region86: #{_lambda_.16} parent=80 // pred_check
              _
            $region87: #{_lambda_.16} parent=80 // pred_check_branch
              %393 = sbr.rel target = $region89
            $region88: #{_lambda_.16} parent=80 // pred_region
              %s395 = ssub.s32 256, 1
              loop: start=0, step=1, limit=1
              $region90: #{_lambda_.16} parent=88 // loop_pre_header
                _
              $region91: #{_lambda_.16} parent=88 // loop_header
                %s397 = sphi 0, %s401
                %p398 = scmp.ge.s32.totalorder %s397, 1
                %s402 = sphi %s382, %s382
                %s403 = sphi %s387, %s387
              $region92: #{_lambda_.16} parent=88 // loop_header_branch
                %400 = sbr.rel (%p398) target = $region96
              $region93: #{_lambda_.16} parent=88 // loop_body
                %v404 = vld [vmem:[%s402] sm:%s395]
                %405 = vst [vmem:[%s403] sm:%s395] %v404
                %v406 = vld [vmem:[%s402 + $0x8] sm:%s395]
                %407 = vst [vmem:[%s403 + $0x18] sm:%s395] %v406
                %v408 = vld [vmem:[%s402 + $0x10] sm:%s395]
                %409 = vst [vmem:[%s403 + $0x30] sm:%s395] %v408
                %v410 = vld [vmem:[%s402 + $0x18] sm:%s395]
                %411 = vst [vmem:[%s403 + $0x48] sm:%s395] %v410
              $region94: #{_lambda_.16} parent=88 // loop_footer
                %s401 = sadd.s32 1, %s397
              $region95: #{_lambda_.16} parent=88 // loop_footer_branch
                %396 = sbr.rel target = $region91
              $region96: #{_lambda_.16} parent=88 // loop_exit
                _
            $region89: #{_lambda_.16} parent=80 // pred_fallthru
              _
          $region81: #{_lambda_.16} parent=76 // pred_fallthru
            _
          %432 = vnop
        $region77: #{_lambda_.16} parent=68 // pred_fallthru
          _
      $region69: #{_lambda_.16} parent=5 // pred_fallthru
        _
      %p433 = scmp.le.s32.totalorder 2, %s9
      // Predicated region
      $region112: #{_lambda_.16} parent=5 // pred_check
        %p434 = pneg %p433
      $region113: #{_lambda_.16} parent=5 // pred_check_branch
        %436 = sbr.rel (%p434) target = $region115
      $region114: #{_lambda_.16} parent=5 // pred_region
        %s437 = ssub.s32 %s9, 2
        // Predicated region
        $region116: #{_lambda_.16} parent=114 // pred_check
          %p438 = pneg %p106
        $region117: #{_lambda_.16} parent=114 // pred_check_branch
          %440 = sbr.rel (%p438) target = $region119
        $region118: #{_lambda_.16} parent=114 // pred_region
          %s441 = sand.u32 %s91, 1
          %s442 = sand.u32 %s91, 1
          %s443 = smul.addr %s442, 32
          %s444 = scalar_lea.vmem [#allocation3], %s443
        $region119: #{_lambda_.16} parent=114 // pred_fallthru
          _
      $region115: #{_lambda_.16} parent=5 // pred_fallthru
        _
    $region6: #{_lambda_.16} parent=1 // loop_footer
      %s13 = sadd.s32 1, %s9
    $region7: #{_lambda_.16} parent=1 // loop_footer_branch
      %8 = sbr.rel target = $region3
    $region8: #{_lambda_.16} parent=1 // loop_exit
      _

// kernel: _lambda_.17
$region0: #{_lambda_.17}
  #allocation0 [shape = 'u32[]', space=smem, size = 0x4, offset = 0x4, fixed_abs, tag = 'smem constant byte address 0x4 - core index']
  #allocation1 [shape = 'u32[144,128]{1,0:T(1,128)}', space=vmem, size = 0x12000, scoped, tag = 'internal scratch']
  %s0 = inlined_call_operand.vmem [shape: bf16[3,72], index: 0, kind: input, shape index: {}]
  %s1 = inlined_call_operand.vmem [shape: bf16[72,1152], index: 1, kind: input, shape index: {}]
  %s2 = inlined_call_operand.vmem [shape: f32[3,1], index: 2, kind: input, shape index: {}]
  %s3 = inlined_call_operand.vmem [shape: f32[3,1152], index: 3, kind: output, shape index: {}]
  %s4 = sld [smem:[#allocation0]]
  $region86: #{_lambda_.17} parent=0
    _
  %s6 = ssub.s32 1, %s4
  %s7 = scalar_select 0, %s6, %s4
  $region1: #{_lambda_.17} parent=0
    #allocation2 [shape = 'u8[36864]{0}', space=vmem, size = 0x9000, scoped, tag = 'input window, operand 1']
    loop: start=0, step=1, limit=11
    $region2: #{_lambda_.17} parent=1 // loop_pre_header
      _
    $region3: #{_lambda_.17} parent=1 // loop_header
      %s9 = sphi 0, %s13
      %p10 = scmp.ge.s32.totalorder %s9, 11
      %s17 = sphi 0, %s17
      %s19 = sphi 0, %s17
      %s20 = sphi 0, %s19
      %s34 = sphi 0, %s20
      %s40 = sphi 0, %s42
      %s43 = sphi 0, %s40
      %s44 = sphi 0, %s43
      %s60 = sphi 0, %s44
      %s64 = sphi 0, %s64
      %s66 = sphi 0, %s64
      %s67 = sphi 0, %s66
      %s81 = sphi 0, %s67
      %s87 = sphi 0, %s89
      %s90 = sphi 0, %s87
      %s91 = sphi 0, %s90
      %s107 = sphi 0, %s91
    $region4: #{_lambda_.17} parent=1 // loop_header_branch
      %12 = sbr.rel (%p10) target = $region8
    $region5: #{_lambda_.17} parent=1 // loop_body
      %s14 = ssub.s32 %s9, 1
      %s15 = ssub.s32 %s9, 2
      %s16 = sadd.s32 %s9, 1
      %s18 = sadd.s32 %s17, 1
      %p21 = scmp.eq.s32.totalorder %s9, 8
      %p22 = scmp.ne.s32.totalorder %s17, %s19
      %p23 = scmp.eq.s32.totalorder %s9, 0
      %p24 = por %p22, %p23
      %p25 = scmp.ne.s32.totalorder %s17, %s19
      %p26 = scmp.eq.s32.totalorder %s14, 8
      %p27 = por %p25, %p26
      %p28 = scmp.ne.s32.totalorder %s19, %s20
      %p29 = scmp.eq.s32.totalorder %s14, 0
      %p30 = por %p28, %p29
      %p31 = scmp.ne.s32.totalorder %s19, %s20
      %p32 = scmp.eq.s32.totalorder %s15, 8
      %p33 = por %p31, %p32
      %p35 = scmp.ne.s32.totalorder %s20, %s34
      %p36 = scmp.eq.s32.totalorder %s15, 0
      %p37 = por %p35, %p36
      %s38 = ssub.s32 %s9, %s16
      %p39 = scmp.eq.s32.totalorder %s38, 0
      %s41 = sadd.s32 %s40, 1
      %s42 = scalar_select %p39, %s40, %s41
      %p45 = pneg %p39
      %p46 = scmp.eq.s32.totalorder %s9, 8
      %p47 = por %p45, %p46
      %p48 = scmp.ne.s32.totalorder %s40, %s43
      %p49 = scmp.eq.s32.totalorder %s9, 0
      %p50 = por %p48, %p49
      %p51 = scmp.ne.s32.totalorder %s40, %s43
      %p52 = scmp.eq.s32.totalorder %s14, 8
      %p53 = por %p51, %p52
      %p54 = scmp.ne.s32.totalorder %s43, %s44
      %p55 = scmp.eq.s32.totalorder %s14, 0
      %p56 = por %p54, %p55
      %p57 = scmp.ne.s32.totalorder %s43, %s44
      %p58 = scmp.eq.s32.totalorder %s15, 8
      %p59 = por %p57, %p58
      %p61 = scmp.ne.s32.totalorder %s44, %s60
      %p62 = scmp.eq.s32.totalorder %s15, 0
      %p63 = por %p61, %p62
      %s65 = sadd.s32 %s64, 1
      %p68 = scmp.eq.s32.totalorder %s9, 8
      %p69 = scmp.ne.s32.totalorder %s64, %s66
      %p70 = scmp.eq.s32.totalorder %s9, 0
      %p71 = por %p69, %p70
      %p72 = scmp.ne.s32.totalorder %s64, %s66
      %p73 = scmp.eq.s32.totalorder %s14, 8
      %p74 = por %p72, %p73
      %p75 = scmp.ne.s32.totalorder %s66, %s67
      %p76 = scmp.eq.s32.totalorder %s14, 0
      %p77 = por %p75, %p76
      %p78 = scmp.ne.s32.totalorder %s66, %s67
      %p79 = scmp.eq.s32.totalorder %s15, 8
      %p80 = por %p78, %p79
      %p82 = scmp.ne.s32.totalorder %s67, %s81
      %p83 = scmp.eq.s32.totalorder %s15, 0
      %p84 = por %p82, %p83
      %s85 = ssub.s32 %s9, %s16
      %p86 = scmp.eq.s32.totalorder %s85, 0
      %s88 = sadd.s32 %s87, 1
      %s89 = scalar_select %p86, %s87, %s88
      %p92 = pneg %p86
      %p93 = scmp.eq.s32.totalorder %s9, 8
      %p94 = por %p92, %p93
      %p95 = scmp.ne.s32.totalorder %s87, %s90
      %p96 = scmp.eq.s32.totalorder %s9, 0
      %p97 = por %p95, %p96
      %p98 = scmp.ne.s32.totalorder %s87, %s90
      %p99 = scmp.eq.s32.totalorder %s14, 8
      %p100 = por %p98, %p99
      %p101 = scmp.ne.s32.totalorder %s90, %s91
      %p102 = scmp.eq.s32.totalorder %s14, 0
      %p103 = por %p101, %p102
      %p104 = scmp.ne.s32.totalorder %s90, %s91
      %p105 = scmp.eq.s32.totalorder %s15, 8
      %p106 = por %p104, %p105
      %p108 = scmp.ne.s32.totalorder %s91, %s107
      %p109 = scmp.eq.s32.totalorder %s15, 0
      %p110 = por %p108, %p109
      %p111 = scmp.le.s32.totalorder 1, %s9
      %p112 = scmp.lt.s32.totalorder %s9, 10
      %p113 = pnand %p111, %p112
      %p114 = pneg %p113
      // Predicated region
      $region9: #{_lambda_.17} parent=5 // pred_check
        _
      $region10: #{_lambda_.17} parent=5 // pred_check_branch
        %116 = sbr.rel (%p113) target = $region12
      $region11: #{_lambda_.17} parent=5 // pred_region
        %s117 = ssub.s32 %s9, 1
        // Predicated region
        $region13: #{_lambda_.17} parent=11 // pred_check
          %p118 = pneg %p30
        $region14: #{_lambda_.17} parent=11 // pred_check_branch
          %120 = sbr.rel (%p118) target = $region16
        $region15: #{_lambda_.17} parent=11 // pred_region
          _
        $region16: #{_lambda_.17} parent=11 // pred_fallthru
          _
        // Predicated region
        $region17: #{_lambda_.17} parent=11 // pred_check
          %p121 = pneg %p77
        $region18: #{_lambda_.17} parent=11 // pred_check_branch
          %123 = sbr.rel (%p121) target = $region20
        $region19: #{_lambda_.17} parent=11 // pred_region
          _
        $region20: #{_lambda_.17} parent=11 // pred_fallthru
          _
      $region12: #{_lambda_.17} parent=5 // pred_fallthru
        _
      %p124 = scmp.lt.s32.totalorder %s9, 9
      // Predicated region
      $region21: #{_lambda_.17} parent=5 // pred_check
        %p125 = pneg %p124
      $region22: #{_lambda_.17} parent=5 // pred_check_branch
        %127 = sbr.rel (%p125) target = $region24
      $region23: #{_lambda_.17} parent=5 // pred_region
        // Predicated region
        $region25: #{_lambda_.17} parent=23 // pred_check
          %p128 = pneg %p50
        $region26: #{_lambda_.17} parent=23 // pred_check_branch
          %130 = sbr.rel (%p128) target = $region28
        $region27: #{_lambda_.17} parent=23 // pred_region
          %s131 = sand.u32 %s40, 1
          %s132 = sand.u32 %s40, 1
          %s133 = smul.addr %s132, 36
          %s134 = scalar_lea.vmem [#allocation2], %s133
          %s135 = smul.addr %s9, 4
          %s136 = scalar_lea.vmem %s1, %s135
          // Predicated region
          $region29: #{_lambda_.17} parent=27 // pred_check
            _
          $region30: #{_lambda_.17} parent=27 // pred_check_branch
            %138 = sbr.rel (0) target = $region32
          $region31: #{_lambda_.17} parent=27 // pred_region
            // Predicated region
            $region33: #{_lambda_.17} parent=31 // pred_check
              _
            $region34: #{_lambda_.17} parent=31 // pred_check_branch
              %140 = sbr.rel target = $region36
            $region35: #{_lambda_.17} parent=31 // pred_region
              // Predicated region
              $region48: #{_lambda_.17} parent=35 // pred_check
                _
              $region49: #{_lambda_.17} parent=35 // pred_check_branch
                %172 = sbr.rel (0) target = $region51
              $region50: #{_lambda_.17} parent=35 // pred_region
                loop: start=0, step=1, limit=1
                $region52: #{_lambda_.17} parent=50 // loop_pre_header
                  _
                $region53: #{_lambda_.17} parent=50 // loop_header
                  %s174 = sphi 0, %s178
                  %p175 = scmp.ge.s32.totalorder %s174, 1
                  %s179 = sphi %s136, %s136
                  %s180 = sphi %s134, %s134
                $region54: #{_lambda_.17} parent=50 // loop_header_branch
                  %177 = sbr.rel (%p175) target = $region58
                $region55: #{_lambda_.17} parent=50 // loop_body
                  _
                $region56: #{_lambda_.17} parent=50 // loop_footer
                  %s178 = sadd.s32 1, %s174
                $region57: #{_lambda_.17} parent=50 // loop_footer_branch
                  %173 = sbr.rel target = $region53
                $region58: #{_lambda_.17} parent=50 // loop_exit
                  _
                %s182 = ssub.s32 16, 1
                loop: start=0, step=1, limit=1
                $region59: #{_lambda_.17} parent=50 // loop_pre_header
                  _
                $region60: #{_lambda_.17} parent=50 // loop_header
                  %s184 = sphi 0, %s188
                  %p185 = scmp.ge.s32.totalorder %s184, 1
                  %s189 = sphi %s136, %s136
                  %s190 = sphi %s134, %s134
                $region61: #{_lambda_.17} parent=50 // loop_header_branch
                  %187 = sbr.rel (%p185) target = $region65
                $region62: #{_lambda_.17} parent=50 // loop_body
                  %v191 = vld [vmem:[%s189] sm:%s182]
                  %192 = vst [vmem:[%s190] sm:%s182] %v191
                  %v193 = vld [vmem:[%s189 + $0x24] sm:%s182]
                  %194 = vst [vmem:[%s190 + $0x4] sm:%s182] %v193
                  %v195 = vld [vmem:[%s189 + $0x48] sm:%s182]
                  %196 = vst [vmem:[%s190 + $0x8] sm:%s182] %v195
                  %v197 = vld [vmem:[%s189 + $0x6c] sm:%s182]
                  %198 = vst [vmem:[%s190 + $0xc] sm:%s182] %v197
                  %v199 = vld [vmem:[%s189 + $0x90] sm:%s182]
                  %200 = vst [vmem:[%s190 + $0x10] sm:%s182] %v199
                  %v201 = vld [vmem:[%s189 + $0xb4] sm:%s182]
                  %202 = vst [vmem:[%s190 + $0x14] sm:%s182] %v201
                  %v203 = vld [vmem:[%s189 + $0xd8] sm:%s182]
                  %204 = vst [vmem:[%s190 + $0x18] sm:%s182] %v203
                  %v205 = vld [vmem:[%s189 + $0xfc] sm:%s182]
                  %206 = vst [vmem:[%s190 + $0x1c] sm:%s182] %v205
                  %v207 = vld [vmem:[%s189 + $0x120] sm:%s182]
                  %208 = vst [vmem:[%s190 + $0x20] sm:%s182] %v207
                $region63: #{_lambda_.17} parent=50 // loop_footer
                  %s188 = sadd.s32 1, %s184
                $region64: #{_lambda_.17} parent=50 // loop_footer_branch
                  %183 = sbr.rel target = $region60
                $region65: #{_lambda_.17} parent=50 // loop_exit
                  _
              $region51: #{_lambda_.17} parent=35 // pred_fallthru
                _
            $region36: #{_lambda_.17} parent=31 // pred_fallthru
              _
            // Predicated region
            $region37: #{_lambda_.17} parent=31 // pred_check
              _
            $region38: #{_lambda_.17} parent=31 // pred_check_branch
              %142 = sbr.rel (0) target = $region40
            $region39: #{_lambda_.17} parent=31 // pred_region
              %s144 = ssub.s32 16, 1
              loop: start=0, step=1, limit=1
              $region41: #{_lambda_.17} parent=39 // loop_pre_header
                _
              $region42: #{_lambda_.17} parent=39 // loop_header
                %s146 = sphi 0, %s150
                %p147 = scmp.ge.s32.totalorder %s146, 1
                %s151 = sphi %s136, %s136
                %s152 = sphi %s134, %s134
              $region43: #{_lambda_.17} parent=39 // loop_header_branch
                %149 = sbr.rel (%p147) target = $region47
              $region44: #{_lambda_.17} parent=39 // loop_body
                %v153 = vld [vmem:[%s151] sm:%s144]
                %154 = vst [vmem:[%s152] sm:%s144] %v153
                %v155 = vld [vmem:[%s151 + $0x24] sm:%s144]
                %156 = vst [vmem:[%s152 + $0x4] sm:%s144] %v155
                %v157 = vld [vmem:[%s151 + $0x48] sm:%s144]
                %158 = vst [vmem:[%s152 + $0x8] sm:%s144] %v157
                %v159 = vld [vmem:[%s151 + $0x6c] sm:%s144]
                %160 = vst [vmem:[%s152 + $0xc] sm:%s144] %v159
                %v161 = vld [vmem:[%s151 + $0x90] sm:%s144]
                %162 = vst [vmem:[%s152 + $0x10] sm:%s144] %v161
                %v163 = vld [vmem:[%s151 + $0xb4] sm:%s144]
                %164 = vst [vmem:[%s152 + $0x14] sm:%s144] %v163
                %v165 = vld [vmem:[%s151 + $0xd8] sm:%s144]
                %166 = vst [vmem:[%s152 + $0x18] sm:%s144] %v165
                %v167 = vld [vmem:[%s151 + $0xfc] sm:%s144]
                %168 = vst [vmem:[%s152 + $0x1c] sm:%s144] %v167
                %v169 = vld [vmem:[%s151 + $0x120] sm:%s144]
                %170 = vst [vmem:[%s152 + $0x20] sm:%s144] %v169
              $region45: #{_lambda_.17} parent=39 // loop_footer
                %s150 = sadd.s32 1, %s146
              $region46: #{_lambda_.17} parent=39 // loop_footer_branch
                %145 = sbr.rel target = $region42
              $region47: #{_lambda_.17} parent=39 // loop_exit
                _
            $region40: #{_lambda_.17} parent=31 // pred_fallthru
              _
          $region32: #{_lambda_.17} parent=27 // pred_fallthru
            _
          %209 = vnop
        $region28: #{_lambda_.17} parent=23 // pred_fallthru
          _
      $region24: #{_lambda_.17} parent=5 // pred_fallthru
        _
      %p210 = scmp.le.s32.totalorder 1, %s9
      %p211 = scmp.lt.s32.totalorder %s9, 10
      %p212 = pnand %p210, %p211
      %p213 = pneg %p212
      // Predicated region
      $region66: #{_lambda_.17} parent=5 // pred_check
        _
      $region67: #{_lambda_.17} parent=5 // pred_check_branch
        %215 = sbr.rel (%p212) target = $region69
      $region68: #{_lambda_.17} parent=5 // pred_region
        %s216 = ssub.s32 %s9, 1
        %s217 = sand.u32 %s43, 1
        %s218 = sand.u32 %s43, 1
        %s219 = smul.addr %s218, 36
        %s220 = scalar_lea.vmem [#allocation2], %s219
        // Predicated region
        $region70: #{_lambda_.17} parent=68 // pred_check
          %p221 = pneg %p56
        $region71: #{_lambda_.17} parent=68 // pred_check_branch
          %223 = sbr.rel (%p221) target = $region73
        $region72: #{_lambda_.17} parent=68 // pred_region
          _
        $region73: #{_lambda_.17} parent=68 // pred_fallthru
          _
        %p224 = pneg %p30
        %p225 = pneg %p27
        %s226 = sand.u32 %s43, 1
        %s227 = sand.u32 %s43, 1
        %s228 = smul.addr %s227, 36
        %s229 = scalar_lea.vmem [#allocation2], %s228
        %p230 = pneg %p56
        %p231 = pneg %p53
        %p232 = pneg %p77
        %p233 = pneg %p74
        %p234 = pneg %p103
        %p235 = pneg %p100
        %p236 = scmp.lt.s32.totalorder %s14, 8
        %s237 = scalar_select %p236, %s14, 8
        %s238 = smul.addr %s237, 4
        %s239 = scalar_lea.vmem %s3, %s238
        %p240 = scmp.lt.s32.totalorder %s14, 8
        %s241 = scalar_select %p240, %s14, 8
        %s242 = smul.addr %s241, 4
        %s243 = scalar_lea.vmem %s3, %s242
        %v245 = vld [vmem:[%s0] sm:$0x3]
        %v246 = vld [vmem:[%s220] sm:$0xf]
        %v247 = vld [vmem:[%s220 + $0x4] sm:$0xf]
        %v248 = vld [vmem:[%s220 + $0x8] sm:$0xf]
        %v249 = vld [vmem:[%s220 + $0xc] sm:$0xf]
        %v250 = vld [vmem:[%s220 + $0x10] sm:$0xf]
        %v251 = vld [vmem:[%s220 + $0x14] sm:$0xf]
        %v252 = vld [vmem:[%s220 + $0x18] sm:$0xf]
        %v253 = vld [vmem:[%s220 + $0x1c] sm:$0xf]
        %v254 = vld [vmem:[%s220 + $0x20] sm:$0xf]
        %v255 = vld [vmem:[%s2] sm:$0x7]
        %257 = vset.pattern.permute.xlu0 0
        %258 = vperm.xlu0 %257, %v255
        %v259 = vpop.permute.xlu0 %258
        %v270 = vunpack.c.l.b16 %v246
        %v271 = vunpack.c.l.b16 %v247
        %v272 = vunpack.c.l.b16 %v248
        %v273 = vunpack.c.l.b16 %v249
        %v274 = vunpack.c.l.b16 %v250
        %v275 = vunpack.c.l.b16 %v251
        %v276 = vunpack.c.l.b16 %v252
        %v277 = vunpack.c.l.b16 %v253
        %v278 = vunpack.c.l.b16 %v254
        %v279 = vpack.c.b16 %v271, %v270
        %v280 = vpack.c.b16 %v273, %v272
        %v281 = vpack.c.b16 %v275, %v274
        %v282 = vpack.c.b16 %v277, %v276
        %v283 = vpack.c.b16 %v278, %v278
        %vm288 = vcmask 588800
        %v290 = vsel %vm288, %v245, 0
        %vm292 = vcmask 1043456
        %v294 = vsel %vm292, %v283, 0
        %296 = vmatprep.subr.bf16.mxu0 0
        %297 = vmatpush1.bf16.msra.mxu0 0
        %298 = vmatprep.subr.bf16.mxu0 0
        %299 = vmatpush1.bf16.msra.mxu0 0
        %300 = vmatprep.subr.bf16.mxu0 0
        %301 = vmatpush1.bf16.msra.mxu0 0
        %302 = vmatprep.subr.bf16.mxu0 0
        %303 = vmatpush1.bf16.msra.mxu0 %v294
        %304 = vmatprep.subr.bf16.mxu0 0
        %305 = vmatpush1.bf16.msra.mxu0 %v282
        %306 = vmatprep.subr.bf16.mxu0 0
        %307 = vmatpush1.bf16.msra.mxu0 %v281
        %308 = vmatprep.subr.bf16.mxu0 0
        %309 = vmatpush1.bf16.msra.mxu0 %v280
        %310 = vmatprep.subr.bf16.mxu0 0
        %311 = vmatpush1.bf16.msra.mxu0 %v279
        %312 = vmatprep.subr.bf16.mxu0 0
        %313 = vmatpush2.bf16.msra.mxu0 0
        %314 = vmatprep.subr.bf16.mxu0 0
        %315 = vmatpush2.bf16.msra.mxu0 0
        %316 = vmatprep.subr.bf16.mxu0 0
        %317 = vmatpush2.bf16.msra.mxu0 0
        %318 = vmatprep.subr.bf16.mxu0 0
        %319 = vmatpush2.bf16.msra.mxu0 0
        %320 = vmatprep.subr.bf16.mxu0 0
        %321 = vmatpush2.bf16.msra.mxu0 0
        %322 = vmatprep.subr.bf16.mxu0 0
        %323 = vmatpush2.bf16.msra.mxu0 0
        %324 = vmatprep.subr.bf16.mxu0 0
        %325 = vmatpush2.bf16.msra.mxu0 0
        %326 = vmatprep.subr.bf16.mxu0 0
        %327 = vmatpush2.bf16.msra.mxu0 0
        %328 = vmatprep.mubr.bf16.mxu0 0
        %329 = vmatmul.mubr.bf16.gmra.mxu0 %v290
        %v330 = vpop.f32.mrf.mxu0
        %v331 = vadd.f32 %v259, %v330
        %v332 = vpop.f32.mrf.mxu0
        %v333 = vpop.f32.mrf.mxu0
        %v334 = vpop.f32.mrf.mxu0
        %335 = vdwg.mxu0
        %336 = vst [vmem:[%s243] sm:$0x7] %v331
        %p337 = scmp.lt.s32.totalorder %s14, 8
        %s338 = scalar_select %p337, %s14, 8
        %s339 = smul.addr %s338, 4
        %s340 = scalar_lea.vmem %s3, %s339
        // Predicated region
        $region74: #{_lambda_.17} parent=68 // pred_check
          %p341 = pneg %p100
        $region75: #{_lambda_.17} parent=68 // pred_check_branch
          %343 = sbr.rel (%p341) target = $region77
        $region76: #{_lambda_.17} parent=68 // pred_region
          _
        $region77: #{_lambda_.17} parent=68 // pred_fallthru
          _
      $region69: #{_lambda_.17} parent=5 // pred_fallthru
        _
      %p344 = scmp.le.s32.totalorder 2, %s9
      // Predicated region
      $region78: #{_lambda_.17} parent=5 // pred_check
        %p345 = pneg %p344
      $region79: #{_lambda_.17} parent=5 // pred_check_branch
        %347 = sbr.rel (%p345) target = $region81
      $region80: #{_lambda_.17} parent=5 // pred_region
        %s348 = ssub.s32 %s9, 2
        // Predicated region
        $region82: #{_lambda_.17} parent=80 // pred_check
          %p349 = pneg %p106
        $region83: #{_lambda_.17} parent=80 // pred_check_branch
          %351 = sbr.rel (%p349) target = $region85
        $region84: #{_lambda_.17} parent=80 // pred_region
          %p352 = scmp.lt.s32.totalorder %s15, 8
          %s353 = scalar_select %p352, %s15, 8
          %s354 = smul.addr %s353, 4
          %s355 = scalar_lea.vmem %s3, %s354
        $region85: #{_lambda_.17} parent=80 // pred_fallthru
          _
      $region81: #{_lambda_.17} parent=5 // pred_fallthru
        _
    $region6: #{_lambda_.17} parent=1 // loop_footer
      %s13 = sadd.s32 1, %s9
    $region7: #{_lambda_.17} parent=1 // loop_footer_branch
      %8 = sbr.rel target = $region3
    $region8: #{_lambda_.17} parent=1 // loop_exit
      _

</llo_original>
